<compile_context>
chip_gen: v6e
topology: v6e:2x2x1
jax: 0.10.0
libtpu: 0.0.40
codegen_flags: <defaults>
</compile_context>

<pallas_src>
import functools

import numpy as np
import jax
import jax.numpy as jnp
from jax import lax
from jax.experimental import pallas as pl
from jax.experimental.pallas import tpu as pltpu

# ----------------------------- synthetic config -----------------------------
VOCAB = 128            # synthetic vocab (stand-in for GPT-2's 50257+1)
HIDDEN = 64            # config.hidden_size / embedding_dim
N_HEAD = 2
HEAD_DIM = HIDDEN // N_HEAD
N_LAYER = 2
FFN = 4 * HIDDEN
NUM_LABELS = 5         # config.num_labels
NUM_LABELS_PAD = 128   # lane-dense classifier output (sliced back to NUM_LABELS)
MAX_POS = 64
TEMPLATE = (3, 3)      # self.template
SPELL = sum(TEMPLATE)  # self.spell_length
PSEUDO_TOKEN_ID = VOCAB - 1
PAD_TOKEN_ID = 0
BATCH = 2
MAX_LEN = 8            # bx (padded input_ids length)
NEG_INF = -1e9


def _round_up(x, m):
    return ((x + m - 1) // m) * m


# static, sublane-aligned query length (prompt1 + input + prompt2 + input)
L_PAD = _round_up(TEMPLATE[0] + MAX_LEN + TEMPLATE[1] + MAX_LEN, 8)   # 24


# ------------------------------ kernel helpers -------------------------------
def _ln_f32(x, g, b, eps=1e-5):
    """One-pass layernorm: var = E[x^2] - mean^2 (fewer f32 VALU passes)."""
    mean = jnp.mean(x, axis=-1, keepdims=True)
    msq = jnp.mean(x * x, axis=-1, keepdims=True)
    var = msq - mean * mean
    return (x - mean) * lax.rsqrt(var + eps) * g + b


def _gelu_new(x):
    c = float(np.sqrt(2.0 / np.pi))
    return 0.5 * x * (1.0 + jnp.tanh(c * (x + 0.044715 * x * x * x)))


def _bdot(a_bf16, b_bf16):
    """bf16 MXU matmul with f32 accumulation."""
    return jnp.dot(a_bf16, b_bf16, preferred_element_type=jnp.float32)


# ------------------------------- fused kernel --------------------------------
def _fused_gpt2_kernel(h0_ref, mask_ref,
                       ln1g_ref, ln1b_ref, wq_ref, wk_ref, wv_ref,
                       bq_ref, bk_ref, bv_ref, wo_ref, bo_ref,
                       ln2g_ref, ln2b_ref, fcw_ref, fcb_ref, pw_ref, pb_ref,
                       lnfg_ref, lnfb_ref, wte_ref, clsw_ref, clsb_ref,
                       lm_ref, cls_ref):
    """Whole GPT-2 forward for the padded batch, fully resident in VMEM.

    h0_ref:  (B*L, H) f32 input embeddings (+ positional)
    mask_ref:(B*L, B*L) f32 additive block-diagonal mask (causal + key padding)
    lm_ref:  (B*L, VOCAB)       lane-dense LM-head logits
    cls_ref: (B*L, NUM_LABELS_PAD) lane-dense classifier logits
    """
    h = h0_ref[...]                       # (B*L, H) float32 accumulator
    addm = mask_ref[...]                  # (B*L, B*L) additive mask, reused per layer/head
    scale = 1.0 / float(np.sqrt(HEAD_DIM))

    for l in range(N_LAYER):              # static unroll; weights stay VMEM-resident
        # ---- ln1 -> attention (batch folded into M, block-diagonal mask) ----
        x = _ln_f32(h, ln1g_ref[l], ln1b_ref[l])
        xb = x.astype(jnp.bfloat16)
        attn = jnp.zeros_like(h)
        for hd in range(N_HEAD):
            # per-head weights picked by free leading-axis ref indexing (no lane slicing)
            q = _bdot(xb, wq_ref[l, hd]) + bq_ref[l, hd]          # (B*L, Dh) f32
            k = _bdot(xb, wk_ref[l, hd]) + bk_ref[l, hd]
            v = _bdot(xb, wv_ref[l, hd]) + bv_ref[l, hd]
            # q @ k^T with the transpose done by the MXU (no XLU relayout)
            s = lax.dot_general(q.astype(jnp.bfloat16), k.astype(jnp.bfloat16),
                                dimension_numbers=(((1,), (1,)), ((), ())),
                                preferred_element_type=jnp.float32)
            s = s * scale + addm
            s = s - jnp.max(s, axis=-1, keepdims=True)
            p = jnp.exp(s)
            p = p * pl.reciprocal(jnp.sum(p, axis=-1, keepdims=True), approx=True)
            o = _bdot(p.astype(jnp.bfloat16), v.astype(jnp.bfloat16))   # (B*L, Dh)
            # per-head projection accumulated == concat(heads) @ Wproj
            attn = attn + _bdot(o.astype(jnp.bfloat16), wo_ref[l, hd])  # (B*L, H)
        h = h + attn + bo_ref[l]

        # ---- ln2 -> MLP (gelu) -> residual ----
        x = _ln_f32(h, ln2g_ref[l], ln2b_ref[l])
        m = _gelu_new(_bdot(x.astype(jnp.bfloat16), fcw_ref[l]) + fcb_ref[l])
        h = h + _bdot(m.astype(jnp.bfloat16), pw_ref[l]) + pb_ref[l]

    # ---- final ln_f + weight-tied LM head + padded classifier ----
    hf = _ln_f32(h, lnfg_ref[...], lnfb_ref[...])
    hfb = hf.astype(jnp.bfloat16)
    lm_ref[...] = lax.dot_general(hfb, wte_ref[...],
                                  dimension_numbers=(((1,), (1,)), ((), ())),
                                  preferred_element_type=jnp.float32)
    cls_ref[...] = _bdot(hfb, clsw_ref[...]) + clsb_ref[...]


def _fused_gpt2(h0, addmask, p):
    """Single pallas_call for the whole transformer + heads (everything fits VMEM)."""
    bl = h0.shape[0]
    return pl.pallas_call(
        _fused_gpt2_kernel,
        out_shape=(jax.ShapeDtypeStruct((bl, VOCAB), jnp.float32),
                   jax.ShapeDtypeStruct((bl, NUM_LABELS_PAD), jnp.float32)),
        compiler_params=pltpu.CompilerParams(vmem_limit_bytes=64 * 1024 * 1024),
    )(h0, addmask,
      p["ln1_g"], p["ln1_b"], p["wq"], p["wk"], p["wv"],
      p["bq"], p["bk"], p["bv"], p["wo"], p["bo"],
      p["ln2_g"], p["ln2_b"], p["fcw"], p["fcb"], p["pw"], p["pb"],
      p["lnf_g"], p["lnf_b"], p["wte_bf16"], p["cls_w_pad"], p["cls_b_pad"])


# ------------------------------ parameter setup ------------------------------
def init_params(key):
    keys = iter(jax.random.split(key, 64))

    def nrm(shape, std=0.02):
        return (std * jax.random.normal(next(keys), shape)).astype(jnp.float32)

    wte = nrm((VOCAB, HIDDEN))                       # f32 copy for embedding gather
    cls_w = nrm((HIDDEN, NUM_LABELS))
    cls_w_pad = jnp.zeros((HIDDEN, NUM_LABELS_PAD), jnp.float32)
    cls_w_pad = cls_w_pad.at[:, :NUM_LABELS].set(cls_w)

    return dict(
        # embeddings
        wte=wte,
        wte_bf16=wte.astype(jnp.bfloat16),           # weight-tied LM head (bf16 in HBM)
        wpe=nrm((MAX_POS, HIDDEN)),
        # transformer blocks, stacked on a leading layer axis; attn weights also
        # stacked per head (leading-axis ref indexing is free in the kernel)
        ln1_g=jnp.ones((N_LAYER, 1, HIDDEN), jnp.float32),
        ln1_b=jnp.zeros((N_LAYER, 1, HIDDEN), jnp.float32),
        wq=nrm((N_LAYER, N_HEAD, HIDDEN, HEAD_DIM)).astype(jnp.bfloat16),
        wk=nrm((N_LAYER, N_HEAD, HIDDEN, HEAD_DIM)).astype(jnp.bfloat16),
        wv=nrm((N_LAYER, N_HEAD, HIDDEN, HEAD_DIM)).astype(jnp.bfloat16),
        bq=jnp.zeros((N_LAYER, N_HEAD, 1, HEAD_DIM), jnp.float32),
        bk=jnp.zeros((N_LAYER, N_HEAD, 1, HEAD_DIM), jnp.float32),
        bv=jnp.zeros((N_LAYER, N_HEAD, 1, HEAD_DIM), jnp.float32),
        wo=nrm((N_LAYER, N_HEAD, HEAD_DIM, HIDDEN)).astype(jnp.bfloat16),
        bo=jnp.zeros((N_LAYER, 1, HIDDEN), jnp.float32),
        ln2_g=jnp.ones((N_LAYER, 1, HIDDEN), jnp.float32),
        ln2_b=jnp.zeros((N_LAYER, 1, HIDDEN), jnp.float32),
        fcw=nrm((N_LAYER, HIDDEN, FFN)).astype(jnp.bfloat16),
        fcb=jnp.zeros((N_LAYER, 1, FFN), jnp.float32),
        pw=nrm((N_LAYER, FFN, HIDDEN)).astype(jnp.bfloat16),
        pb=jnp.zeros((N_LAYER, 1, HIDDEN), jnp.float32),
        # final layernorm + classifier (classifier padded to 128 output lanes)
        lnf_g=jnp.ones((1, HIDDEN), jnp.float32),
        lnf_b=jnp.zeros((1, HIDDEN), jnp.float32),
        cls_w_pad=cls_w_pad.astype(jnp.bfloat16),
        cls_b_pad=jnp.zeros((1, NUM_LABELS_PAD), jnp.float32),
        # prompt encoder (embedding -> MLP head; LSTM recurrence not modeled)
        prompt_emb=nrm((SPELL + 1, HIDDEN)),
        prompt_mlp1_w=nrm((HIDDEN, HIDDEN)),
        prompt_mlp1_b=jnp.zeros((1, HIDDEN), jnp.float32),
        prompt_mlp2_w=nrm((HIDDEN, HIDDEN)),
        prompt_mlp2_b=jnp.zeros((1, HIDDEN), jnp.float32),
    )


# ------------------------- device-side forward (jitted) -----------------------
@functools.partial(jax.jit, static_argnames=("start", "l_true"))
def _device_forward(params, queries, repl_idx, addmask, gather_idx, valid,
                    *, start, l_true):
    # prompt encoder MLP head — left to XLA inside this jit (no extra kernel launch)
    # TODO(synk): original PromptEncoder is embedding -> 2-layer LSTM -> MLP; the
    # LSTM recurrence has no clean Pallas mapping at this size, only the MLP head.
    e = params["prompt_emb"]
    hdn = jax.nn.relu(e @ params["prompt_mlp1_w"] + params["prompt_mlp1_b"])
    replace = hdn @ params["prompt_mlp2_w"] + params["prompt_mlp2_b"]   # (SPELL+1, H)

    # embed_input (vectorized prompt-token replacement)
    q_for_emb = jnp.where(queries == PSEUDO_TOKEN_ID, PSEUDO_TOKEN_ID - 1, queries)
    raw = jnp.take(params["wte"], q_for_emb, axis=0)                    # (B, L, H)
    raw = jnp.where((repl_idx >= 0)[..., None],
                    jnp.take(replace, jnp.maximum(repl_idx, 0), axis=0),
                    raw)
    h0 = (raw + params["wpe"][:L_PAD][None]).reshape(-1, HIDDEN)        # (B*L, H)

    # ---- whole GPT-2 forward in ONE fused Pallas kernel ----
    lm_flat, cls_flat = _fused_gpt2(h0, addmask, params)
    bz = queries.shape[0]
    lm_logits = lm_flat.reshape(bz, L_PAD, VOCAB)
    cls_all = cls_flat.reshape(bz, L_PAD, NUM_LABELS_PAD)

    # example = argsort(lm_logits, descending)[0, spell + counts[0] + 1 :, 0]
    example = jnp.argmax(lm_logits[0, start:l_true, :], axis=-1)

    # per-example slice of classifier logits; invalid rows -> classifier(0) = bias
    lg = jnp.take_along_axis(cls_all, gather_idx[..., None], axis=1)    # (B, bx, 128)
    lg = jnp.where(valid[..., None], lg, params["cls_b_pad"][0][None, None, :])
    logits = lg[..., :NUM_LABELS]
    return logits, example


# -------------------------------- forward pass --------------------------------
def gpt2_crf_for_ner_forward(params, input_ids_np):
    """Mirrors GPT2CrfForNer.forward (inference path, labels=None)."""
    bz, bx = input_ids_np.shape
    L = L_PAD

    # ---- get_query (host-side, as in the PyTorch module) ----
    counts, query_list = [], []
    for b in range(bz):
        inp = [int(t) for t in input_ids_np[b] if int(t) != 0]
        counts.append(len(inp))
        prompt1 = [PSEUDO_TOKEN_ID] * TEMPLATE[0]
        prompt2 = [PSEUDO_TOKEN_ID] * TEMPLATE[1]
        if TEMPLATE[0] == TEMPLATE[1]:
            q = prompt1 + inp + prompt2 + inp
        else:
            q = prompt1 + inp + prompt2
        query_list.append(q)
    l_true = max(len(q) for q in query_list)              # batch-max (matches pad_sequence)

    queries_np = np.full((bz, L), PAD_TOKEN_ID, dtype=np.int32)
    for b, q in enumerate(query_list):
        queries_np[b, :len(q)] = q
    key_valid_np = queries_np != PAD_TOKEN_ID

    # block-diagonal additive attention mask (causal + key padding), built ONCE on
    # the host and reused across all layers/heads inside the fused kernel
    mask_np = np.full((bz * L, bz * L), NEG_INF, dtype=np.float32)
    causal = np.tril(np.ones((L, L), dtype=np.float32))
    for b in range(bz):
        ok = causal * key_valid_np[b].astype(np.float32)[None, :]
        mask_np[b * L:(b + 1) * L, b * L:(b + 1) * L] = np.where(ok > 0, 0.0, NEG_INF)

    # prompt-replacement indices (same index arithmetic as embed_input)
    repl_idx_np = np.full((bz, L), -1, dtype=np.int32)
    for b in range(bz):
        repl_idx_np[b, :TEMPLATE[0]] = np.arange(TEMPLATE[0])
        off = counts[b] + TEMPLATE[0]
        repl_idx_np[b, off:off + TEMPLATE[1]] = TEMPLATE[0] + np.arange(TEMPLATE[1])
        repl_idx_np[b, TEMPLATE[1] + counts[b] + TEMPLATE[0]] = SPELL

    # per-example output slicing: sequence[b, :counts[b]] = hidden[b, place:place+counts[b]]
    gather_idx_np = np.zeros((bz, bx), dtype=np.int32)
    valid_np = np.zeros((bz, bx), dtype=bool)
    for b in range(bz):
        place = SPELL + counts[b] if TEMPLATE[0] == TEMPLATE[1] else TEMPLATE[0] + counts[b]
        gather_idx_np[b, :counts[b]] = place + np.arange(counts[b])
        valid_np[b, :counts[b]] = True

    start = SPELL + counts[0] + 1

    # TODO(synk): CRF negative log-likelihood (labels path) not implemented.
    # dropout(resid_pdrop) is identity at inference.
    return _device_forward(params,
                           jnp.asarray(queries_np), jnp.asarray(repl_idx_np),
                           jnp.asarray(mask_np), jnp.asarray(gather_idx_np),
                           jnp.asarray(valid_np), start=start, l_true=l_true)


# ------------------------------------ main ------------------------------------
if __name__ == "__main__":
    key = jax.random.PRNGKey(0)
    pkey, dkey = jax.random.split(key)
    params = init_params(pkey)

    # deterministic padded input_ids, shape [batch, max_length] = [2, 8]
    toks = np.array(jax.random.randint(dkey, (BATCH, MAX_LEN), 1, 100, dtype=jnp.int32))
    lengths = [5, 7]
    for b, ln in enumerate(lengths):
        toks[b, ln:] = 0

    logits, example = gpt2_crf_for_ner_forward(params, toks)
    jax.block_until_ready((logits, example))
    assert logits.shape == (BATCH, MAX_LEN, NUM_LABELS)
    print("KERNEL_OK")
</pallas_src>

<mosaic_0001>
module attributes {stable_mosaic.version = 11 : i64} {
  func.func @_fused_gpt2_kernel(%arg0: memref<48x64xf32, #tpu.memory_space<vmem>>, %arg1: memref<48x48xf32, #tpu.memory_space<vmem>>, %arg2: memref<2x1x64xf32, #tpu.memory_space<vmem>>, %arg3: memref<2x1x64xf32, #tpu.memory_space<vmem>>, %arg4: memref<2x2x64x32xbf16, #tpu.memory_space<vmem>>, %arg5: memref<2x2x64x32xbf16, #tpu.memory_space<vmem>>, %arg6: memref<2x2x64x32xbf16, #tpu.memory_space<vmem>>, %arg7: memref<2x2x1x32xf32, #tpu.memory_space<vmem>>, %arg8: memref<2x2x1x32xf32, #tpu.memory_space<vmem>>, %arg9: memref<2x2x1x32xf32, #tpu.memory_space<vmem>>, %arg10: memref<2x2x32x64xbf16, #tpu.memory_space<vmem>>, %arg11: memref<2x1x64xf32, #tpu.memory_space<vmem>>, %arg12: memref<2x1x64xf32, #tpu.memory_space<vmem>>, %arg13: memref<2x1x64xf32, #tpu.memory_space<vmem>>, %arg14: memref<2x64x256xbf16, #tpu.memory_space<vmem>>, %arg15: memref<2x1x256xf32, #tpu.memory_space<vmem>>, %arg16: memref<2x256x64xbf16, #tpu.memory_space<vmem>>, %arg17: memref<2x1x64xf32, #tpu.memory_space<vmem>>, %arg18: memref<1x64xf32, #tpu.memory_space<vmem>>, %arg19: memref<1x64xf32, #tpu.memory_space<vmem>>, %arg20: memref<128x64xbf16, #tpu.memory_space<vmem>>, %arg21: memref<64x128xbf16, #tpu.memory_space<vmem>>, %arg22: memref<1x128xf32, #tpu.memory_space<vmem>>, %arg23: memref<48x128xf32, #tpu.memory_space<vmem>>, %arg24: memref<48x128xf32, #tpu.memory_space<vmem>>) attributes {dimension_semantics = [], scalar_prefetch = 0 : i64, scratch_operands = 0 : i64, tpu.core_type = #tpu.core_type<tc>} {
    %c0 = arith.constant 0 : index
    %c0_0 = arith.constant 0 : index
    %0 = vector.load %arg0[%c0, %c0_0] : memref<48x64xf32, #tpu.memory_space<vmem>>, vector<48x64xf32>
    %c0_1 = arith.constant 0 : index
    %c0_2 = arith.constant 0 : index
    %1 = vector.load %arg1[%c0_1, %c0_2] : memref<48x48xf32, #tpu.memory_space<vmem>>, vector<48x48xf32>
    %c0_3 = arith.constant 0 : index
    %c0_4 = arith.constant 0 : index
    %c0_5 = arith.constant 0 : index
    %2 = vector.load %arg2[%c0_3, %c0_4, %c0_5] : memref<2x1x64xf32, #tpu.memory_space<vmem>>, vector<1x1x64xf32>
    %3 = vector.shape_cast %2 : vector<1x1x64xf32> to vector<1x64xf32>
    %c0_6 = arith.constant 0 : index
    %c0_7 = arith.constant 0 : index
    %c0_8 = arith.constant 0 : index
    %4 = vector.load %arg3[%c0_6, %c0_7, %c0_8] : memref<2x1x64xf32, #tpu.memory_space<vmem>>, vector<1x1x64xf32>
    %5 = vector.shape_cast %4 : vector<1x1x64xf32> to vector<1x64xf32>
    %cst = arith.constant dense<0.000000e+00> : vector<48xf32>
    %6 = vector.multi_reduction <add>, %0, %cst [1] : vector<48x64xf32> to vector<48xf32>
    %7 = vector.shape_cast %6 : vector<48xf32> to vector<48x1xf32>
    %cst_9 = arith.constant 6.400000e+01 : f32
    %8 = vector.broadcast %cst_9 : f32 to vector<48x1xf32>
    %9 = arith.divf %7, %8 : vector<48x1xf32>
    %10 = arith.mulf %0, %0 : vector<48x64xf32>
    %cst_10 = arith.constant dense<0.000000e+00> : vector<48xf32>
    %11 = vector.multi_reduction <add>, %10, %cst_10 [1] : vector<48x64xf32> to vector<48xf32>
    %12 = vector.shape_cast %11 : vector<48xf32> to vector<48x1xf32>
    %cst_11 = arith.constant 6.400000e+01 : f32
    %13 = vector.broadcast %cst_11 : f32 to vector<48x1xf32>
    %14 = arith.divf %12, %13 : vector<48x1xf32>
    %15 = arith.mulf %9, %9 : vector<48x1xf32>
    %16 = arith.subf %14, %15 : vector<48x1xf32>
    %17 = vector.broadcast %9 : vector<48x1xf32> to vector<48x64xf32>
    %18 = arith.subf %0, %17 : vector<48x64xf32>
    %cst_12 = arith.constant 9.99999974E-6 : f32
    %19 = vector.broadcast %cst_12 : f32 to vector<48x1xf32>
    %20 = arith.addf %16, %19 : vector<48x1xf32>
    %21 = math.rsqrt %20 : vector<48x1xf32>
    %22 = vector.broadcast %21 : vector<48x1xf32> to vector<48x64xf32>
    %23 = arith.mulf %18, %22 : vector<48x64xf32>
    %24 = vector.broadcast %3 : vector<1x64xf32> to vector<48x64xf32>
    %25 = arith.mulf %23, %24 : vector<48x64xf32>
    %26 = vector.broadcast %5 : vector<1x64xf32> to vector<48x64xf32>
    %27 = arith.addf %25, %26 : vector<48x64xf32>
    %28 = arith.truncf %27 : vector<48x64xf32> to vector<48x64xbf16>
    %cst_13 = arith.constant 0.000000e+00 : f32
    %29 = vector.broadcast %cst_13 : f32 to vector<48x64xf32>
    %c0_14 = arith.constant 0 : index
    %c0_15 = arith.constant 0 : index
    %c0_16 = arith.constant 0 : index
    %c0_17 = arith.constant 0 : index
    %30 = vector.load %arg4[%c0_14, %c0_15, %c0_16, %c0_17] : memref<2x2x64x32xbf16, #tpu.memory_space<vmem>>, vector<1x1x64x32xbf16>
    %31 = vector.shape_cast %30 : vector<1x1x64x32xbf16> to vector<64x32xbf16>
    %cst_18 = arith.constant dense<0.000000e+00> : vector<48x32xf32>
    %32 = tpu.matmul %28, %31, %cst_18 {dimension_numbers = #tpu.dot_dimension_numbers<[1], [0], [0], [1], [0, 0, 1, 1], [], []>} : vector<48x64xbf16>, vector<64x32xbf16>, vector<48x32xf32> -> vector<48x32xf32>
    %c0_19 = arith.constant 0 : index
    %c0_20 = arith.constant 0 : index
    %c0_21 = arith.constant 0 : index
    %c0_22 = arith.constant 0 : index
    %33 = vector.load %arg7[%c0_19, %c0_20, %c0_21, %c0_22] : memref<2x2x1x32xf32, #tpu.memory_space<vmem>>, vector<1x1x1x32xf32>
    %34 = vector.shape_cast %33 : vector<1x1x1x32xf32> to vector<1x32xf32>
    %35 = vector.broadcast %34 : vector<1x32xf32> to vector<48x32xf32>
    %36 = arith.addf %32, %35 : vector<48x32xf32>
    %c0_23 = arith.constant 0 : index
    %c0_24 = arith.constant 0 : index
    %c0_25 = arith.constant 0 : index
    %c0_26 = arith.constant 0 : index
    %37 = vector.load %arg5[%c0_23, %c0_24, %c0_25, %c0_26] : memref<2x2x64x32xbf16, #tpu.memory_space<vmem>>, vector<1x1x64x32xbf16>
    %38 = vector.shape_cast %37 : vector<1x1x64x32xbf16> to vector<64x32xbf16>
    %cst_27 = arith.constant dense<0.000000e+00> : vector<48x32xf32>
    %39 = tpu.matmul %28, %38, %cst_27 {dimension_numbers = #tpu.dot_dimension_numbers<[1], [0], [0], [1], [0, 0, 1, 1], [], []>} : vector<48x64xbf16>, vector<64x32xbf16>, vector<48x32xf32> -> vector<48x32xf32>
    %c0_28 = arith.constant 0 : index
    %c0_29 = arith.constant 0 : index
    %c0_30 = arith.constant 0 : index
    %c0_31 = arith.constant 0 : index
    %40 = vector.load %arg8[%c0_28, %c0_29, %c0_30, %c0_31] : memref<2x2x1x32xf32, #tpu.memory_space<vmem>>, vector<1x1x1x32xf32>
    %41 = vector.shape_cast %40 : vector<1x1x1x32xf32> to vector<1x32xf32>
    %42 = vector.broadcast %41 : vector<1x32xf32> to vector<48x32xf32>
    %43 = arith.addf %39, %42 : vector<48x32xf32>
    %c0_32 = arith.constant 0 : index
    %c0_33 = arith.constant 0 : index
    %c0_34 = arith.constant 0 : index
    %c0_35 = arith.constant 0 : index
    %44 = vector.load %arg6[%c0_32, %c0_33, %c0_34, %c0_35] : memref<2x2x64x32xbf16, #tpu.memory_space<vmem>>, vector<1x1x64x32xbf16>
    %45 = vector.shape_cast %44 : vector<1x1x64x32xbf16> to vector<64x32xbf16>
    %cst_36 = arith.constant dense<0.000000e+00> : vector<48x32xf32>
    %46 = tpu.matmul %28, %45, %cst_36 {dimension_numbers = #tpu.dot_dimension_numbers<[1], [0], [0], [1], [0, 0, 1, 1], [], []>} : vector<48x64xbf16>, vector<64x32xbf16>, vector<48x32xf32> -> vector<48x32xf32>
    %c0_37 = arith.constant 0 : index
    %c0_38 = arith.constant 0 : index
    %c0_39 = arith.constant 0 : index
    %c0_40 = arith.constant 0 : index
    %47 = vector.load %arg9[%c0_37, %c0_38, %c0_39, %c0_40] : memref<2x2x1x32xf32, #tpu.memory_space<vmem>>, vector<1x1x1x32xf32>
    %48 = vector.shape_cast %47 : vector<1x1x1x32xf32> to vector<1x32xf32>
    %49 = vector.broadcast %48 : vector<1x32xf32> to vector<48x32xf32>
    %50 = arith.addf %46, %49 : vector<48x32xf32>
    %51 = arith.truncf %36 : vector<48x32xf32> to vector<48x32xbf16>
    %52 = arith.truncf %43 : vector<48x32xf32> to vector<48x32xbf16>
    %cst_41 = arith.constant dense<0.000000e+00> : vector<48x48xf32>
    %53 = tpu.matmul %51, %52, %cst_41 {dimension_numbers = #tpu.dot_dimension_numbers<[1], [1], [0], [0], [0, 0, 1, 0], [], []>} : vector<48x32xbf16>, vector<48x32xbf16>, vector<48x48xf32> -> vector<48x48xf32>
    %cst_42 = arith.constant 0.176776692 : f32
    %54 = vector.broadcast %cst_42 : f32 to vector<48x48xf32>
    %55 = arith.mulf %53, %54 : vector<48x48xf32>
    %56 = arith.addf %55, %1 : vector<48x48xf32>
    %cst_43 = arith.constant dense<0xFF800000> : vector<48xf32>
    %57 = vector.multi_reduction <maximumf>, %56, %cst_43 [1] : vector<48x48xf32> to vector<48xf32>
    %58 = vector.shape_cast %57 : vector<48xf32> to vector<48x1xf32>
    %59 = vector.broadcast %58 : vector<48x1xf32> to vector<48x48xf32>
    %60 = arith.subf %56, %59 : vector<48x48xf32>
    %61 = math.exp %60 : vector<48x48xf32>
    %cst_44 = arith.constant dense<0.000000e+00> : vector<48xf32>
    %62 = vector.multi_reduction <add>, %61, %cst_44 [1] : vector<48x48xf32> to vector<48xf32>
    %63 = vector.shape_cast %62 : vector<48xf32> to vector<48x1xf32>
    %64 = tpu.reciprocal %63 {approx = true} : vector<48x1xf32> -> vector<48x1xf32>
    %65 = vector.broadcast %64 : vector<48x1xf32> to vector<48x48xf32>
    %66 = arith.mulf %61, %65 : vector<48x48xf32>
    %67 = arith.truncf %66 : vector<48x48xf32> to vector<48x48xbf16>
    %68 = arith.truncf %50 : vector<48x32xf32> to vector<48x32xbf16>
    %cst_45 = arith.constant dense<0.000000e+00> : vector<48x32xf32>
    %69 = tpu.matmul %67, %68, %cst_45 {dimension_numbers = #tpu.dot_dimension_numbers<[1], [0], [0], [1], [0, 0, 1, 1], [], []>} : vector<48x48xbf16>, vector<48x32xbf16>, vector<48x32xf32> -> vector<48x32xf32>
    %70 = arith.truncf %69 : vector<48x32xf32> to vector<48x32xbf16>
    %c0_46 = arith.constant 0 : index
    %c0_47 = arith.constant 0 : index
    %c0_48 = arith.constant 0 : index
    %c0_49 = arith.constant 0 : index
    %71 = vector.load %arg10[%c0_46, %c0_47, %c0_48, %c0_49] : memref<2x2x32x64xbf16, #tpu.memory_space<vmem>>, vector<1x1x32x64xbf16>
    %72 = vector.shape_cast %71 : vector<1x1x32x64xbf16> to vector<32x64xbf16>
    %cst_50 = arith.constant dense<0.000000e+00> : vector<48x64xf32>
    %73 = tpu.matmul %70, %72, %cst_50 {dimension_numbers = #tpu.dot_dimension_numbers<[1], [0], [0], [1], [0, 0, 1, 1], [], []>} : vector<48x32xbf16>, vector<32x64xbf16>, vector<48x64xf32> -> vector<48x64xf32>
    %74 = arith.addf %29, %73 : vector<48x64xf32>
    %c0_51 = arith.constant 0 : index
    %c1 = arith.constant 1 : index
    %c0_52 = arith.constant 0 : index
    %c0_53 = arith.constant 0 : index
    %75 = vector.load %arg4[%c0_51, %c1, %c0_52, %c0_53] : memref<2x2x64x32xbf16, #tpu.memory_space<vmem>>, vector<1x1x64x32xbf16>
    %76 = vector.shape_cast %75 : vector<1x1x64x32xbf16> to vector<64x32xbf16>
    %cst_54 = arith.constant dense<0.000000e+00> : vector<48x32xf32>
    %77 = tpu.matmul %28, %76, %cst_54 {dimension_numbers = #tpu.dot_dimension_numbers<[1], [0], [0], [1], [0, 0, 1, 1], [], []>} : vector<48x64xbf16>, vector<64x32xbf16>, vector<48x32xf32> -> vector<48x32xf32>
    %c0_55 = arith.constant 0 : index
    %c1_56 = arith.constant 1 : index
    %c0_57 = arith.constant 0 : index
    %c0_58 = arith.constant 0 : index
    %78 = vector.load %arg7[%c0_55, %c1_56, %c0_57, %c0_58] : memref<2x2x1x32xf32, #tpu.memory_space<vmem>>, vector<1x1x1x32xf32>
    %79 = vector.shape_cast %78 : vector<1x1x1x32xf32> to vector<1x32xf32>
    %80 = vector.broadcast %79 : vector<1x32xf32> to vector<48x32xf32>
    %81 = arith.addf %77, %80 : vector<48x32xf32>
    %c0_59 = arith.constant 0 : index
    %c1_60 = arith.constant 1 : index
    %c0_61 = arith.constant 0 : index
    %c0_62 = arith.constant 0 : index
    %82 = vector.load %arg5[%c0_59, %c1_60, %c0_61, %c0_62] : memref<2x2x64x32xbf16, #tpu.memory_space<vmem>>, vector<1x1x64x32xbf16>
    %83 = vector.shape_cast %82 : vector<1x1x64x32xbf16> to vector<64x32xbf16>
    %cst_63 = arith.constant dense<0.000000e+00> : vector<48x32xf32>
    %84 = tpu.matmul %28, %83, %cst_63 {dimension_numbers = #tpu.dot_dimension_numbers<[1], [0], [0], [1], [0, 0, 1, 1], [], []>} : vector<48x64xbf16>, vector<64x32xbf16>, vector<48x32xf32> -> vector<48x32xf32>
    %c0_64 = arith.constant 0 : index
    %c1_65 = arith.constant 1 : index
    %c0_66 = arith.constant 0 : index
    %c0_67 = arith.constant 0 : index
    %85 = vector.load %arg8[%c0_64, %c1_65, %c0_66, %c0_67] : memref<2x2x1x32xf32, #tpu.memory_space<vmem>>, vector<1x1x1x32xf32>
    %86 = vector.shape_cast %85 : vector<1x1x1x32xf32> to vector<1x32xf32>
    %87 = vector.broadcast %86 : vector<1x32xf32> to vector<48x32xf32>
    %88 = arith.addf %84, %87 : vector<48x32xf32>
    %c0_68 = arith.constant 0 : index
    %c1_69 = arith.constant 1 : index
    %c0_70 = arith.constant 0 : index
    %c0_71 = arith.constant 0 : index
    %89 = vector.load %arg6[%c0_68, %c1_69, %c0_70, %c0_71] : memref<2x2x64x32xbf16, #tpu.memory_space<vmem>>, vector<1x1x64x32xbf16>
    %90 = vector.shape_cast %89 : vector<1x1x64x32xbf16> to vector<64x32xbf16>
    %cst_72 = arith.constant dense<0.000000e+00> : vector<48x32xf32>
    %91 = tpu.matmul %28, %90, %cst_72 {dimension_numbers = #tpu.dot_dimension_numbers<[1], [0], [0], [1], [0, 0, 1, 1], [], []>} : vector<48x64xbf16>, vector<64x32xbf16>, vector<48x32xf32> -> vector<48x32xf32>
    %c0_73 = arith.constant 0 : index
    %c1_74 = arith.constant 1 : index
    %c0_75 = arith.constant 0 : index
    %c0_76 = arith.constant 0 : index
    %92 = vector.load %arg9[%c0_73, %c1_74, %c0_75, %c0_76] : memref<2x2x1x32xf32, #tpu.memory_space<vmem>>, vector<1x1x1x32xf32>
    %93 = vector.shape_cast %92 : vector<1x1x1x32xf32> to vector<1x32xf32>
    %94 = vector.broadcast %93 : vector<1x32xf32> to vector<48x32xf32>
    %95 = arith.addf %91, %94 : vector<48x32xf32>
    %96 = arith.truncf %81 : vector<48x32xf32> to vector<48x32xbf16>
    %97 = arith.truncf %88 : vector<48x32xf32> to vector<48x32xbf16>
    %cst_77 = arith.constant dense<0.000000e+00> : vector<48x48xf32>
    %98 = tpu.matmul %96, %97, %cst_77 {dimension_numbers = #tpu.dot_dimension_numbers<[1], [1], [0], [0], [0, 0, 1, 0], [], []>} : vector<48x32xbf16>, vector<48x32xbf16>, vector<48x48xf32> -> vector<48x48xf32>
    %cst_78 = arith.constant 0.176776692 : f32
    %99 = vector.broadcast %cst_78 : f32 to vector<48x48xf32>
    %100 = arith.mulf %98, %99 : vector<48x48xf32>
    %101 = arith.addf %100, %1 : vector<48x48xf32>
    %cst_79 = arith.constant dense<0xFF800000> : vector<48xf32>
    %102 = vector.multi_reduction <maximumf>, %101, %cst_79 [1] : vector<48x48xf32> to vector<48xf32>
    %103 = vector.shape_cast %102 : vector<48xf32> to vector<48x1xf32>
    %104 = vector.broadcast %103 : vector<48x1xf32> to vector<48x48xf32>
    %105 = arith.subf %101, %104 : vector<48x48xf32>
    %106 = math.exp %105 : vector<48x48xf32>
    %cst_80 = arith.constant dense<0.000000e+00> : vector<48xf32>
    %107 = vector.multi_reduction <add>, %106, %cst_80 [1] : vector<48x48xf32> to vector<48xf32>
    %108 = vector.shape_cast %107 : vector<48xf32> to vector<48x1xf32>
    %109 = tpu.reciprocal %108 {approx = true} : vector<48x1xf32> -> vector<48x1xf32>
    %110 = vector.broadcast %109 : vector<48x1xf32> to vector<48x48xf32>
    %111 = arith.mulf %106, %110 : vector<48x48xf32>
    %112 = arith.truncf %111 : vector<48x48xf32> to vector<48x48xbf16>
    %113 = arith.truncf %95 : vector<48x32xf32> to vector<48x32xbf16>
    %cst_81 = arith.constant dense<0.000000e+00> : vector<48x32xf32>
    %114 = tpu.matmul %112, %113, %cst_81 {dimension_numbers = #tpu.dot_dimension_numbers<[1], [0], [0], [1], [0, 0, 1, 1], [], []>} : vector<48x48xbf16>, vector<48x32xbf16>, vector<48x32xf32> -> vector<48x32xf32>
    %115 = arith.truncf %114 : vector<48x32xf32> to vector<48x32xbf16>
    %c0_82 = arith.constant 0 : index
    %c1_83 = arith.constant 1 : index
    %c0_84 = arith.constant 0 : index
    %c0_85 = arith.constant 0 : index
    %116 = vector.load %arg10[%c0_82, %c1_83, %c0_84, %c0_85] : memref<2x2x32x64xbf16, #tpu.memory_space<vmem>>, vector<1x1x32x64xbf16>
    %117 = vector.shape_cast %116 : vector<1x1x32x64xbf16> to vector<32x64xbf16>
    %cst_86 = arith.constant dense<0.000000e+00> : vector<48x64xf32>
    %118 = tpu.matmul %115, %117, %cst_86 {dimension_numbers = #tpu.dot_dimension_numbers<[1], [0], [0], [1], [0, 0, 1, 1], [], []>} : vector<48x32xbf16>, vector<32x64xbf16>, vector<48x64xf32> -> vector<48x64xf32>
    %119 = arith.addf %74, %118 : vector<48x64xf32>
    %120 = arith.addf %0, %119 : vector<48x64xf32>
    %c0_87 = arith.constant 0 : index
    %c0_88 = arith.constant 0 : index
    %c0_89 = arith.constant 0 : index
    %121 = vector.load %arg11[%c0_87, %c0_88, %c0_89] : memref<2x1x64xf32, #tpu.memory_space<vmem>>, vector<1x1x64xf32>
    %122 = vector.shape_cast %121 : vector<1x1x64xf32> to vector<1x64xf32>
    %123 = vector.broadcast %122 : vector<1x64xf32> to vector<48x64xf32>
    %124 = arith.addf %120, %123 : vector<48x64xf32>
    %c0_90 = arith.constant 0 : index
    %c0_91 = arith.constant 0 : index
    %c0_92 = arith.constant 0 : index
    %125 = vector.load %arg12[%c0_90, %c0_91, %c0_92] : memref<2x1x64xf32, #tpu.memory_space<vmem>>, vector<1x1x64xf32>
    %126 = vector.shape_cast %125 : vector<1x1x64xf32> to vector<1x64xf32>
    %c0_93 = arith.constant 0 : index
    %c0_94 = arith.constant 0 : index
    %c0_95 = arith.constant 0 : index
    %127 = vector.load %arg13[%c0_93, %c0_94, %c0_95] : memref<2x1x64xf32, #tpu.memory_space<vmem>>, vector<1x1x64xf32>
    %128 = vector.shape_cast %127 : vector<1x1x64xf32> to vector<1x64xf32>
    %cst_96 = arith.constant dense<0.000000e+00> : vector<48xf32>
    %129 = vector.multi_reduction <add>, %124, %cst_96 [1] : vector<48x64xf32> to vector<48xf32>
    %130 = vector.shape_cast %129 : vector<48xf32> to vector<48x1xf32>
    %cst_97 = arith.constant 6.400000e+01 : f32
    %131 = vector.broadcast %cst_97 : f32 to vector<48x1xf32>
    %132 = arith.divf %130, %131 : vector<48x1xf32>
    %133 = arith.mulf %124, %124 : vector<48x64xf32>
    %cst_98 = arith.constant dense<0.000000e+00> : vector<48xf32>
    %134 = vector.multi_reduction <add>, %133, %cst_98 [1] : vector<48x64xf32> to vector<48xf32>
    %135 = vector.shape_cast %134 : vector<48xf32> to vector<48x1xf32>
    %cst_99 = arith.constant 6.400000e+01 : f32
    %136 = vector.broadcast %cst_99 : f32 to vector<48x1xf32>
    %137 = arith.divf %135, %136 : vector<48x1xf32>
    %138 = arith.mulf %132, %132 : vector<48x1xf32>
    %139 = arith.subf %137, %138 : vector<48x1xf32>
    %140 = vector.broadcast %132 : vector<48x1xf32> to vector<48x64xf32>
    %141 = arith.subf %124, %140 : vector<48x64xf32>
    %cst_100 = arith.constant 9.99999974E-6 : f32
    %142 = vector.broadcast %cst_100 : f32 to vector<48x1xf32>
    %143 = arith.addf %139, %142 : vector<48x1xf32>
    %144 = math.rsqrt %143 : vector<48x1xf32>
    %145 = vector.broadcast %144 : vector<48x1xf32> to vector<48x64xf32>
    %146 = arith.mulf %141, %145 : vector<48x64xf32>
    %147 = vector.broadcast %126 : vector<1x64xf32> to vector<48x64xf32>
    %148 = arith.mulf %146, %147 : vector<48x64xf32>
    %149 = vector.broadcast %128 : vector<1x64xf32> to vector<48x64xf32>
    %150 = arith.addf %148, %149 : vector<48x64xf32>
    %151 = arith.truncf %150 : vector<48x64xf32> to vector<48x64xbf16>
    %c0_101 = arith.constant 0 : index
    %c0_102 = arith.constant 0 : index
    %c0_103 = arith.constant 0 : index
    %152 = vector.load %arg14[%c0_101, %c0_102, %c0_103] : memref<2x64x256xbf16, #tpu.memory_space<vmem>>, vector<1x64x256xbf16>
    %153 = vector.shape_cast %152 : vector<1x64x256xbf16> to vector<64x256xbf16>
    %cst_104 = arith.constant dense<0.000000e+00> : vector<48x256xf32>
    %154 = tpu.matmul %151, %153, %cst_104 {dimension_numbers = #tpu.dot_dimension_numbers<[1], [0], [0], [1], [0, 0, 1, 1], [], []>} : vector<48x64xbf16>, vector<64x256xbf16>, vector<48x256xf32> -> vector<48x256xf32>
    %c0_105 = arith.constant 0 : index
    %c0_106 = arith.constant 0 : index
    %c0_107 = arith.constant 0 : index
    %155 = vector.load %arg15[%c0_105, %c0_106, %c0_107] : memref<2x1x256xf32, #tpu.memory_space<vmem>>, vector<1x1x256xf32>
    %156 = vector.shape_cast %155 : vector<1x1x256xf32> to vector<1x256xf32>
    %157 = vector.broadcast %156 : vector<1x256xf32> to vector<48x256xf32>
    %158 = arith.addf %154, %157 : vector<48x256xf32>
    %cst_108 = arith.constant 5.000000e-01 : f32
    %159 = vector.broadcast %cst_108 : f32 to vector<48x256xf32>
    %160 = arith.mulf %159, %158 : vector<48x256xf32>
    %cst_109 = arith.constant 4.471500e-02 : f32
    %161 = vector.broadcast %cst_109 : f32 to vector<48x256xf32>
    %162 = arith.mulf %161, %158 : vector<48x256xf32>
    %163 = arith.mulf %162, %158 : vector<48x256xf32>
    %164 = arith.mulf %163, %158 : vector<48x256xf32>
    %165 = arith.addf %158, %164 : vector<48x256xf32>
    %cst_110 = arith.constant 0.797884583 : f32
    %166 = vector.broadcast %cst_110 : f32 to vector<48x256xf32>
    %167 = arith.mulf %166, %165 : vector<48x256xf32>
    %168 = math.tanh %167 : vector<48x256xf32>
    %cst_111 = arith.constant 1.000000e+00 : f32
    %169 = vector.broadcast %cst_111 : f32 to vector<48x256xf32>
    %170 = arith.addf %169, %168 : vector<48x256xf32>
    %171 = arith.mulf %160, %170 : vector<48x256xf32>
    %172 = arith.truncf %171 : vector<48x256xf32> to vector<48x256xbf16>
    %c0_112 = arith.constant 0 : index
    %c0_113 = arith.constant 0 : index
    %c0_114 = arith.constant 0 : index
    %173 = vector.load %arg16[%c0_112, %c0_113, %c0_114] : memref<2x256x64xbf16, #tpu.memory_space<vmem>>, vector<1x256x64xbf16>
    %174 = vector.shape_cast %173 : vector<1x256x64xbf16> to vector<256x64xbf16>
    %cst_115 = arith.constant dense<0.000000e+00> : vector<48x64xf32>
    %175 = tpu.matmul %172, %174, %cst_115 {dimension_numbers = #tpu.dot_dimension_numbers<[1], [0], [0], [1], [0, 0, 1, 1], [], []>} : vector<48x256xbf16>, vector<256x64xbf16>, vector<48x64xf32> -> vector<48x64xf32>
    %176 = arith.addf %124, %175 : vector<48x64xf32>
    %c0_116 = arith.constant 0 : index
    %c0_117 = arith.constant 0 : index
    %c0_118 = arith.constant 0 : index
    %177 = vector.load %arg17[%c0_116, %c0_117, %c0_118] : memref<2x1x64xf32, #tpu.memory_space<vmem>>, vector<1x1x64xf32>
    %178 = vector.shape_cast %177 : vector<1x1x64xf32> to vector<1x64xf32>
    %179 = vector.broadcast %178 : vector<1x64xf32> to vector<48x64xf32>
    %180 = arith.addf %176, %179 : vector<48x64xf32>
    %c1_119 = arith.constant 1 : index
    %c0_120 = arith.constant 0 : index
    %c0_121 = arith.constant 0 : index
    %181 = vector.load %arg2[%c1_119, %c0_120, %c0_121] : memref<2x1x64xf32, #tpu.memory_space<vmem>>, vector<1x1x64xf32>
    %182 = vector.shape_cast %181 : vector<1x1x64xf32> to vector<1x64xf32>
    %c1_122 = arith.constant 1 : index
    %c0_123 = arith.constant 0 : index
    %c0_124 = arith.constant 0 : index
    %183 = vector.load %arg3[%c1_122, %c0_123, %c0_124] : memref<2x1x64xf32, #tpu.memory_space<vmem>>, vector<1x1x64xf32>
    %184 = vector.shape_cast %183 : vector<1x1x64xf32> to vector<1x64xf32>
    %cst_125 = arith.constant dense<0.000000e+00> : vector<48xf32>
    %185 = vector.multi_reduction <add>, %180, %cst_125 [1] : vector<48x64xf32> to vector<48xf32>
    %186 = vector.shape_cast %185 : vector<48xf32> to vector<48x1xf32>
    %cst_126 = arith.constant 6.400000e+01 : f32
    %187 = vector.broadcast %cst_126 : f32 to vector<48x1xf32>
    %188 = arith.divf %186, %187 : vector<48x1xf32>
    %189 = arith.mulf %180, %180 : vector<48x64xf32>
    %cst_127 = arith.constant dense<0.000000e+00> : vector<48xf32>
    %190 = vector.multi_reduction <add>, %189, %cst_127 [1] : vector<48x64xf32> to vector<48xf32>
    %191 = vector.shape_cast %190 : vector<48xf32> to vector<48x1xf32>
    %cst_128 = arith.constant 6.400000e+01 : f32
    %192 = vector.broadcast %cst_128 : f32 to vector<48x1xf32>
    %193 = arith.divf %191, %192 : vector<48x1xf32>
    %194 = arith.mulf %188, %188 : vector<48x1xf32>
    %195 = arith.subf %193, %194 : vector<48x1xf32>
    %196 = vector.broadcast %188 : vector<48x1xf32> to vector<48x64xf32>
    %197 = arith.subf %180, %196 : vector<48x64xf32>
    %cst_129 = arith.constant 9.99999974E-6 : f32
    %198 = vector.broadcast %cst_129 : f32 to vector<48x1xf32>
    %199 = arith.addf %195, %198 : vector<48x1xf32>
    %200 = math.rsqrt %199 : vector<48x1xf32>
    %201 = vector.broadcast %200 : vector<48x1xf32> to vector<48x64xf32>
    %202 = arith.mulf %197, %201 : vector<48x64xf32>
    %203 = vector.broadcast %182 : vector<1x64xf32> to vector<48x64xf32>
    %204 = arith.mulf %202, %203 : vector<48x64xf32>
    %205 = vector.broadcast %184 : vector<1x64xf32> to vector<48x64xf32>
    %206 = arith.addf %204, %205 : vector<48x64xf32>
    %207 = arith.truncf %206 : vector<48x64xf32> to vector<48x64xbf16>
    %cst_130 = arith.constant 0.000000e+00 : f32
    %208 = vector.broadcast %cst_130 : f32 to vector<48x64xf32>
    %c1_131 = arith.constant 1 : index
    %c0_132 = arith.constant 0 : index
    %c0_133 = arith.constant 0 : index
    %c0_134 = arith.constant 0 : index
    %209 = vector.load %arg4[%c1_131, %c0_132, %c0_133, %c0_134] : memref<2x2x64x32xbf16, #tpu.memory_space<vmem>>, vector<1x1x64x32xbf16>
    %210 = vector.shape_cast %209 : vector<1x1x64x32xbf16> to vector<64x32xbf16>
    %cst_135 = arith.constant dense<0.000000e+00> : vector<48x32xf32>
    %211 = tpu.matmul %207, %210, %cst_135 {dimension_numbers = #tpu.dot_dimension_numbers<[1], [0], [0], [1], [0, 0, 1, 1], [], []>} : vector<48x64xbf16>, vector<64x32xbf16>, vector<48x32xf32> -> vector<48x32xf32>
    %c1_136 = arith.constant 1 : index
    %c0_137 = arith.constant 0 : index
    %c0_138 = arith.constant 0 : index
    %c0_139 = arith.constant 0 : index
    %212 = vector.load %arg7[%c1_136, %c0_137, %c0_138, %c0_139] : memref<2x2x1x32xf32, #tpu.memory_space<vmem>>, vector<1x1x1x32xf32>
    %213 = vector.shape_cast %212 : vector<1x1x1x32xf32> to vector<1x32xf32>
    %214 = vector.broadcast %213 : vector<1x32xf32> to vector<48x32xf32>
    %215 = arith.addf %211, %214 : vector<48x32xf32>
    %c1_140 = arith.constant 1 : index
    %c0_141 = arith.constant 0 : index
    %c0_142 = arith.constant 0 : index
    %c0_143 = arith.constant 0 : index
    %216 = vector.load %arg5[%c1_140, %c0_141, %c0_142, %c0_143] : memref<2x2x64x32xbf16, #tpu.memory_space<vmem>>, vector<1x1x64x32xbf16>
    %217 = vector.shape_cast %216 : vector<1x1x64x32xbf16> to vector<64x32xbf16>
    %cst_144 = arith.constant dense<0.000000e+00> : vector<48x32xf32>
    %218 = tpu.matmul %207, %217, %cst_144 {dimension_numbers = #tpu.dot_dimension_numbers<[1], [0], [0], [1], [0, 0, 1, 1], [], []>} : vector<48x64xbf16>, vector<64x32xbf16>, vector<48x32xf32> -> vector<48x32xf32>
    %c1_145 = arith.constant 1 : index
    %c0_146 = arith.constant 0 : index
    %c0_147 = arith.constant 0 : index
    %c0_148 = arith.constant 0 : index
    %219 = vector.load %arg8[%c1_145, %c0_146, %c0_147, %c0_148] : memref<2x2x1x32xf32, #tpu.memory_space<vmem>>, vector<1x1x1x32xf32>
    %220 = vector.shape_cast %219 : vector<1x1x1x32xf32> to vector<1x32xf32>
    %221 = vector.broadcast %220 : vector<1x32xf32> to vector<48x32xf32>
    %222 = arith.addf %218, %221 : vector<48x32xf32>
    %c1_149 = arith.constant 1 : index
    %c0_150 = arith.constant 0 : index
    %c0_151 = arith.constant 0 : index
    %c0_152 = arith.constant 0 : index
    %223 = vector.load %arg6[%c1_149, %c0_150, %c0_151, %c0_152] : memref<2x2x64x32xbf16, #tpu.memory_space<vmem>>, vector<1x1x64x32xbf16>
    %224 = vector.shape_cast %223 : vector<1x1x64x32xbf16> to vector<64x32xbf16>
    %cst_153 = arith.constant dense<0.000000e+00> : vector<48x32xf32>
    %225 = tpu.matmul %207, %224, %cst_153 {dimension_numbers = #tpu.dot_dimension_numbers<[1], [0], [0], [1], [0, 0, 1, 1], [], []>} : vector<48x64xbf16>, vector<64x32xbf16>, vector<48x32xf32> -> vector<48x32xf32>
    %c1_154 = arith.constant 1 : index
    %c0_155 = arith.constant 0 : index
    %c0_156 = arith.constant 0 : index
    %c0_157 = arith.constant 0 : index
    %226 = vector.load %arg9[%c1_154, %c0_155, %c0_156, %c0_157] : memref<2x2x1x32xf32, #tpu.memory_space<vmem>>, vector<1x1x1x32xf32>
    %227 = vector.shape_cast %226 : vector<1x1x1x32xf32> to vector<1x32xf32>
    %228 = vector.broadcast %227 : vector<1x32xf32> to vector<48x32xf32>
    %229 = arith.addf %225, %228 : vector<48x32xf32>
    %230 = arith.truncf %215 : vector<48x32xf32> to vector<48x32xbf16>
    %231 = arith.truncf %222 : vector<48x32xf32> to vector<48x32xbf16>
    %cst_158 = arith.constant dense<0.000000e+00> : vector<48x48xf32>
    %232 = tpu.matmul %230, %231, %cst_158 {dimension_numbers = #tpu.dot_dimension_numbers<[1], [1], [0], [0], [0, 0, 1, 0], [], []>} : vector<48x32xbf16>, vector<48x32xbf16>, vector<48x48xf32> -> vector<48x48xf32>
    %cst_159 = arith.constant 0.176776692 : f32
    %233 = vector.broadcast %cst_159 : f32 to vector<48x48xf32>
    %234 = arith.mulf %232, %233 : vector<48x48xf32>
    %235 = arith.addf %234, %1 : vector<48x48xf32>
    %cst_160 = arith.constant dense<0xFF800000> : vector<48xf32>
    %236 = vector.multi_reduction <maximumf>, %235, %cst_160 [1] : vector<48x48xf32> to vector<48xf32>
    %237 = vector.shape_cast %236 : vector<48xf32> to vector<48x1xf32>
    %238 = vector.broadcast %237 : vector<48x1xf32> to vector<48x48xf32>
    %239 = arith.subf %235, %238 : vector<48x48xf32>
    %240 = math.exp %239 : vector<48x48xf32>
    %cst_161 = arith.constant dense<0.000000e+00> : vector<48xf32>
    %241 = vector.multi_reduction <add>, %240, %cst_161 [1] : vector<48x48xf32> to vector<48xf32>
    %242 = vector.shape_cast %241 : vector<48xf32> to vector<48x1xf32>
    %243 = tpu.reciprocal %242 {approx = true} : vector<48x1xf32> -> vector<48x1xf32>
    %244 = vector.broadcast %243 : vector<48x1xf32> to vector<48x48xf32>
    %245 = arith.mulf %240, %244 : vector<48x48xf32>
    %246 = arith.truncf %245 : vector<48x48xf32> to vector<48x48xbf16>
    %247 = arith.truncf %229 : vector<48x32xf32> to vector<48x32xbf16>
    %cst_162 = arith.constant dense<0.000000e+00> : vector<48x32xf32>
    %248 = tpu.matmul %246, %247, %cst_162 {dimension_numbers = #tpu.dot_dimension_numbers<[1], [0], [0], [1], [0, 0, 1, 1], [], []>} : vector<48x48xbf16>, vector<48x32xbf16>, vector<48x32xf32> -> vector<48x32xf32>
    %249 = arith.truncf %248 : vector<48x32xf32> to vector<48x32xbf16>
    %c1_163 = arith.constant 1 : index
    %c0_164 = arith.constant 0 : index
    %c0_165 = arith.constant 0 : index
    %c0_166 = arith.constant 0 : index
    %250 = vector.load %arg10[%c1_163, %c0_164, %c0_165, %c0_166] : memref<2x2x32x64xbf16, #tpu.memory_space<vmem>>, vector<1x1x32x64xbf16>
    %251 = vector.shape_cast %250 : vector<1x1x32x64xbf16> to vector<32x64xbf16>
    %cst_167 = arith.constant dense<0.000000e+00> : vector<48x64xf32>
    %252 = tpu.matmul %249, %251, %cst_167 {dimension_numbers = #tpu.dot_dimension_numbers<[1], [0], [0], [1], [0, 0, 1, 1], [], []>} : vector<48x32xbf16>, vector<32x64xbf16>, vector<48x64xf32> -> vector<48x64xf32>
    %253 = arith.addf %208, %252 : vector<48x64xf32>
    %c1_168 = arith.constant 1 : index
    %c1_169 = arith.constant 1 : index
    %c0_170 = arith.constant 0 : index
    %c0_171 = arith.constant 0 : index
    %254 = vector.load %arg4[%c1_168, %c1_169, %c0_170, %c0_171] : memref<2x2x64x32xbf16, #tpu.memory_space<vmem>>, vector<1x1x64x32xbf16>
    %255 = vector.shape_cast %254 : vector<1x1x64x32xbf16> to vector<64x32xbf16>
    %cst_172 = arith.constant dense<0.000000e+00> : vector<48x32xf32>
    %256 = tpu.matmul %207, %255, %cst_172 {dimension_numbers = #tpu.dot_dimension_numbers<[1], [0], [0], [1], [0, 0, 1, 1], [], []>} : vector<48x64xbf16>, vector<64x32xbf16>, vector<48x32xf32> -> vector<48x32xf32>
    %c1_173 = arith.constant 1 : index
    %c1_174 = arith.constant 1 : index
    %c0_175 = arith.constant 0 : index
    %c0_176 = arith.constant 0 : index
    %257 = vector.load %arg7[%c1_173, %c1_174, %c0_175, %c0_176] : memref<2x2x1x32xf32, #tpu.memory_space<vmem>>, vector<1x1x1x32xf32>
    %258 = vector.shape_cast %257 : vector<1x1x1x32xf32> to vector<1x32xf32>
    %259 = vector.broadcast %258 : vector<1x32xf32> to vector<48x32xf32>
    %260 = arith.addf %256, %259 : vector<48x32xf32>
    %c1_177 = arith.constant 1 : index
    %c1_178 = arith.constant 1 : index
    %c0_179 = arith.constant 0 : index
    %c0_180 = arith.constant 0 : index
    %261 = vector.load %arg5[%c1_177, %c1_178, %c0_179, %c0_180] : memref<2x2x64x32xbf16, #tpu.memory_space<vmem>>, vector<1x1x64x32xbf16>
    %262 = vector.shape_cast %261 : vector<1x1x64x32xbf16> to vector<64x32xbf16>
    %cst_181 = arith.constant dense<0.000000e+00> : vector<48x32xf32>
    %263 = tpu.matmul %207, %262, %cst_181 {dimension_numbers = #tpu.dot_dimension_numbers<[1], [0], [0], [1], [0, 0, 1, 1], [], []>} : vector<48x64xbf16>, vector<64x32xbf16>, vector<48x32xf32> -> vector<48x32xf32>
    %c1_182 = arith.constant 1 : index
    %c1_183 = arith.constant 1 : index
    %c0_184 = arith.constant 0 : index
    %c0_185 = arith.constant 0 : index
    %264 = vector.load %arg8[%c1_182, %c1_183, %c0_184, %c0_185] : memref<2x2x1x32xf32, #tpu.memory_space<vmem>>, vector<1x1x1x32xf32>
    %265 = vector.shape_cast %264 : vector<1x1x1x32xf32> to vector<1x32xf32>
    %266 = vector.broadcast %265 : vector<1x32xf32> to vector<48x32xf32>
    %267 = arith.addf %263, %266 : vector<48x32xf32>
    %c1_186 = arith.constant 1 : index
    %c1_187 = arith.constant 1 : index
    %c0_188 = arith.constant 0 : index
    %c0_189 = arith.constant 0 : index
    %268 = vector.load %arg6[%c1_186, %c1_187, %c0_188, %c0_189] : memref<2x2x64x32xbf16, #tpu.memory_space<vmem>>, vector<1x1x64x32xbf16>
    %269 = vector.shape_cast %268 : vector<1x1x64x32xbf16> to vector<64x32xbf16>
    %cst_190 = arith.constant dense<0.000000e+00> : vector<48x32xf32>
    %270 = tpu.matmul %207, %269, %cst_190 {dimension_numbers = #tpu.dot_dimension_numbers<[1], [0], [0], [1], [0, 0, 1, 1], [], []>} : vector<48x64xbf16>, vector<64x32xbf16>, vector<48x32xf32> -> vector<48x32xf32>
    %c1_191 = arith.constant 1 : index
    %c1_192 = arith.constant 1 : index
    %c0_193 = arith.constant 0 : index
    %c0_194 = arith.constant 0 : index
    %271 = vector.load %arg9[%c1_191, %c1_192, %c0_193, %c0_194] : memref<2x2x1x32xf32, #tpu.memory_space<vmem>>, vector<1x1x1x32xf32>
    %272 = vector.shape_cast %271 : vector<1x1x1x32xf32> to vector<1x32xf32>
    %273 = vector.broadcast %272 : vector<1x32xf32> to vector<48x32xf32>
    %274 = arith.addf %270, %273 : vector<48x32xf32>
    %275 = arith.truncf %260 : vector<48x32xf32> to vector<48x32xbf16>
    %276 = arith.truncf %267 : vector<48x32xf32> to vector<48x32xbf16>
    %cst_195 = arith.constant dense<0.000000e+00> : vector<48x48xf32>
    %277 = tpu.matmul %275, %276, %cst_195 {dimension_numbers = #tpu.dot_dimension_numbers<[1], [1], [0], [0], [0, 0, 1, 0], [], []>} : vector<48x32xbf16>, vector<48x32xbf16>, vector<48x48xf32> -> vector<48x48xf32>
    %cst_196 = arith.constant 0.176776692 : f32
    %278 = vector.broadcast %cst_196 : f32 to vector<48x48xf32>
    %279 = arith.mulf %277, %278 : vector<48x48xf32>
    %280 = arith.addf %279, %1 : vector<48x48xf32>
    %cst_197 = arith.constant dense<0xFF800000> : vector<48xf32>
    %281 = vector.multi_reduction <maximumf>, %280, %cst_197 [1] : vector<48x48xf32> to vector<48xf32>
    %282 = vector.shape_cast %281 : vector<48xf32> to vector<48x1xf32>
    %283 = vector.broadcast %282 : vector<48x1xf32> to vector<48x48xf32>
    %284 = arith.subf %280, %283 : vector<48x48xf32>
    %285 = math.exp %284 : vector<48x48xf32>
    %cst_198 = arith.constant dense<0.000000e+00> : vector<48xf32>
    %286 = vector.multi_reduction <add>, %285, %cst_198 [1] : vector<48x48xf32> to vector<48xf32>
    %287 = vector.shape_cast %286 : vector<48xf32> to vector<48x1xf32>
    %288 = tpu.reciprocal %287 {approx = true} : vector<48x1xf32> -> vector<48x1xf32>
    %289 = vector.broadcast %288 : vector<48x1xf32> to vector<48x48xf32>
    %290 = arith.mulf %285, %289 : vector<48x48xf32>
    %291 = arith.truncf %290 : vector<48x48xf32> to vector<48x48xbf16>
    %292 = arith.truncf %274 : vector<48x32xf32> to vector<48x32xbf16>
    %cst_199 = arith.constant dense<0.000000e+00> : vector<48x32xf32>
    %293 = tpu.matmul %291, %292, %cst_199 {dimension_numbers = #tpu.dot_dimension_numbers<[1], [0], [0], [1], [0, 0, 1, 1], [], []>} : vector<48x48xbf16>, vector<48x32xbf16>, vector<48x32xf32> -> vector<48x32xf32>
    %294 = arith.truncf %293 : vector<48x32xf32> to vector<48x32xbf16>
    %c1_200 = arith.constant 1 : index
    %c1_201 = arith.constant 1 : index
    %c0_202 = arith.constant 0 : index
    %c0_203 = arith.constant 0 : index
    %295 = vector.load %arg10[%c1_200, %c1_201, %c0_202, %c0_203] : memref<2x2x32x64xbf16, #tpu.memory_space<vmem>>, vector<1x1x32x64xbf16>
    %296 = vector.shape_cast %295 : vector<1x1x32x64xbf16> to vector<32x64xbf16>
    %cst_204 = arith.constant dense<0.000000e+00> : vector<48x64xf32>
    %297 = tpu.matmul %294, %296, %cst_204 {dimension_numbers = #tpu.dot_dimension_numbers<[1], [0], [0], [1], [0, 0, 1, 1], [], []>} : vector<48x32xbf16>, vector<32x64xbf16>, vector<48x64xf32> -> vector<48x64xf32>
    %298 = arith.addf %253, %297 : vector<48x64xf32>
    %299 = arith.addf %180, %298 : vector<48x64xf32>
    %c1_205 = arith.constant 1 : index
    %c0_206 = arith.constant 0 : index
    %c0_207 = arith.constant 0 : index
    %300 = vector.load %arg11[%c1_205, %c0_206, %c0_207] : memref<2x1x64xf32, #tpu.memory_space<vmem>>, vector<1x1x64xf32>
    %301 = vector.shape_cast %300 : vector<1x1x64xf32> to vector<1x64xf32>
    %302 = vector.broadcast %301 : vector<1x64xf32> to vector<48x64xf32>
    %303 = arith.addf %299, %302 : vector<48x64xf32>
    %c1_208 = arith.constant 1 : index
    %c0_209 = arith.constant 0 : index
    %c0_210 = arith.constant 0 : index
    %304 = vector.load %arg12[%c1_208, %c0_209, %c0_210] : memref<2x1x64xf32, #tpu.memory_space<vmem>>, vector<1x1x64xf32>
    %305 = vector.shape_cast %304 : vector<1x1x64xf32> to vector<1x64xf32>
    %c1_211 = arith.constant 1 : index
    %c0_212 = arith.constant 0 : index
    %c0_213 = arith.constant 0 : index
    %306 = vector.load %arg13[%c1_211, %c0_212, %c0_213] : memref<2x1x64xf32, #tpu.memory_space<vmem>>, vector<1x1x64xf32>
    %307 = vector.shape_cast %306 : vector<1x1x64xf32> to vector<1x64xf32>
    %cst_214 = arith.constant dense<0.000000e+00> : vector<48xf32>
    %308 = vector.multi_reduction <add>, %303, %cst_214 [1] : vector<48x64xf32> to vector<48xf32>
    %309 = vector.shape_cast %308 : vector<48xf32> to vector<48x1xf32>
    %cst_215 = arith.constant 6.400000e+01 : f32
    %310 = vector.broadcast %cst_215 : f32 to vector<48x1xf32>
    %311 = arith.divf %309, %310 : vector<48x1xf32>
    %312 = arith.mulf %303, %303 : vector<48x64xf32>
    %cst_216 = arith.constant dense<0.000000e+00> : vector<48xf32>
    %313 = vector.multi_reduction <add>, %312, %cst_216 [1] : vector<48x64xf32> to vector<48xf32>
    %314 = vector.shape_cast %313 : vector<48xf32> to vector<48x1xf32>
    %cst_217 = arith.constant 6.400000e+01 : f32
    %315 = vector.broadcast %cst_217 : f32 to vector<48x1xf32>
    %316 = arith.divf %314, %315 : vector<48x1xf32>
    %317 = arith.mulf %311, %311 : vector<48x1xf32>
    %318 = arith.subf %316, %317 : vector<48x1xf32>
    %319 = vector.broadcast %311 : vector<48x1xf32> to vector<48x64xf32>
    %320 = arith.subf %303, %319 : vector<48x64xf32>
    %cst_218 = arith.constant 9.99999974E-6 : f32
    %321 = vector.broadcast %cst_218 : f32 to vector<48x1xf32>
    %322 = arith.addf %318, %321 : vector<48x1xf32>
    %323 = math.rsqrt %322 : vector<48x1xf32>
    %324 = vector.broadcast %323 : vector<48x1xf32> to vector<48x64xf32>
    %325 = arith.mulf %320, %324 : vector<48x64xf32>
    %326 = vector.broadcast %305 : vector<1x64xf32> to vector<48x64xf32>
    %327 = arith.mulf %325, %326 : vector<48x64xf32>
    %328 = vector.broadcast %307 : vector<1x64xf32> to vector<48x64xf32>
    %329 = arith.addf %327, %328 : vector<48x64xf32>
    %330 = arith.truncf %329 : vector<48x64xf32> to vector<48x64xbf16>
    %c1_219 = arith.constant 1 : index
    %c0_220 = arith.constant 0 : index
    %c0_221 = arith.constant 0 : index
    %331 = vector.load %arg14[%c1_219, %c0_220, %c0_221] : memref<2x64x256xbf16, #tpu.memory_space<vmem>>, vector<1x64x256xbf16>
    %332 = vector.shape_cast %331 : vector<1x64x256xbf16> to vector<64x256xbf16>
    %cst_222 = arith.constant dense<0.000000e+00> : vector<48x256xf32>
    %333 = tpu.matmul %330, %332, %cst_222 {dimension_numbers = #tpu.dot_dimension_numbers<[1], [0], [0], [1], [0, 0, 1, 1], [], []>} : vector<48x64xbf16>, vector<64x256xbf16>, vector<48x256xf32> -> vector<48x256xf32>
    %c1_223 = arith.constant 1 : index
    %c0_224 = arith.constant 0 : index
    %c0_225 = arith.constant 0 : index
    %334 = vector.load %arg15[%c1_223, %c0_224, %c0_225] : memref<2x1x256xf32, #tpu.memory_space<vmem>>, vector<1x1x256xf32>
    %335 = vector.shape_cast %334 : vector<1x1x256xf32> to vector<1x256xf32>
    %336 = vector.broadcast %335 : vector<1x256xf32> to vector<48x256xf32>
    %337 = arith.addf %333, %336 : vector<48x256xf32>
    %cst_226 = arith.constant 5.000000e-01 : f32
    %338 = vector.broadcast %cst_226 : f32 to vector<48x256xf32>
    %339 = arith.mulf %338, %337 : vector<48x256xf32>
    %cst_227 = arith.constant 4.471500e-02 : f32
    %340 = vector.broadcast %cst_227 : f32 to vector<48x256xf32>
    %341 = arith.mulf %340, %337 : vector<48x256xf32>
    %342 = arith.mulf %341, %337 : vector<48x256xf32>
    %343 = arith.mulf %342, %337 : vector<48x256xf32>
    %344 = arith.addf %337, %343 : vector<48x256xf32>
    %cst_228 = arith.constant 0.797884583 : f32
    %345 = vector.broadcast %cst_228 : f32 to vector<48x256xf32>
    %346 = arith.mulf %345, %344 : vector<48x256xf32>
    %347 = math.tanh %346 : vector<48x256xf32>
    %cst_229 = arith.constant 1.000000e+00 : f32
    %348 = vector.broadcast %cst_229 : f32 to vector<48x256xf32>
    %349 = arith.addf %348, %347 : vector<48x256xf32>
    %350 = arith.mulf %339, %349 : vector<48x256xf32>
    %351 = arith.truncf %350 : vector<48x256xf32> to vector<48x256xbf16>
    %c1_230 = arith.constant 1 : index
    %c0_231 = arith.constant 0 : index
    %c0_232 = arith.constant 0 : index
    %352 = vector.load %arg16[%c1_230, %c0_231, %c0_232] : memref<2x256x64xbf16, #tpu.memory_space<vmem>>, vector<1x256x64xbf16>
    %353 = vector.shape_cast %352 : vector<1x256x64xbf16> to vector<256x64xbf16>
    %cst_233 = arith.constant dense<0.000000e+00> : vector<48x64xf32>
    %354 = tpu.matmul %351, %353, %cst_233 {dimension_numbers = #tpu.dot_dimension_numbers<[1], [0], [0], [1], [0, 0, 1, 1], [], []>} : vector<48x256xbf16>, vector<256x64xbf16>, vector<48x64xf32> -> vector<48x64xf32>
    %355 = arith.addf %303, %354 : vector<48x64xf32>
    %c1_234 = arith.constant 1 : index
    %c0_235 = arith.constant 0 : index
    %c0_236 = arith.constant 0 : index
    %356 = vector.load %arg17[%c1_234, %c0_235, %c0_236] : memref<2x1x64xf32, #tpu.memory_space<vmem>>, vector<1x1x64xf32>
    %357 = vector.shape_cast %356 : vector<1x1x64xf32> to vector<1x64xf32>
    %358 = vector.broadcast %357 : vector<1x64xf32> to vector<48x64xf32>
    %359 = arith.addf %355, %358 : vector<48x64xf32>
    %c0_237 = arith.constant 0 : index
    %c0_238 = arith.constant 0 : index
    %360 = vector.load %arg18[%c0_237, %c0_238] : memref<1x64xf32, #tpu.memory_space<vmem>>, vector<1x64xf32>
    %c0_239 = arith.constant 0 : index
    %c0_240 = arith.constant 0 : index
    %361 = vector.load %arg19[%c0_239, %c0_240] : memref<1x64xf32, #tpu.memory_space<vmem>>, vector<1x64xf32>
    %cst_241 = arith.constant dense<0.000000e+00> : vector<48xf32>
    %362 = vector.multi_reduction <add>, %359, %cst_241 [1] : vector<48x64xf32> to vector<48xf32>
    %363 = vector.shape_cast %362 : vector<48xf32> to vector<48x1xf32>
    %cst_242 = arith.constant 6.400000e+01 : f32
    %364 = vector.broadcast %cst_242 : f32 to vector<48x1xf32>
    %365 = arith.divf %363, %364 : vector<48x1xf32>
    %366 = arith.mulf %359, %359 : vector<48x64xf32>
    %cst_243 = arith.constant dense<0.000000e+00> : vector<48xf32>
    %367 = vector.multi_reduction <add>, %366, %cst_243 [1] : vector<48x64xf32> to vector<48xf32>
    %368 = vector.shape_cast %367 : vector<48xf32> to vector<48x1xf32>
    %cst_244 = arith.constant 6.400000e+01 : f32
    %369 = vector.broadcast %cst_244 : f32 to vector<48x1xf32>
    %370 = arith.divf %368, %369 : vector<48x1xf32>
    %371 = arith.mulf %365, %365 : vector<48x1xf32>
    %372 = arith.subf %370, %371 : vector<48x1xf32>
    %373 = vector.broadcast %365 : vector<48x1xf32> to vector<48x64xf32>
    %374 = arith.subf %359, %373 : vector<48x64xf32>
    %cst_245 = arith.constant 9.99999974E-6 : f32
    %375 = vector.broadcast %cst_245 : f32 to vector<48x1xf32>
    %376 = arith.addf %372, %375 : vector<48x1xf32>
    %377 = math.rsqrt %376 : vector<48x1xf32>
    %378 = vector.broadcast %377 : vector<48x1xf32> to vector<48x64xf32>
    %379 = arith.mulf %374, %378 : vector<48x64xf32>
    %380 = vector.broadcast %360 : vector<1x64xf32> to vector<48x64xf32>
    %381 = arith.mulf %379, %380 : vector<48x64xf32>
    %382 = vector.broadcast %361 : vector<1x64xf32> to vector<48x64xf32>
    %383 = arith.addf %381, %382 : vector<48x64xf32>
    %384 = arith.truncf %383 : vector<48x64xf32> to vector<48x64xbf16>
    %c0_246 = arith.constant 0 : index
    %c0_247 = arith.constant 0 : index
    %385 = vector.load %arg20[%c0_246, %c0_247] : memref<128x64xbf16, #tpu.memory_space<vmem>>, vector<128x64xbf16>
    %cst_248 = arith.constant dense<0.000000e+00> : vector<48x128xf32>
    %386 = tpu.matmul %384, %385, %cst_248 {dimension_numbers = #tpu.dot_dimension_numbers<[1], [1], [0], [0], [0, 0, 1, 0], [], []>} : vector<48x64xbf16>, vector<128x64xbf16>, vector<48x128xf32> -> vector<48x128xf32>
    %c0_249 = arith.constant 0 : index
    %c0_250 = arith.constant 0 : index
    %387 = vector.load %arg23[%c0_249, %c0_250] : memref<48x128xf32, #tpu.memory_space<vmem>>, vector<48x128xf32>
    tpu.vector_store %arg23[%c0_249, %c0_250], %386 {strides = array<i32>} : memref<48x128xf32, #tpu.memory_space<vmem>>, vector<48x128xf32>,
    %c0_251 = arith.constant 0 : index
    %c0_252 = arith.constant 0 : index
    %388 = vector.load %arg21[%c0_251, %c0_252] : memref<64x128xbf16, #tpu.memory_space<vmem>>, vector<64x128xbf16>
    %cst_253 = arith.constant dense<0.000000e+00> : vector<48x128xf32>
    %389 = tpu.matmul %384, %388, %cst_253 {dimension_numbers = #tpu.dot_dimension_numbers<[1], [0], [0], [1], [0, 0, 1, 1], [], []>} : vector<48x64xbf16>, vector<64x128xbf16>, vector<48x128xf32> -> vector<48x128xf32>
    %c0_254 = arith.constant 0 : index
    %c0_255 = arith.constant 0 : index
    %390 = vector.load %arg22[%c0_254, %c0_255] : memref<1x128xf32, #tpu.memory_space<vmem>>, vector<1x128xf32>
    %391 = vector.broadcast %390 : vector<1x128xf32> to vector<48x128xf32>
    %392 = arith.addf %389, %391 : vector<48x128xf32>
    %c0_256 = arith.constant 0 : index
    %c0_257 = arith.constant 0 : index
    %393 = vector.load %arg24[%c0_256, %c0_257] : memref<48x128xf32, #tpu.memory_space<vmem>>, vector<48x128xf32>
    tpu.vector_store %arg24[%c0_256, %c0_257], %392 {strides = array<i32>} : memref<48x128xf32, #tpu.memory_space<vmem>>, vector<48x128xf32>,
    return
  }
}

</mosaic_0001>

<llo_original>
// kernel: _device_forward.1
$region0: #{_device_forward.1}
  #allocation0 [shape = 'u32[]', space=smem, size = 0x4, offset = 0x4, fixed_abs, tag = 'smem constant byte address 0x4 - core index']
  #allocation1 [shape = 'u32[144,128]{1,0:T(1,128)}', space=vmem, size = 0x12000, scoped, tag = 'internal scratch']
  %s0 = inlined_call_operand.vmem [shape: f32[48,64], index: 0, kind: input, shape index: {}]
  %s1 = inlined_call_operand.vmem [shape: f32[48,48], index: 1, kind: input, shape index: {}]
  %s2 = inlined_call_operand.vmem [shape: f32[2,1,64], index: 2, kind: input, shape index: {}]
  %s3 = inlined_call_operand.vmem [shape: f32[2,1,64], index: 3, kind: input, shape index: {}]
  %s4 = inlined_call_operand.vmem [shape: bf16[2,2,64,32], index: 4, kind: input, shape index: {}]
  %s5 = inlined_call_operand.vmem [shape: bf16[2,2,64,32], index: 5, kind: input, shape index: {}]
  %s6 = inlined_call_operand.vmem [shape: bf16[2,2,64,32], index: 6, kind: input, shape index: {}]
  %s7 = inlined_call_operand.vmem [shape: f32[2,2,1,32], index: 7, kind: input, shape index: {}]
  %s8 = inlined_call_operand.vmem [shape: f32[2,2,1,32], index: 8, kind: input, shape index: {}]
  %s9 = inlined_call_operand.vmem [shape: f32[2,2,1,32], index: 9, kind: input, shape index: {}]
  %s10 = inlined_call_operand.vmem [shape: bf16[2,2,32,64], index: 10, kind: input, shape index: {}]
  %s11 = inlined_call_operand.vmem [shape: f32[2,1,64], index: 11, kind: input, shape index: {}]
  %s12 = inlined_call_operand.vmem [shape: f32[2,1,64], index: 12, kind: input, shape index: {}]
  %s13 = inlined_call_operand.vmem [shape: f32[2,1,64], index: 13, kind: input, shape index: {}]
  %s14 = inlined_call_operand.vmem [shape: bf16[2,64,256], index: 14, kind: input, shape index: {}]
  %s15 = inlined_call_operand.vmem [shape: f32[2,1,256], index: 15, kind: input, shape index: {}]
  %s16 = inlined_call_operand.vmem [shape: bf16[2,256,64], index: 16, kind: input, shape index: {}]
  %s17 = inlined_call_operand.vmem [shape: f32[2,1,64], index: 17, kind: input, shape index: {}]
  %s18 = inlined_call_operand.vmem [shape: f32[1,64], index: 18, kind: input, shape index: {}]
  %s19 = inlined_call_operand.vmem [shape: f32[1,64], index: 19, kind: input, shape index: {}]
  %s20 = inlined_call_operand.vmem [shape: bf16[128,64], index: 20, kind: input, shape index: {}]
  %s21 = inlined_call_operand.vmem [shape: bf16[64,128], index: 21, kind: input, shape index: {}]
  %s22 = inlined_call_operand.vmem [shape: f32[1,128], index: 22, kind: input, shape index: {}]
  %s23 = inlined_call_operand.vmem [shape: f32[48,128], index: 23, kind: output, shape index: {0}]
  %s24 = inlined_call_operand.vmem [shape: f32[48,128], index: 24, kind: output, shape index: {1}]
  %25 = xla_tuple %s23, %s24
  %s26 = sld [smem:[#allocation0]]
  $region110: #{_device_forward.1} parent=0
    _
  %s28 = ssub.s32 1, %s26
  %s29 = scalar_select 0, %s28, %s26
  // Predicated region
  $region2: #{_device_forward.1} parent=0 // pred_check
    _
  $region3: #{_device_forward.1} parent=0 // pred_check_branch
    %31 = sbr.rel (0) target = $region5
  $region4: #{_device_forward.1} parent=0 // pred_region
    _
  $region5: #{_device_forward.1} parent=0 // pred_fallthru
    _
  // Predicated region
  $region6: #{_device_forward.1} parent=0 // pred_check
    _
  $region7: #{_device_forward.1} parent=0 // pred_check_branch
    %33 = sbr.rel (0) target = $region9
  $region8: #{_device_forward.1} parent=0 // pred_region
    _
  $region9: #{_device_forward.1} parent=0 // pred_fallthru
    _
  // Predicated region
  $region10: #{_device_forward.1} parent=0 // pred_check
    _
  $region11: #{_device_forward.1} parent=0 // pred_check_branch
    %35 = sbr.rel (0) target = $region13
  $region12: #{_device_forward.1} parent=0 // pred_region
    _
  $region13: #{_device_forward.1} parent=0 // pred_fallthru
    _
  // Predicated region
  $region14: #{_device_forward.1} parent=0 // pred_check
    _
  $region15: #{_device_forward.1} parent=0 // pred_check_branch
    %37 = sbr.rel (0) target = $region17
  $region16: #{_device_forward.1} parent=0 // pred_region
    _
  $region17: #{_device_forward.1} parent=0 // pred_fallthru
    _
  // Predicated region
  $region18: #{_device_forward.1} parent=0 // pred_check
    _
  $region19: #{_device_forward.1} parent=0 // pred_check_branch
    %39 = sbr.rel (0) target = $region21
  $region20: #{_device_forward.1} parent=0 // pred_region
    _
  $region21: #{_device_forward.1} parent=0 // pred_fallthru
    _
  // Predicated region
  $region22: #{_device_forward.1} parent=0 // pred_check
    _
  $region23: #{_device_forward.1} parent=0 // pred_check_branch
    %41 = sbr.rel (0) target = $region25
  $region24: #{_device_forward.1} parent=0 // pred_region
    _
  $region25: #{_device_forward.1} parent=0 // pred_fallthru
    _
  // Predicated region
  $region26: #{_device_forward.1} parent=0 // pred_check
    _
  $region27: #{_device_forward.1} parent=0 // pred_check_branch
    %43 = sbr.rel (0) target = $region29
  $region28: #{_device_forward.1} parent=0 // pred_region
    _
  $region29: #{_device_forward.1} parent=0 // pred_fallthru
    _
  // Predicated region
  $region30: #{_device_forward.1} parent=0 // pred_check
    _
  $region31: #{_device_forward.1} parent=0 // pred_check_branch
    %45 = sbr.rel (0) target = $region33
  $region32: #{_device_forward.1} parent=0 // pred_region
    _
  $region33: #{_device_forward.1} parent=0 // pred_fallthru
    _
  // Predicated region
  $region34: #{_device_forward.1} parent=0 // pred_check
    _
  $region35: #{_device_forward.1} parent=0 // pred_check_branch
    %47 = sbr.rel (0) target = $region37
  $region36: #{_device_forward.1} parent=0 // pred_region
    _
  $region37: #{_device_forward.1} parent=0 // pred_fallthru
    _
  // Predicated region
  $region38: #{_device_forward.1} parent=0 // pred_check
    _
  $region39: #{_device_forward.1} parent=0 // pred_check_branch
    %49 = sbr.rel (0) target = $region41
  $region40: #{_device_forward.1} parent=0 // pred_region
    _
  $region41: #{_device_forward.1} parent=0 // pred_fallthru
    _
  // Predicated region
  $region42: #{_device_forward.1} parent=0 // pred_check
    _
  $region43: #{_device_forward.1} parent=0 // pred_check_branch
    %51 = sbr.rel (0) target = $region45
  $region44: #{_device_forward.1} parent=0 // pred_region
    _
  $region45: #{_device_forward.1} parent=0 // pred_fallthru
    _
  // Predicated region
  $region46: #{_device_forward.1} parent=0 // pred_check
    _
  $region47: #{_device_forward.1} parent=0 // pred_check_branch
    %53 = sbr.rel (0) target = $region49
  $region48: #{_device_forward.1} parent=0 // pred_region
    _
  $region49: #{_device_forward.1} parent=0 // pred_fallthru
    _
  // Predicated region
  $region50: #{_device_forward.1} parent=0 // pred_check
    _
  $region51: #{_device_forward.1} parent=0 // pred_check_branch
    %55 = sbr.rel (0) target = $region53
  $region52: #{_device_forward.1} parent=0 // pred_region
    _
  $region53: #{_device_forward.1} parent=0 // pred_fallthru
    _
  // Predicated region
  $region54: #{_device_forward.1} parent=0 // pred_check
    _
  $region55: #{_device_forward.1} parent=0 // pred_check_branch
    %57 = sbr.rel (0) target = $region57
  $region56: #{_device_forward.1} parent=0 // pred_region
    _
  $region57: #{_device_forward.1} parent=0 // pred_fallthru
    _
  // Predicated region
  $region58: #{_device_forward.1} parent=0 // pred_check
    _
  $region59: #{_device_forward.1} parent=0 // pred_check_branch
    %59 = sbr.rel (0) target = $region61
  $region60: #{_device_forward.1} parent=0 // pred_region
    _
  $region61: #{_device_forward.1} parent=0 // pred_fallthru
    _
  // Predicated region
  $region62: #{_device_forward.1} parent=0 // pred_check
    _
  $region63: #{_device_forward.1} parent=0 // pred_check_branch
    %61 = sbr.rel (0) target = $region65
  $region64: #{_device_forward.1} parent=0 // pred_region
    _
  $region65: #{_device_forward.1} parent=0 // pred_fallthru
    _
  // Predicated region
  $region66: #{_device_forward.1} parent=0 // pred_check
    _
  $region67: #{_device_forward.1} parent=0 // pred_check_branch
    %63 = sbr.rel (0) target = $region69
  $region68: #{_device_forward.1} parent=0 // pred_region
    _
  $region69: #{_device_forward.1} parent=0 // pred_fallthru
    _
  // Predicated region
  $region70: #{_device_forward.1} parent=0 // pred_check
    _
  $region71: #{_device_forward.1} parent=0 // pred_check_branch
    %65 = sbr.rel (0) target = $region73
  $region72: #{_device_forward.1} parent=0 // pred_region
    _
  $region73: #{_device_forward.1} parent=0 // pred_fallthru
    _
  // Predicated region
  $region74: #{_device_forward.1} parent=0 // pred_check
    _
  $region75: #{_device_forward.1} parent=0 // pred_check_branch
    %67 = sbr.rel (0) target = $region77
  $region76: #{_device_forward.1} parent=0 // pred_region
    _
  $region77: #{_device_forward.1} parent=0 // pred_fallthru
    _
  // Predicated region
  $region78: #{_device_forward.1} parent=0 // pred_check
    _
  $region79: #{_device_forward.1} parent=0 // pred_check_branch
    %69 = sbr.rel (0) target = $region81
  $region80: #{_device_forward.1} parent=0 // pred_region
    _
  $region81: #{_device_forward.1} parent=0 // pred_fallthru
    _
  // Predicated region
  $region82: #{_device_forward.1} parent=0 // pred_check
    _
  $region83: #{_device_forward.1} parent=0 // pred_check_branch
    %71 = sbr.rel (0) target = $region85
  $region84: #{_device_forward.1} parent=0 // pred_region
    _
  $region85: #{_device_forward.1} parent=0 // pred_fallthru
    _
  // Predicated region
  $region86: #{_device_forward.1} parent=0 // pred_check
    _
  $region87: #{_device_forward.1} parent=0 // pred_check_branch
    %73 = sbr.rel (0) target = $region89
  $region88: #{_device_forward.1} parent=0 // pred_region
    _
  $region89: #{_device_forward.1} parent=0 // pred_fallthru
    _
  // Predicated region
  $region90: #{_device_forward.1} parent=0 // pred_check
    _
  $region91: #{_device_forward.1} parent=0 // pred_check_branch
    %75 = sbr.rel (0) target = $region93
  $region92: #{_device_forward.1} parent=0 // pred_region
    _
  $region93: #{_device_forward.1} parent=0 // pred_fallthru
    _
  %v77 = vld [vmem:[%s0] sm:$0xff]
  %v78 = vld [vmem:[%s0 + $0x8] sm:$0xff]
  %v79 = vld [vmem:[%s0 + $0x10] sm:$0xff]
  %v80 = vld [vmem:[%s0 + $0x18] sm:$0xff]
  %v81 = vld [vmem:[%s0 + $0x20] sm:$0xff]
  %v82 = vld [vmem:[%s0 + $0x28] sm:$0xff]
  %v83 = vld [vmem:[%s1] sm:$0xff]
  %v84 = vld [vmem:[%s1 + $0x8] sm:$0xff]
  %v85 = vld [vmem:[%s1 + $0x10] sm:$0xff]
  %v86 = vld [vmem:[%s1 + $0x18] sm:$0xff]
  %v87 = vld [vmem:[%s1 + $0x20] sm:$0xff]
  %v88 = vld [vmem:[%s1 + $0x28] sm:$0xff]
  %v89 = vld [vmem:[%s2] sm:$0x1]
  %v90 = vld [vmem:[%s3] sm:$0x1]
  %vm91 = vcmask 523264
  %v92 = vsel %vm91, %v77, 0.0
  %93 = vadd.xlane.f32.xlu0 %v92
  %v94 = vpop.xlane.xlu0 %93
  %v95 = vsel %vm91, %v78, 0.0
  %96 = vadd.xlane.f32.xlu0 %v95
  %v97 = vpop.xlane.xlu0 %96
  %v98 = vsel %vm91, %v79, 0.0
  %99 = vadd.xlane.f32.xlu0 %v98
  %v100 = vpop.xlane.xlu0 %99
  %v101 = vsel %vm91, %v80, 0.0
  %102 = vadd.xlane.f32.xlu0 %v101
  %v103 = vpop.xlane.xlu0 %102
  %v104 = vsel %vm91, %v81, 0.0
  %105 = vadd.xlane.f32.xlu0 %v104
  %v106 = vpop.xlane.xlu0 %105
  %v107 = vsel %vm91, %v82, 0.0
  %108 = vadd.xlane.f32.xlu0 %v107
  %v109 = vpop.xlane.xlu0 %108
  %v110 = vrcp.pop 64.0
  %v111 = vmul.f32 %v94, %v110
  %v112 = vmul.f32 %v97, %v110
  %v113 = vmul.f32 %v100, %v110
  %v114 = vmul.f32 %v103, %v110
  %v115 = vmul.f32 %v106, %v110
  %v116 = vmul.f32 %v109, %v110
  %v117 = vmul.f32 %v77, %v77
  %v118 = vmul.f32 %v78, %v78
  %v119 = vmul.f32 %v79, %v79
  %v120 = vmul.f32 %v80, %v80
  %v121 = vmul.f32 %v81, %v81
  %v122 = vmul.f32 %v82, %v82
  %v123 = vsel %vm91, %v117, 0.0
  %124 = vadd.xlane.f32.xlu0 %v123
  %v125 = vpop.xlane.xlu0 %124
  %v126 = vsel %vm91, %v118, 0.0
  %127 = vadd.xlane.f32.xlu0 %v126
  %v128 = vpop.xlane.xlu0 %127
  %v129 = vsel %vm91, %v119, 0.0
  %130 = vadd.xlane.f32.xlu0 %v129
  %v131 = vpop.xlane.xlu0 %130
  %v132 = vsel %vm91, %v120, 0.0
  %133 = vadd.xlane.f32.xlu0 %v132
  %v134 = vpop.xlane.xlu0 %133
  %v135 = vsel %vm91, %v121, 0.0
  %136 = vadd.xlane.f32.xlu0 %v135
  %v137 = vpop.xlane.xlu0 %136
  %v138 = vsel %vm91, %v122, 0.0
  %139 = vadd.xlane.f32.xlu0 %v138
  %v140 = vpop.xlane.xlu0 %139
  %v141 = vmul.f32 %v125, %v110
  %v142 = vmul.f32 %v128, %v110
  %v143 = vmul.f32 %v131, %v110
  %v144 = vmul.f32 %v134, %v110
  %v145 = vmul.f32 %v137, %v110
  %v146 = vmul.f32 %v140, %v110
  %v147 = vmul.f32 %v111, %v111
  %v148 = vmul.f32 %v112, %v112
  %v149 = vmul.f32 %v113, %v113
  %v150 = vmul.f32 %v114, %v114
  %v151 = vmul.f32 %v115, %v115
  %v152 = vmul.f32 %v116, %v116
  %v153 = vsub.f32 %v141, %v147
  %v154 = vsub.f32 %v142, %v148
  %v155 = vsub.f32 %v143, %v149
  %v156 = vsub.f32 %v144, %v150
  %v157 = vsub.f32 %v145, %v151
  %v158 = vsub.f32 %v146, %v152
  %v159 = vsub.f32 %v77, %v111
  %v160 = vsub.f32 %v78, %v112
  %v161 = vsub.f32 %v79, %v113
  %v162 = vsub.f32 %v80, %v114
  %v163 = vsub.f32 %v81, %v115
  %v164 = vsub.f32 %v82, %v116
  %v165 = vadd.f32 %v153, 1e-05
  %v166 = vadd.f32 %v154, 1e-05
  %v167 = vadd.f32 %v155, 1e-05
  %v168 = vadd.f32 %v156, 1e-05
  %v169 = vadd.f32 %v157, 1e-05
  %v170 = vadd.f32 %v158, 1e-05
  %v171 = vrsqrt.pop %v165
  %v172 = vrsqrt.pop %v166
  %v173 = vrsqrt.pop %v167
  %v174 = vrsqrt.pop %v168
  %v175 = vrsqrt.pop %v169
  %v176 = vrsqrt.pop %v170
  %v177 = vmul.f32 %v159, %v171
  %v178 = vmul.f32 %v160, %v172
  %v179 = vmul.f32 %v161, %v173
  %v180 = vmul.f32 %v162, %v174
  %v181 = vmul.f32 %v163, %v175
  %v182 = vmul.f32 %v164, %v176
  %v184 = vlaneseq
  %v185 = vshrl.u32 %v184, 7
  %v186 = vsub.s32 0, %v185
  %v187 = vrot.slane %v89, %v186
  %v189 = vmul.f32 %v177, %v187
  %v190 = vmul.f32 %v178, %v187
  %v191 = vmul.f32 %v179, %v187
  %v192 = vmul.f32 %v180, %v187
  %v193 = vmul.f32 %v181, %v187
  %v194 = vmul.f32 %v182, %v187
  %v196 = vlaneseq
  %v197 = vshrl.u32 %v196, 7
  %v198 = vsub.s32 0, %v197
  %v199 = vrot.slane %v90, %v198
  %v201 = vadd.f32 %v189, %v199
  %v202 = vadd.f32 %v190, %v199
  %v203 = vadd.f32 %v191, %v199
  %v204 = vadd.f32 %v192, %v199
  %v205 = vadd.f32 %v193, %v199
  %v206 = vadd.f32 %v194, %v199
  %v207 = vpack.c.bf16 %v202, %v201
  %v208 = vpack.c.bf16 %v204, %v203
  %v209 = vpack.c.bf16 %v206, %v205
  %v210 = vld [vmem:[%s4] sm:$0xf]
  %v211 = vld [vmem:[%s4 + $0x4] sm:$0xf]
  %v212 = vld [vmem:[%s4 + $0x8] sm:$0xf]
  %v213 = vld [vmem:[%s4 + $0xc] sm:$0xf]
  %v214 = vld [vmem:[%s4 + $0x10] sm:$0xf]
  %v215 = vld [vmem:[%s4 + $0x14] sm:$0xf]
  %v216 = vld [vmem:[%s4 + $0x18] sm:$0xf]
  %v217 = vld [vmem:[%s4 + $0x1c] sm:$0xf]
  %v218 = vld [vmem:[%s7] sm:$0x1]
  %v220 = vlaneseq
  %v221 = vshrl.u32 %v220, 7
  %v222 = vsub.s32 0, %v221
  %v223 = vrot.slane %v218, %v222
  %v233 = vunpack.c.l.b16 %v210
  %v234 = vunpack.c.l.b16 %v211
  %v235 = vunpack.c.l.b16 %v212
  %v236 = vunpack.c.l.b16 %v213
  %v237 = vunpack.c.l.b16 %v214
  %v238 = vunpack.c.l.b16 %v215
  %v239 = vunpack.c.l.b16 %v216
  %v240 = vunpack.c.l.b16 %v217
  %v241 = vpack.c.b16 %v234, %v233
  %v242 = vpack.c.b16 %v236, %v235
  %v243 = vpack.c.b16 %v238, %v237
  %v244 = vpack.c.b16 %v240, %v239
  %v250 = vsel %vm91, %v207, 0
  %v253 = vsel %vm91, %v208, 0
  %v256 = vsel %vm91, %v209, 0
  %258 = vmatprep.subr.bf16.mxu0 0
  %259 = vmatpush1.bf16.msra.mxu0 0
  %260 = vmatprep.subr.bf16.mxu0 0
  %261 = vmatpush1.bf16.msra.mxu0 0
  %262 = vmatprep.subr.bf16.mxu0 0
  %263 = vmatpush1.bf16.msra.mxu0 0
  %264 = vmatprep.subr.bf16.mxu0 0
  %265 = vmatpush1.bf16.msra.mxu0 0
  %266 = vmatprep.subr.bf16.mxu0 0
  %267 = vmatpush1.bf16.msra.mxu0 %v244
  %268 = vmatprep.subr.bf16.mxu0 0
  %269 = vmatpush1.bf16.msra.mxu0 %v243
  %270 = vmatprep.subr.bf16.mxu0 0
  %271 = vmatpush1.bf16.msra.mxu0 %v242
  %272 = vmatprep.subr.bf16.mxu0 0
  %273 = vmatpush1.bf16.msra.mxu0 %v241
  %274 = vmatprep.subr.bf16.mxu0 0
  %275 = vmatpush2.bf16.msra.mxu0 0
  %276 = vmatprep.subr.bf16.mxu0 0
  %277 = vmatpush2.bf16.msra.mxu0 0
  %278 = vmatprep.subr.bf16.mxu0 0
  %279 = vmatpush2.bf16.msra.mxu0 0
  %280 = vmatprep.subr.bf16.mxu0 0
  %281 = vmatpush2.bf16.msra.mxu0 0
  %282 = vmatprep.subr.bf16.mxu0 0
  %283 = vmatpush2.bf16.msra.mxu0 0
  %284 = vmatprep.subr.bf16.mxu0 0
  %285 = vmatpush2.bf16.msra.mxu0 0
  %286 = vmatprep.subr.bf16.mxu0 0
  %287 = vmatpush2.bf16.msra.mxu0 0
  %288 = vmatprep.subr.bf16.mxu0 0
  %289 = vmatpush2.bf16.msra.mxu0 0
  %290 = vmatprep.mubr.bf16.mxu0 0
  %291 = vmatmul.mubr.bf16.gmra.mxu0 %v250
  %v292 = vpop.f32.mrf.mxu0
  %v293 = vadd.f32 %v223, %v292
  %v294 = vpop.f32.mrf.mxu0
  %v295 = vpop.f32.mrf.mxu0
  %v296 = vadd.f32 %v223, %v295
  %v297 = vpop.f32.mrf.mxu0
  %298 = vmatprep.mubr.bf16.mxu0 0
  %299 = vmatmul.mubr.bf16.gmra.mxu0 %v253
  %v300 = vpop.f32.mrf.mxu0
  %v301 = vadd.f32 %v223, %v300
  %v302 = vpop.f32.mrf.mxu0
  %v303 = vpop.f32.mrf.mxu0
  %v304 = vadd.f32 %v223, %v303
  %v305 = vpop.f32.mrf.mxu0
  %306 = vmatprep.mubr.bf16.mxu0 0
  %307 = vmatmul.mubr.bf16.gmra.mxu0 %v256
  %v308 = vpop.f32.mrf.mxu0
  %v309 = vadd.f32 %v223, %v308
  %v310 = vpop.f32.mrf.mxu0
  %v311 = vpop.f32.mrf.mxu0
  %v312 = vadd.f32 %v223, %v311
  %v313 = vpop.f32.mrf.mxu0
  %314 = vdwg.mxu0
  %v315 = vld [vmem:[%s5] sm:$0xf]
  %v316 = vld [vmem:[%s5 + $0x4] sm:$0xf]
  %v317 = vld [vmem:[%s5 + $0x8] sm:$0xf]
  %v318 = vld [vmem:[%s5 + $0xc] sm:$0xf]
  %v319 = vld [vmem:[%s5 + $0x10] sm:$0xf]
  %v320 = vld [vmem:[%s5 + $0x14] sm:$0xf]
  %v321 = vld [vmem:[%s5 + $0x18] sm:$0xf]
  %v322 = vld [vmem:[%s5 + $0x1c] sm:$0xf]
  %v323 = vld [vmem:[%s8] sm:$0x1]
  %v325 = vlaneseq
  %v326 = vshrl.u32 %v325, 7
  %v327 = vsub.s32 0, %v326
  %v328 = vrot.slane %v323, %v327
  %v338 = vunpack.c.l.b16 %v315
  %v339 = vunpack.c.l.b16 %v316
  %v340 = vunpack.c.l.b16 %v317
  %v341 = vunpack.c.l.b16 %v318
  %v342 = vunpack.c.l.b16 %v319
  %v343 = vunpack.c.l.b16 %v320
  %v344 = vunpack.c.l.b16 %v321
  %v345 = vunpack.c.l.b16 %v322
  %v346 = vpack.c.b16 %v339, %v338
  %v347 = vpack.c.b16 %v341, %v340
  %v348 = vpack.c.b16 %v343, %v342
  %v349 = vpack.c.b16 %v345, %v344
  %354 = vmatprep.subr.bf16.mxu0 0
  %355 = vmatpush1.bf16.msra.mxu0 0
  %356 = vmatprep.subr.bf16.mxu0 0
  %357 = vmatpush1.bf16.msra.mxu0 0
  %358 = vmatprep.subr.bf16.mxu0 0
  %359 = vmatpush1.bf16.msra.mxu0 0
  %360 = vmatprep.subr.bf16.mxu0 0
  %361 = vmatpush1.bf16.msra.mxu0 0
  %362 = vmatprep.subr.bf16.mxu0 0
  %363 = vmatpush1.bf16.msra.mxu0 %v349
  %364 = vmatprep.subr.bf16.mxu0 0
  %365 = vmatpush1.bf16.msra.mxu0 %v348
  %366 = vmatprep.subr.bf16.mxu0 0
  %367 = vmatpush1.bf16.msra.mxu0 %v347
  %368 = vmatprep.subr.bf16.mxu0 0
  %369 = vmatpush1.bf16.msra.mxu0 %v346
  %370 = vmatprep.subr.bf16.mxu0 0
  %371 = vmatpush2.bf16.msra.mxu0 0
  %372 = vmatprep.subr.bf16.mxu0 0
  %373 = vmatpush2.bf16.msra.mxu0 0
  %374 = vmatprep.subr.bf16.mxu0 0
  %375 = vmatpush2.bf16.msra.mxu0 0
  %376 = vmatprep.subr.bf16.mxu0 0
  %377 = vmatpush2.bf16.msra.mxu0 0
  %378 = vmatprep.subr.bf16.mxu0 0
  %379 = vmatpush2.bf16.msra.mxu0 0
  %380 = vmatprep.subr.bf16.mxu0 0
  %381 = vmatpush2.bf16.msra.mxu0 0
  %382 = vmatprep.subr.bf16.mxu0 0
  %383 = vmatpush2.bf16.msra.mxu0 0
  %384 = vmatprep.subr.bf16.mxu0 0
  %385 = vmatpush2.bf16.msra.mxu0 0
  %386 = vmatprep.mubr.bf16.mxu0 0
  %387 = vmatmul.mubr.bf16.gmra.mxu0 %v250
  %v388 = vpop.f32.mrf.mxu0
  %v389 = vadd.f32 %v328, %v388
  %v390 = vpop.f32.mrf.mxu0
  %v391 = vpop.f32.mrf.mxu0
  %v392 = vadd.f32 %v328, %v391
  %v393 = vpop.f32.mrf.mxu0
  %394 = vmatprep.mubr.bf16.mxu0 0
  %395 = vmatmul.mubr.bf16.gmra.mxu0 %v253
  %v396 = vpop.f32.mrf.mxu0
  %v397 = vadd.f32 %v328, %v396
  %v398 = vpop.f32.mrf.mxu0
  %v399 = vpop.f32.mrf.mxu0
  %v400 = vadd.f32 %v328, %v399
  %v401 = vpop.f32.mrf.mxu0
  %402 = vmatprep.mubr.bf16.mxu0 0
  %403 = vmatmul.mubr.bf16.gmra.mxu0 %v256
  %v404 = vpop.f32.mrf.mxu0
  %v405 = vadd.f32 %v328, %v404
  %v406 = vpop.f32.mrf.mxu0
  %v407 = vpop.f32.mrf.mxu0
  %v408 = vadd.f32 %v328, %v407
  %v409 = vpop.f32.mrf.mxu0
  %410 = vdwg.mxu0
  %v411 = vld [vmem:[%s6] sm:$0xf]
  %v412 = vld [vmem:[%s6 + $0x4] sm:$0xf]
  %v413 = vld [vmem:[%s6 + $0x8] sm:$0xf]
  %v414 = vld [vmem:[%s6 + $0xc] sm:$0xf]
  %v415 = vld [vmem:[%s6 + $0x10] sm:$0xf]
  %v416 = vld [vmem:[%s6 + $0x14] sm:$0xf]
  %v417 = vld [vmem:[%s6 + $0x18] sm:$0xf]
  %v418 = vld [vmem:[%s6 + $0x1c] sm:$0xf]
  %v419 = vld [vmem:[%s9] sm:$0x1]
  %v421 = vlaneseq
  %v422 = vshrl.u32 %v421, 7
  %v423 = vsub.s32 0, %v422
  %v424 = vrot.slane %v419, %v423
  %v434 = vunpack.c.l.b16 %v411
  %v435 = vunpack.c.l.b16 %v412
  %v436 = vunpack.c.l.b16 %v413
  %v437 = vunpack.c.l.b16 %v414
  %v438 = vunpack.c.l.b16 %v415
  %v439 = vunpack.c.l.b16 %v416
  %v440 = vunpack.c.l.b16 %v417
  %v441 = vunpack.c.l.b16 %v418
  %v442 = vpack.c.b16 %v435, %v434
  %v443 = vpack.c.b16 %v437, %v436
  %v444 = vpack.c.b16 %v439, %v438
  %v445 = vpack.c.b16 %v441, %v440
  %450 = vmatprep.subr.bf16.mxu0 0
  %451 = vmatpush1.bf16.msra.mxu0 0
  %452 = vmatprep.subr.bf16.mxu0 0
  %453 = vmatpush1.bf16.msra.mxu0 0
  %454 = vmatprep.subr.bf16.mxu0 0
  %455 = vmatpush1.bf16.msra.mxu0 0
  %456 = vmatprep.subr.bf16.mxu0 0
  %457 = vmatpush1.bf16.msra.mxu0 0
  %458 = vmatprep.subr.bf16.mxu0 0
  %459 = vmatpush1.bf16.msra.mxu0 %v445
  %460 = vmatprep.subr.bf16.mxu0 0
  %461 = vmatpush1.bf16.msra.mxu0 %v444
  %462 = vmatprep.subr.bf16.mxu0 0
  %463 = vmatpush1.bf16.msra.mxu0 %v443
  %464 = vmatprep.subr.bf16.mxu0 0
  %465 = vmatpush1.bf16.msra.mxu0 %v442
  %466 = vmatprep.subr.bf16.mxu0 0
  %467 = vmatpush2.bf16.msra.mxu0 0
  %468 = vmatprep.subr.bf16.mxu0 0
  %469 = vmatpush2.bf16.msra.mxu0 0
  %470 = vmatprep.subr.bf16.mxu0 0
  %471 = vmatpush2.bf16.msra.mxu0 0
  %472 = vmatprep.subr.bf16.mxu0 0
  %473 = vmatpush2.bf16.msra.mxu0 0
  %474 = vmatprep.subr.bf16.mxu0 0
  %475 = vmatpush2.bf16.msra.mxu0 0
  %476 = vmatprep.subr.bf16.mxu0 0
  %477 = vmatpush2.bf16.msra.mxu0 0
  %478 = vmatprep.subr.bf16.mxu0 0
  %479 = vmatpush2.bf16.msra.mxu0 0
  %480 = vmatprep.subr.bf16.mxu0 0
  %481 = vmatpush2.bf16.msra.mxu0 0
  %482 = vmatprep.mubr.bf16.mxu0 0
  %483 = vmatmul.mubr.bf16.gmra.mxu0 %v250
  %v484 = vpop.f32.mrf.mxu0
  %v485 = vadd.f32 %v424, %v484
  %v486 = vpop.f32.mrf.mxu0
  %v487 = vpop.f32.mrf.mxu0
  %v488 = vadd.f32 %v424, %v487
  %v489 = vpop.f32.mrf.mxu0
  %490 = vmatprep.mubr.bf16.mxu0 0
  %491 = vmatmul.mubr.bf16.gmra.mxu0 %v253
  %v492 = vpop.f32.mrf.mxu0
  %v493 = vadd.f32 %v424, %v492
  %v494 = vpop.f32.mrf.mxu0
  %v495 = vpop.f32.mrf.mxu0
  %v496 = vadd.f32 %v424, %v495
  %v497 = vpop.f32.mrf.mxu0
  %498 = vmatprep.mubr.bf16.mxu0 0
  %499 = vmatmul.mubr.bf16.gmra.mxu0 %v256
  %v500 = vpop.f32.mrf.mxu0
  %v501 = vadd.f32 %v424, %v500
  %v502 = vpop.f32.mrf.mxu0
  %v503 = vpop.f32.mrf.mxu0
  %v504 = vadd.f32 %v424, %v503
  %v505 = vpop.f32.mrf.mxu0
  %506 = vdwg.mxu0
  %v507 = vpack.c.bf16 %v296, %v293
  %v508 = vpack.c.bf16 %v304, %v301
  %v509 = vpack.c.bf16 %v312, %v309
  %v510 = vpack.c.bf16 %v392, %v389
  %v511 = vpack.c.bf16 %v400, %v397
  %v512 = vpack.c.bf16 %v408, %v405
  %vm513 = vcmask 261120
  %v515 = vsel %vm513, %v507, 0
  %v518 = vsel %vm513, %v508, 0
  %v521 = vsel %vm513, %v509, 0
  %v524 = vsel %vm513, %v510, 0
  %v527 = vsel %vm513, %v511, 0
  %v530 = vsel %vm513, %v512, 0
  %532 = vmatprep.subr.bf16.mxu0 0
  %533 = vmatpush1.bf16.xpose.msra.mxu0 0
  %534 = vmatprep.subr.bf16.mxu0 0
  %535 = vmatpush1.bf16.xpose.msra.mxu0 0
  %536 = vmatprep.subr.bf16.mxu0 0
  %537 = vmatpush1.bf16.xpose.msra.mxu0 0
  %538 = vmatprep.subr.bf16.mxu0 0
  %539 = vmatpush1.bf16.xpose.msra.mxu0 0
  %540 = vmatprep.subr.bf16.mxu0 0
  %541 = vmatpush1.bf16.xpose.msra.mxu0 0
  %542 = vmatprep.subr.bf16.mxu0 0
  %543 = vmatpush1.bf16.xpose.msra.mxu0 %v530
  %544 = vmatprep.subr.bf16.mxu0 0
  %545 = vmatpush1.bf16.xpose.msra.mxu0 %v527
  %546 = vmatprep.subr.bf16.mxu0 0
  %547 = vmatpush1.bf16.xpose.msra.mxu0 %v524
  %548 = vmatprep.subr.bf16.mxu0 0
  %549 = vmatpush2.bf16.xpose.msra.mxu0 0
  %550 = vmatprep.subr.bf16.mxu0 0
  %551 = vmatpush2.bf16.xpose.msra.mxu0 0
  %552 = vmatprep.subr.bf16.mxu0 0
  %553 = vmatpush2.bf16.xpose.msra.mxu0 0
  %554 = vmatprep.subr.bf16.mxu0 0
  %555 = vmatpush2.bf16.xpose.msra.mxu0 0
  %556 = vmatprep.subr.bf16.mxu0 0
  %557 = vmatpush2.bf16.xpose.msra.mxu0 0
  %558 = vmatprep.subr.bf16.mxu0 0
  %559 = vmatpush2.bf16.xpose.msra.mxu0 0
  %560 = vmatprep.subr.bf16.mxu0 0
  %561 = vmatpush2.bf16.xpose.msra.mxu0 0
  %562 = vmatprep.subr.bf16.mxu0 0
  %563 = vmatpush2.bf16.xpose.msra.mxu0 0
  %564 = vmatprep.mubr.bf16.mxu0 0
  %565 = vmatmul.mubr.bf16.gmra.mxu0 %v515
  %v566 = vpop.f32.mrf.mxu0
  %v567 = vadd.f32 0.0, %v566
  %v568 = vpop.f32.mrf.mxu0
  %v569 = vpop.f32.mrf.mxu0
  %v570 = vadd.f32 0.0, %v569
  %v571 = vpop.f32.mrf.mxu0
  %572 = vmatprep.mubr.bf16.mxu0 0
  %573 = vmatmul.mubr.bf16.gmra.mxu0 %v518
  %v574 = vpop.f32.mrf.mxu0
  %v575 = vadd.f32 0.0, %v574
  %v576 = vpop.f32.mrf.mxu0
  %v577 = vpop.f32.mrf.mxu0
  %v578 = vadd.f32 0.0, %v577
  %v579 = vpop.f32.mrf.mxu0
  %580 = vmatprep.mubr.bf16.mxu0 0
  %581 = vmatmul.mubr.bf16.gmra.mxu0 %v521
  %v582 = vpop.f32.mrf.mxu0
  %v583 = vadd.f32 0.0, %v582
  %v584 = vpop.f32.mrf.mxu0
  %v585 = vpop.f32.mrf.mxu0
  %v586 = vadd.f32 0.0, %v585
  %v587 = vpop.f32.mrf.mxu0
  %588 = vdwg.mxu0
  %v589 = vmul.f32 %v567, 0.17677669
  %v590 = vmul.f32 %v570, 0.17677669
  %v591 = vmul.f32 %v575, 0.17677669
  %v592 = vmul.f32 %v578, 0.17677669
  %v593 = vmul.f32 %v583, 0.17677669
  %v594 = vmul.f32 %v586, 0.17677669
  %v595 = vadd.f32 %v589, %v83
  %v596 = vadd.f32 %v590, %v84
  %v597 = vadd.f32 %v591, %v85
  %v598 = vadd.f32 %v592, %v86
  %v599 = vadd.f32 %v593, %v87
  %v600 = vadd.f32 %v594, %v88
  %vm601 = vcmask 392192
  %v602 = vsel %vm601, %v595, -inf
  %603 = vmax.xlane.f32.xlu0 %v602
  %v604 = vpop.xlane.xlu0 %603
  %v605 = vsel %vm601, %v596, -inf
  %606 = vmax.xlane.f32.xlu0 %v605
  %v607 = vpop.xlane.xlu0 %606
  %v608 = vsel %vm601, %v597, -inf
  %609 = vmax.xlane.f32.xlu0 %v608
  %v610 = vpop.xlane.xlu0 %609
  %v611 = vsel %vm601, %v598, -inf
  %612 = vmax.xlane.f32.xlu0 %v611
  %v613 = vpop.xlane.xlu0 %612
  %v614 = vsel %vm601, %v599, -inf
  %615 = vmax.xlane.f32.xlu0 %v614
  %v616 = vpop.xlane.xlu0 %615
  %v617 = vsel %vm601, %v600, -inf
  %618 = vmax.xlane.f32.xlu0 %v617
  %v619 = vpop.xlane.xlu0 %618
  %v620 = vsub.f32 %v595, %v604
  %v621 = vsub.f32 %v596, %v607
  %v622 = vsub.f32 %v597, %v610
  %v623 = vsub.f32 %v598, %v613
  %v624 = vsub.f32 %v599, %v616
  %v625 = vsub.f32 %v600, %v619
  %v626 = vmul.f32 %v620, 1.442695
  %v627 = vpow.pop %v626
  %v628 = vmul.f32 %v621, 1.442695
  %v629 = vpow.pop %v628
  %v630 = vmul.f32 %v622, 1.442695
  %v631 = vpow.pop %v630
  %v632 = vmul.f32 %v623, 1.442695
  %v633 = vpow.pop %v632
  %v634 = vmul.f32 %v624, 1.442695
  %v635 = vpow.pop %v634
  %v636 = vmul.f32 %v625, 1.442695
  %v637 = vpow.pop %v636
  %v638 = vsel %vm601, %v627, 0.0
  %639 = vadd.xlane.f32.xlu0 %v638
  %v640 = vpop.xlane.xlu0 %639
  %v641 = vsel %vm601, %v629, 0.0
  %642 = vadd.xlane.f32.xlu0 %v641
  %v643 = vpop.xlane.xlu0 %642
  %v644 = vsel %vm601, %v631, 0.0
  %645 = vadd.xlane.f32.xlu0 %v644
  %v646 = vpop.xlane.xlu0 %645
  %v647 = vsel %vm601, %v633, 0.0
  %648 = vadd.xlane.f32.xlu0 %v647
  %v649 = vpop.xlane.xlu0 %648
  %v650 = vsel %vm601, %v635, 0.0
  %651 = vadd.xlane.f32.xlu0 %v650
  %v652 = vpop.xlane.xlu0 %651
  %v653 = vsel %vm601, %v637, 0.0
  %654 = vadd.xlane.f32.xlu0 %v653
  %v655 = vpop.xlane.xlu0 %654
  %v656 = vrcp.pop %v640
  %v657 = vrcp.pop %v643
  %v658 = vrcp.pop %v646
  %v659 = vrcp.pop %v649
  %v660 = vrcp.pop %v652
  %v661 = vrcp.pop %v655
  %v662 = vmul.f32 %v627, %v656
  %v663 = vmul.f32 %v629, %v657
  %v664 = vmul.f32 %v631, %v658
  %v665 = vmul.f32 %v633, %v659
  %v666 = vmul.f32 %v635, %v660
  %v667 = vmul.f32 %v637, %v661
  %v668 = vpack.c.bf16 %v663, %v662
  %v669 = vpack.c.bf16 %v665, %v664
  %v670 = vpack.c.bf16 %v667, %v666
  %v671 = vpack.c.bf16 %v488, %v485
  %v672 = vpack.c.bf16 %v496, %v493
  %v673 = vpack.c.bf16 %v504, %v501
  %v675 = vsel %vm601, %v668, 0
  %v678 = vsel %vm601, %v669, 0
  %v681 = vsel %vm601, %v670, 0
  %683 = vmatprep.subr.bf16.mxu0 0
  %684 = vmatpush1.bf16.msra.mxu0 0
  %685 = vmatprep.subr.bf16.mxu0 0
  %686 = vmatpush1.bf16.msra.mxu0 0
  %687 = vmatprep.subr.bf16.mxu0 0
  %688 = vmatpush1.bf16.msra.mxu0 0
  %689 = vmatprep.subr.bf16.mxu0 0
  %690 = vmatpush1.bf16.msra.mxu0 0
  %691 = vmatprep.subr.bf16.mxu0 0
  %692 = vmatpush1.bf16.msra.mxu0 0
  %693 = vmatprep.subr.bf16.mxu0 0
  %694 = vmatpush1.bf16.msra.mxu0 %v673
  %695 = vmatprep.subr.bf16.mxu0 0
  %696 = vmatpush1.bf16.msra.mxu0 %v672
  %697 = vmatprep.subr.bf16.mxu0 0
  %698 = vmatpush1.bf16.msra.mxu0 %v671
  %699 = vmatprep.subr.bf16.mxu0 0
  %700 = vmatpush2.bf16.msra.mxu0 0
  %701 = vmatprep.subr.bf16.mxu0 0
  %702 = vmatpush2.bf16.msra.mxu0 0
  %703 = vmatprep.subr.bf16.mxu0 0
  %704 = vmatpush2.bf16.msra.mxu0 0
  %705 = vmatprep.subr.bf16.mxu0 0
  %706 = vmatpush2.bf16.msra.mxu0 0
  %707 = vmatprep.subr.bf16.mxu0 0
  %708 = vmatpush2.bf16.msra.mxu0 0
  %709 = vmatprep.subr.bf16.mxu0 0
  %710 = vmatpush2.bf16.msra.mxu0 0
  %711 = vmatprep.subr.bf16.mxu0 0
  %712 = vmatpush2.bf16.msra.mxu0 0
  %713 = vmatprep.subr.bf16.mxu0 0
  %714 = vmatpush2.bf16.msra.mxu0 0
  %715 = vmatprep.mubr.bf16.mxu0 0
  %716 = vmatmul.mubr.bf16.gmra.mxu0 %v675
  %v717 = vpop.f32.mrf.mxu0
  %v718 = vadd.f32 0.0, %v717
  %v719 = vpop.f32.mrf.mxu0
  %v720 = vpop.f32.mrf.mxu0
  %v721 = vadd.f32 0.0, %v720
  %v722 = vpop.f32.mrf.mxu0
  %723 = vmatprep.mubr.bf16.mxu0 0
  %724 = vmatmul.mubr.bf16.gmra.mxu0 %v678
  %v725 = vpop.f32.mrf.mxu0
  %v726 = vadd.f32 0.0, %v725
  %v727 = vpop.f32.mrf.mxu0
  %v728 = vpop.f32.mrf.mxu0
  %v729 = vadd.f32 0.0, %v728
  %v730 = vpop.f32.mrf.mxu0
  %731 = vmatprep.mubr.bf16.mxu0 0
  %732 = vmatmul.mubr.bf16.gmra.mxu0 %v681
  %v733 = vpop.f32.mrf.mxu0
  %v734 = vadd.f32 0.0, %v733
  %v735 = vpop.f32.mrf.mxu0
  %v736 = vpop.f32.mrf.mxu0
  %v737 = vadd.f32 0.0, %v736
  %v738 = vpop.f32.mrf.mxu0
  %739 = vdwg.mxu0
  %v740 = vpack.c.bf16 %v721, %v718
  %v741 = vpack.c.bf16 %v729, %v726
  %v742 = vpack.c.bf16 %v737, %v734
  %v743 = vld [vmem:[%s10] sm:$0xf]
  %v744 = vld [vmem:[%s10 + $0x4] sm:$0xf]
  %v745 = vld [vmem:[%s10 + $0x8] sm:$0xf]
  %v746 = vld [vmem:[%s10 + $0xc] sm:$0xf]
  %s747 = scalar_lea.vmem %s4, 32
  %v748 = vld [vmem:[%s747] sm:$0xf]
  %v749 = vld [vmem:[%s747 + $0x4] sm:$0xf]
  %v750 = vld [vmem:[%s747 + $0x8] sm:$0xf]
  %v751 = vld [vmem:[%s747 + $0xc] sm:$0xf]
  %v752 = vld [vmem:[%s747 + $0x10] sm:$0xf]
  %v753 = vld [vmem:[%s747 + $0x14] sm:$0xf]
  %v754 = vld [vmem:[%s747 + $0x18] sm:$0xf]
  %v755 = vld [vmem:[%s747 + $0x1c] sm:$0xf]
  %s756 = scalar_lea.vmem %s7, 1
  %v757 = vld [vmem:[%s756] sm:$0x1]
  %v759 = vlaneseq
  %v760 = vshrl.u32 %v759, 7
  %v761 = vsub.s32 0, %v760
  %v762 = vrot.slane %v757, %v761
  %v772 = vunpack.c.l.b16 %v748
  %v773 = vunpack.c.l.b16 %v749
  %v774 = vunpack.c.l.b16 %v750
  %v775 = vunpack.c.l.b16 %v751
  %v776 = vunpack.c.l.b16 %v752
  %v777 = vunpack.c.l.b16 %v753
  %v778 = vunpack.c.l.b16 %v754
  %v779 = vunpack.c.l.b16 %v755
  %v780 = vpack.c.b16 %v773, %v772
  %v781 = vpack.c.b16 %v775, %v774
  %v782 = vpack.c.b16 %v777, %v776
  %v783 = vpack.c.b16 %v779, %v778
  %788 = vmatprep.subr.bf16.mxu0 0
  %789 = vmatpush1.bf16.msra.mxu0 0
  %790 = vmatprep.subr.bf16.mxu0 0
  %791 = vmatpush1.bf16.msra.mxu0 0
  %792 = vmatprep.subr.bf16.mxu0 0
  %793 = vmatpush1.bf16.msra.mxu0 0
  %794 = vmatprep.subr.bf16.mxu0 0
  %795 = vmatpush1.bf16.msra.mxu0 0
  %796 = vmatprep.subr.bf16.mxu0 0
  %797 = vmatpush1.bf16.msra.mxu0 %v783
  %798 = vmatprep.subr.bf16.mxu0 0
  %799 = vmatpush1.bf16.msra.mxu0 %v782
  %800 = vmatprep.subr.bf16.mxu0 0
  %801 = vmatpush1.bf16.msra.mxu0 %v781
  %802 = vmatprep.subr.bf16.mxu0 0
  %803 = vmatpush1.bf16.msra.mxu0 %v780
  %804 = vmatprep.subr.bf16.mxu0 0
  %805 = vmatpush2.bf16.msra.mxu0 0
  %806 = vmatprep.subr.bf16.mxu0 0
  %807 = vmatpush2.bf16.msra.mxu0 0
  %808 = vmatprep.subr.bf16.mxu0 0
  %809 = vmatpush2.bf16.msra.mxu0 0
  %810 = vmatprep.subr.bf16.mxu0 0
  %811 = vmatpush2.bf16.msra.mxu0 0
  %812 = vmatprep.subr.bf16.mxu0 0
  %813 = vmatpush2.bf16.msra.mxu0 0
  %814 = vmatprep.subr.bf16.mxu0 0
  %815 = vmatpush2.bf16.msra.mxu0 0
  %816 = vmatprep.subr.bf16.mxu0 0
  %817 = vmatpush2.bf16.msra.mxu0 0
  %818 = vmatprep.subr.bf16.mxu0 0
  %819 = vmatpush2.bf16.msra.mxu0 0
  %820 = vmatprep.mubr.bf16.mxu0 0
  %821 = vmatmul.mubr.bf16.gmra.mxu0 %v250
  %v822 = vpop.f32.mrf.mxu0
  %v823 = vadd.f32 %v762, %v822
  %v824 = vpop.f32.mrf.mxu0
  %v825 = vpop.f32.mrf.mxu0
  %v826 = vadd.f32 %v762, %v825
  %v827 = vpop.f32.mrf.mxu0
  %828 = vmatprep.mubr.bf16.mxu0 0
  %829 = vmatmul.mubr.bf16.gmra.mxu0 %v253
  %v830 = vpop.f32.mrf.mxu0
  %v831 = vadd.f32 %v762, %v830
  %v832 = vpop.f32.mrf.mxu0
  %v833 = vpop.f32.mrf.mxu0
  %v834 = vadd.f32 %v762, %v833
  %v835 = vpop.f32.mrf.mxu0
  %836 = vmatprep.mubr.bf16.mxu0 0
  %837 = vmatmul.mubr.bf16.gmra.mxu0 %v256
  %v838 = vpop.f32.mrf.mxu0
  %v839 = vadd.f32 %v762, %v838
  %v840 = vpop.f32.mrf.mxu0
  %v841 = vpop.f32.mrf.mxu0
  %v842 = vadd.f32 %v762, %v841
  %v843 = vpop.f32.mrf.mxu0
  %844 = vdwg.mxu0
  %s845 = scalar_lea.vmem %s5, 32
  %v846 = vld [vmem:[%s845] sm:$0xf]
  %v847 = vld [vmem:[%s845 + $0x4] sm:$0xf]
  %v848 = vld [vmem:[%s845 + $0x8] sm:$0xf]
  %v849 = vld [vmem:[%s845 + $0xc] sm:$0xf]
  %v850 = vld [vmem:[%s845 + $0x10] sm:$0xf]
  %v851 = vld [vmem:[%s845 + $0x14] sm:$0xf]
  %v852 = vld [vmem:[%s845 + $0x18] sm:$0xf]
  %v853 = vld [vmem:[%s845 + $0x1c] sm:$0xf]
  %s854 = scalar_lea.vmem %s8, 1
  %v855 = vld [vmem:[%s854] sm:$0x1]
  %v857 = vlaneseq
  %v858 = vshrl.u32 %v857, 7
  %v859 = vsub.s32 0, %v858
  %v860 = vrot.slane %v855, %v859
  %v870 = vunpack.c.l.b16 %v846
  %v871 = vunpack.c.l.b16 %v847
  %v872 = vunpack.c.l.b16 %v848
  %v873 = vunpack.c.l.b16 %v849
  %v874 = vunpack.c.l.b16 %v850
  %v875 = vunpack.c.l.b16 %v851
  %v876 = vunpack.c.l.b16 %v852
  %v877 = vunpack.c.l.b16 %v853
  %v878 = vpack.c.b16 %v871, %v870
  %v879 = vpack.c.b16 %v873, %v872
  %v880 = vpack.c.b16 %v875, %v874
  %v881 = vpack.c.b16 %v877, %v876
  %886 = vmatprep.subr.bf16.mxu0 0
  %887 = vmatpush1.bf16.msra.mxu0 0
  %888 = vmatprep.subr.bf16.mxu0 0
  %889 = vmatpush1.bf16.msra.mxu0 0
  %890 = vmatprep.subr.bf16.mxu0 0
  %891 = vmatpush1.bf16.msra.mxu0 0
  %892 = vmatprep.subr.bf16.mxu0 0
  %893 = vmatpush1.bf16.msra.mxu0 0
  %894 = vmatprep.subr.bf16.mxu0 0
  %895 = vmatpush1.bf16.msra.mxu0 %v881
  %896 = vmatprep.subr.bf16.mxu0 0
  %897 = vmatpush1.bf16.msra.mxu0 %v880
  %898 = vmatprep.subr.bf16.mxu0 0
  %899 = vmatpush1.bf16.msra.mxu0 %v879
  %900 = vmatprep.subr.bf16.mxu0 0
  %901 = vmatpush1.bf16.msra.mxu0 %v878
  %902 = vmatprep.subr.bf16.mxu0 0
  %903 = vmatpush2.bf16.msra.mxu0 0
  %904 = vmatprep.subr.bf16.mxu0 0
  %905 = vmatpush2.bf16.msra.mxu0 0
  %906 = vmatprep.subr.bf16.mxu0 0
  %907 = vmatpush2.bf16.msra.mxu0 0
  %908 = vmatprep.subr.bf16.mxu0 0
  %909 = vmatpush2.bf16.msra.mxu0 0
  %910 = vmatprep.subr.bf16.mxu0 0
  %911 = vmatpush2.bf16.msra.mxu0 0
  %912 = vmatprep.subr.bf16.mxu0 0
  %913 = vmatpush2.bf16.msra.mxu0 0
  %914 = vmatprep.subr.bf16.mxu0 0
  %915 = vmatpush2.bf16.msra.mxu0 0
  %916 = vmatprep.subr.bf16.mxu0 0
  %917 = vmatpush2.bf16.msra.mxu0 0
  %918 = vmatprep.mubr.bf16.mxu0 0
  %919 = vmatmul.mubr.bf16.gmra.mxu0 %v250
  %v920 = vpop.f32.mrf.mxu0
  %v921 = vadd.f32 %v860, %v920
  %v922 = vpop.f32.mrf.mxu0
  %v923 = vpop.f32.mrf.mxu0
  %v924 = vadd.f32 %v860, %v923
  %v925 = vpop.f32.mrf.mxu0
  %926 = vmatprep.mubr.bf16.mxu0 0
  %927 = vmatmul.mubr.bf16.gmra.mxu0 %v253
  %v928 = vpop.f32.mrf.mxu0
  %v929 = vadd.f32 %v860, %v928
  %v930 = vpop.f32.mrf.mxu0
  %v931 = vpop.f32.mrf.mxu0
  %v932 = vadd.f32 %v860, %v931
  %v933 = vpop.f32.mrf.mxu0
  %934 = vmatprep.mubr.bf16.mxu0 0
  %935 = vmatmul.mubr.bf16.gmra.mxu0 %v256
  %v936 = vpop.f32.mrf.mxu0
  %v937 = vadd.f32 %v860, %v936
  %v938 = vpop.f32.mrf.mxu0
  %v939 = vpop.f32.mrf.mxu0
  %v940 = vadd.f32 %v860, %v939
  %v941 = vpop.f32.mrf.mxu0
  %942 = vdwg.mxu0
  %s943 = scalar_lea.vmem %s6, 32
  %v944 = vld [vmem:[%s943] sm:$0xf]
  %v945 = vld [vmem:[%s943 + $0x4] sm:$0xf]
  %v946 = vld [vmem:[%s943 + $0x8] sm:$0xf]
  %v947 = vld [vmem:[%s943 + $0xc] sm:$0xf]
  %v948 = vld [vmem:[%s943 + $0x10] sm:$0xf]
  %v949 = vld [vmem:[%s943 + $0x14] sm:$0xf]
  %v950 = vld [vmem:[%s943 + $0x18] sm:$0xf]
  %v951 = vld [vmem:[%s943 + $0x1c] sm:$0xf]
  %s952 = scalar_lea.vmem %s9, 1
  %v953 = vld [vmem:[%s952] sm:$0x1]
  %v955 = vlaneseq
  %v956 = vshrl.u32 %v955, 7
  %v957 = vsub.s32 0, %v956
  %v958 = vrot.slane %v953, %v957
  %v968 = vunpack.c.l.b16 %v944
  %v969 = vunpack.c.l.b16 %v945
  %v970 = vunpack.c.l.b16 %v946
  %v971 = vunpack.c.l.b16 %v947
  %v972 = vunpack.c.l.b16 %v948
  %v973 = vunpack.c.l.b16 %v949
  %v974 = vunpack.c.l.b16 %v950
  %v975 = vunpack.c.l.b16 %v951
  %v976 = vpack.c.b16 %v969, %v968
  %v977 = vpack.c.b16 %v971, %v970
  %v978 = vpack.c.b16 %v973, %v972
  %v979 = vpack.c.b16 %v975, %v974
  %984 = vmatprep.subr.bf16.mxu0 0
  %985 = vmatpush1.bf16.msra.mxu0 0
  %986 = vmatprep.subr.bf16.mxu0 0
  %987 = vmatpush1.bf16.msra.mxu0 0
  %988 = vmatprep.subr.bf16.mxu0 0
  %989 = vmatpush1.bf16.msra.mxu0 0
  %990 = vmatprep.subr.bf16.mxu0 0
  %991 = vmatpush1.bf16.msra.mxu0 0
  %992 = vmatprep.subr.bf16.mxu0 0
  %993 = vmatpush1.bf16.msra.mxu0 %v979
  %994 = vmatprep.subr.bf16.mxu0 0
  %995 = vmatpush1.bf16.msra.mxu0 %v978
  %996 = vmatprep.subr.bf16.mxu0 0
  %997 = vmatpush1.bf16.msra.mxu0 %v977
  %998 = vmatprep.subr.bf16.mxu0 0
  %999 = vmatpush1.bf16.msra.mxu0 %v976
  %1000 = vmatprep.subr.bf16.mxu0 0
  %1001 = vmatpush2.bf16.msra.mxu0 0
  %1002 = vmatprep.subr.bf16.mxu0 0
  %1003 = vmatpush2.bf16.msra.mxu0 0
  %1004 = vmatprep.subr.bf16.mxu0 0
  %1005 = vmatpush2.bf16.msra.mxu0 0
  %1006 = vmatprep.subr.bf16.mxu0 0
  %1007 = vmatpush2.bf16.msra.mxu0 0
  %1008 = vmatprep.subr.bf16.mxu0 0
  %1009 = vmatpush2.bf16.msra.mxu0 0
  %1010 = vmatprep.subr.bf16.mxu0 0
  %1011 = vmatpush2.bf16.msra.mxu0 0
  %1012 = vmatprep.subr.bf16.mxu0 0
  %1013 = vmatpush2.bf16.msra.mxu0 0
  %1014 = vmatprep.subr.bf16.mxu0 0
  %1015 = vmatpush2.bf16.msra.mxu0 0
  %1016 = vmatprep.mubr.bf16.mxu0 0
  %1017 = vmatmul.mubr.bf16.gmra.mxu0 %v250
  %v1018 = vpop.f32.mrf.mxu0
  %v1019 = vadd.f32 %v958, %v1018
  %v1020 = vpop.f32.mrf.mxu0
  %v1021 = vpop.f32.mrf.mxu0
  %v1022 = vadd.f32 %v958, %v1021
  %v1023 = vpop.f32.mrf.mxu0
  %1024 = vmatprep.mubr.bf16.mxu0 0
  %1025 = vmatmul.mubr.bf16.gmra.mxu0 %v253
  %v1026 = vpop.f32.mrf.mxu0
  %v1027 = vadd.f32 %v958, %v1026
  %v1028 = vpop.f32.mrf.mxu0
  %v1029 = vpop.f32.mrf.mxu0
  %v1030 = vadd.f32 %v958, %v1029
  %v1031 = vpop.f32.mrf.mxu0
  %1032 = vmatprep.mubr.bf16.mxu0 0
  %1033 = vmatmul.mubr.bf16.gmra.mxu0 %v256
  %v1034 = vpop.f32.mrf.mxu0
  %v1035 = vadd.f32 %v958, %v1034
  %v1036 = vpop.f32.mrf.mxu0
  %v1037 = vpop.f32.mrf.mxu0
  %v1038 = vadd.f32 %v958, %v1037
  %v1039 = vpop.f32.mrf.mxu0
  %1040 = vdwg.mxu0
  %v1041 = vpack.c.bf16 %v826, %v823
  %v1042 = vpack.c.bf16 %v834, %v831
  %v1043 = vpack.c.bf16 %v842, %v839
  %v1044 = vpack.c.bf16 %v924, %v921
  %v1045 = vpack.c.bf16 %v932, %v929
  %v1046 = vpack.c.bf16 %v940, %v937
  %v1048 = vsel %vm513, %v1041, 0
  %v1051 = vsel %vm513, %v1042, 0
  %v1054 = vsel %vm513, %v1043, 0
  %v1057 = vsel %vm513, %v1044, 0
  %v1060 = vsel %vm513, %v1045, 0
  %v1063 = vsel %vm513, %v1046, 0
  %1065 = vmatprep.subr.bf16.mxu0 0
  %1066 = vmatpush1.bf16.xpose.msra.mxu0 0
  %1067 = vmatprep.subr.bf16.mxu0 0
  %1068 = vmatpush1.bf16.xpose.msra.mxu0 0
  %1069 = vmatprep.subr.bf16.mxu0 0
  %1070 = vmatpush1.bf16.xpose.msra.mxu0 0
  %1071 = vmatprep.subr.bf16.mxu0 0
  %1072 = vmatpush1.bf16.xpose.msra.mxu0 0
  %1073 = vmatprep.subr.bf16.mxu0 0
  %1074 = vmatpush1.bf16.xpose.msra.mxu0 0
  %1075 = vmatprep.subr.bf16.mxu0 0
  %1076 = vmatpush1.bf16.xpose.msra.mxu0 %v1063
  %1077 = vmatprep.subr.bf16.mxu0 0
  %1078 = vmatpush1.bf16.xpose.msra.mxu0 %v1060
  %1079 = vmatprep.subr.bf16.mxu0 0
  %1080 = vmatpush1.bf16.xpose.msra.mxu0 %v1057
  %1081 = vmatprep.subr.bf16.mxu0 0
  %1082 = vmatpush2.bf16.xpose.msra.mxu0 0
  %1083 = vmatprep.subr.bf16.mxu0 0
  %1084 = vmatpush2.bf16.xpose.msra.mxu0 0
  %1085 = vmatprep.subr.bf16.mxu0 0
  %1086 = vmatpush2.bf16.xpose.msra.mxu0 0
  %1087 = vmatprep.subr.bf16.mxu0 0
  %1088 = vmatpush2.bf16.xpose.msra.mxu0 0
  %1089 = vmatprep.subr.bf16.mxu0 0
  %1090 = vmatpush2.bf16.xpose.msra.mxu0 0
  %1091 = vmatprep.subr.bf16.mxu0 0
  %1092 = vmatpush2.bf16.xpose.msra.mxu0 0
  %1093 = vmatprep.subr.bf16.mxu0 0
  %1094 = vmatpush2.bf16.xpose.msra.mxu0 0
  %1095 = vmatprep.subr.bf16.mxu0 0
  %1096 = vmatpush2.bf16.xpose.msra.mxu0 0
  %1097 = vmatprep.mubr.bf16.mxu0 0
  %1098 = vmatmul.mubr.bf16.gmra.mxu0 %v1048
  %v1099 = vpop.f32.mrf.mxu0
  %v1100 = vadd.f32 0.0, %v1099
  %v1101 = vpop.f32.mrf.mxu0
  %v1102 = vpop.f32.mrf.mxu0
  %v1103 = vadd.f32 0.0, %v1102
  %v1104 = vpop.f32.mrf.mxu0
  %1105 = vmatprep.mubr.bf16.mxu0 0
  %1106 = vmatmul.mubr.bf16.gmra.mxu0 %v1051
  %v1107 = vpop.f32.mrf.mxu0
  %v1108 = vadd.f32 0.0, %v1107
  %v1109 = vpop.f32.mrf.mxu0
  %v1110 = vpop.f32.mrf.mxu0
  %v1111 = vadd.f32 0.0, %v1110
  %v1112 = vpop.f32.mrf.mxu0
  %1113 = vmatprep.mubr.bf16.mxu0 0
  %1114 = vmatmul.mubr.bf16.gmra.mxu0 %v1054
  %v1115 = vpop.f32.mrf.mxu0
  %v1116 = vadd.f32 0.0, %v1115
  %v1117 = vpop.f32.mrf.mxu0
  %v1118 = vpop.f32.mrf.mxu0
  %v1119 = vadd.f32 0.0, %v1118
  %v1120 = vpop.f32.mrf.mxu0
  %1121 = vdwg.mxu0
  %v1122 = vmul.f32 %v1100, 0.17677669
  %v1123 = vmul.f32 %v1103, 0.17677669
  %v1124 = vmul.f32 %v1108, 0.17677669
  %v1125 = vmul.f32 %v1111, 0.17677669
  %v1126 = vmul.f32 %v1116, 0.17677669
  %v1127 = vmul.f32 %v1119, 0.17677669
  %v1128 = vadd.f32 %v1122, %v83
  %v1129 = vadd.f32 %v1123, %v84
  %v1130 = vadd.f32 %v1124, %v85
  %v1131 = vadd.f32 %v1125, %v86
  %v1132 = vadd.f32 %v1126, %v87
  %v1133 = vadd.f32 %v1127, %v88
  %v1134 = vsel %vm601, %v1128, -inf
  %1135 = vmax.xlane.f32.xlu0 %v1134
  %v1136 = vpop.xlane.xlu0 %1135
  %v1137 = vsel %vm601, %v1129, -inf
  %1138 = vmax.xlane.f32.xlu0 %v1137
  %v1139 = vpop.xlane.xlu0 %1138
  %v1140 = vsel %vm601, %v1130, -inf
  %1141 = vmax.xlane.f32.xlu0 %v1140
  %v1142 = vpop.xlane.xlu0 %1141
  %v1143 = vsel %vm601, %v1131, -inf
  %1144 = vmax.xlane.f32.xlu0 %v1143
  %v1145 = vpop.xlane.xlu0 %1144
  %v1146 = vsel %vm601, %v1132, -inf
  %1147 = vmax.xlane.f32.xlu0 %v1146
  %v1148 = vpop.xlane.xlu0 %1147
  %v1149 = vsel %vm601, %v1133, -inf
  %1150 = vmax.xlane.f32.xlu0 %v1149
  %v1151 = vpop.xlane.xlu0 %1150
  %v1152 = vsub.f32 %v1128, %v1136
  %v1153 = vsub.f32 %v1129, %v1139
  %v1154 = vsub.f32 %v1130, %v1142
  %v1155 = vsub.f32 %v1131, %v1145
  %v1156 = vsub.f32 %v1132, %v1148
  %v1157 = vsub.f32 %v1133, %v1151
  %v1158 = vmul.f32 %v1152, 1.442695
  %v1159 = vpow.pop %v1158
  %v1160 = vmul.f32 %v1153, 1.442695
  %v1161 = vpow.pop %v1160
  %v1162 = vmul.f32 %v1154, 1.442695
  %v1163 = vpow.pop %v1162
  %v1164 = vmul.f32 %v1155, 1.442695
  %v1165 = vpow.pop %v1164
  %v1166 = vmul.f32 %v1156, 1.442695
  %v1167 = vpow.pop %v1166
  %v1168 = vmul.f32 %v1157, 1.442695
  %v1169 = vpow.pop %v1168
  %v1170 = vsel %vm601, %v1159, 0.0
  %1171 = vadd.xlane.f32.xlu0 %v1170
  %v1172 = vpop.xlane.xlu0 %1171
  %v1173 = vsel %vm601, %v1161, 0.0
  %1174 = vadd.xlane.f32.xlu0 %v1173
  %v1175 = vpop.xlane.xlu0 %1174
  %v1176 = vsel %vm601, %v1163, 0.0
  %1177 = vadd.xlane.f32.xlu0 %v1176
  %v1178 = vpop.xlane.xlu0 %1177
  %v1179 = vsel %vm601, %v1165, 0.0
  %1180 = vadd.xlane.f32.xlu0 %v1179
  %v1181 = vpop.xlane.xlu0 %1180
  %v1182 = vsel %vm601, %v1167, 0.0
  %1183 = vadd.xlane.f32.xlu0 %v1182
  %v1184 = vpop.xlane.xlu0 %1183
  %v1185 = vsel %vm601, %v1169, 0.0
  %1186 = vadd.xlane.f32.xlu0 %v1185
  %v1187 = vpop.xlane.xlu0 %1186
  %v1188 = vrcp.pop %v1172
  %v1189 = vrcp.pop %v1175
  %v1190 = vrcp.pop %v1178
  %v1191 = vrcp.pop %v1181
  %v1192 = vrcp.pop %v1184
  %v1193 = vrcp.pop %v1187
  %v1194 = vmul.f32 %v1159, %v1188
  %v1195 = vmul.f32 %v1161, %v1189
  %v1196 = vmul.f32 %v1163, %v1190
  %v1197 = vmul.f32 %v1165, %v1191
  %v1198 = vmul.f32 %v1167, %v1192
  %v1199 = vmul.f32 %v1169, %v1193
  %v1200 = vpack.c.bf16 %v1195, %v1194
  %v1201 = vpack.c.bf16 %v1197, %v1196
  %v1202 = vpack.c.bf16 %v1199, %v1198
  %v1203 = vpack.c.bf16 %v1022, %v1019
  %v1204 = vpack.c.bf16 %v1030, %v1027
  %v1205 = vpack.c.bf16 %v1038, %v1035
  %v1207 = vsel %vm601, %v1200, 0
  %v1210 = vsel %vm601, %v1201, 0
  %v1213 = vsel %vm601, %v1202, 0
  %1215 = vmatprep.subr.bf16.mxu0 0
  %1216 = vmatpush1.bf16.msra.mxu0 0
  %1217 = vmatprep.subr.bf16.mxu0 0
  %1218 = vmatpush1.bf16.msra.mxu0 0
  %1219 = vmatprep.subr.bf16.mxu0 0
  %1220 = vmatpush1.bf16.msra.mxu0 0
  %1221 = vmatprep.subr.bf16.mxu0 0
  %1222 = vmatpush1.bf16.msra.mxu0 0
  %1223 = vmatprep.subr.bf16.mxu0 0
  %1224 = vmatpush1.bf16.msra.mxu0 0
  %1225 = vmatprep.subr.bf16.mxu0 0
  %1226 = vmatpush1.bf16.msra.mxu0 %v1205
  %1227 = vmatprep.subr.bf16.mxu0 0
  %1228 = vmatpush1.bf16.msra.mxu0 %v1204
  %1229 = vmatprep.subr.bf16.mxu0 0
  %1230 = vmatpush1.bf16.msra.mxu0 %v1203
  %1231 = vmatprep.subr.bf16.mxu0 0
  %1232 = vmatpush2.bf16.msra.mxu0 0
  %1233 = vmatprep.subr.bf16.mxu0 0
  %1234 = vmatpush2.bf16.msra.mxu0 0
  %1235 = vmatprep.subr.bf16.mxu0 0
  %1236 = vmatpush2.bf16.msra.mxu0 0
  %1237 = vmatprep.subr.bf16.mxu0 0
  %1238 = vmatpush2.bf16.msra.mxu0 0
  %1239 = vmatprep.subr.bf16.mxu0 0
  %1240 = vmatpush2.bf16.msra.mxu0 0
  %1241 = vmatprep.subr.bf16.mxu0 0
  %1242 = vmatpush2.bf16.msra.mxu0 0
  %1243 = vmatprep.subr.bf16.mxu0 0
  %1244 = vmatpush2.bf16.msra.mxu0 0
  %1245 = vmatprep.subr.bf16.mxu0 0
  %1246 = vmatpush2.bf16.msra.mxu0 0
  %1247 = vmatprep.mubr.bf16.mxu0 0
  %1248 = vmatmul.mubr.bf16.gmra.mxu0 %v1207
  %v1249 = vpop.f32.mrf.mxu0
  %v1250 = vadd.f32 0.0, %v1249
  %v1251 = vpop.f32.mrf.mxu0
  %v1252 = vpop.f32.mrf.mxu0
  %v1253 = vadd.f32 0.0, %v1252
  %v1254 = vpop.f32.mrf.mxu0
  %1255 = vmatprep.mubr.bf16.mxu0 0
  %1256 = vmatmul.mubr.bf16.gmra.mxu0 %v1210
  %v1257 = vpop.f32.mrf.mxu0
  %v1258 = vadd.f32 0.0, %v1257
  %v1259 = vpop.f32.mrf.mxu0
  %v1260 = vpop.f32.mrf.mxu0
  %v1261 = vadd.f32 0.0, %v1260
  %v1262 = vpop.f32.mrf.mxu0
  %1263 = vmatprep.mubr.bf16.mxu0 0
  %1264 = vmatmul.mubr.bf16.gmra.mxu0 %v1213
  %v1265 = vpop.f32.mrf.mxu0
  %v1266 = vadd.f32 0.0, %v1265
  %v1267 = vpop.f32.mrf.mxu0
  %v1268 = vpop.f32.mrf.mxu0
  %v1269 = vadd.f32 0.0, %v1268
  %v1270 = vpop.f32.mrf.mxu0
  %1271 = vdwg.mxu0
  %v1272 = vpack.c.bf16 %v1253, %v1250
  %v1273 = vpack.c.bf16 %v1261, %v1258
  %v1274 = vpack.c.bf16 %v1269, %v1266
  %s1275 = scalar_lea.vmem %s10, 16
  %v1276 = vld [vmem:[%s1275] sm:$0xf]
  %v1277 = vld [vmem:[%s1275 + $0x4] sm:$0xf]
  %v1278 = vld [vmem:[%s1275 + $0x8] sm:$0xf]
  %v1279 = vld [vmem:[%s1275 + $0xc] sm:$0xf]
  %v1284 = vunpack.c.l.b16 %v1276
  %v1285 = vunpack.c.l.b16 %v1277
  %v1286 = vunpack.c.l.b16 %v1278
  %v1287 = vunpack.c.l.b16 %v1279
  %v1288 = vpack.c.b16 %v1285, %v1284
  %v1289 = vpack.c.b16 %v1287, %v1286
  %v1293 = vsel %vm513, %v1272, 0
  %v1296 = vsel %vm513, %v1273, 0
  %v1299 = vsel %vm513, %v1274, 0
  %1301 = vmatprep.subr.bf16.mxu0 0
  %1302 = vmatpush1.bf16.msra.mxu0 0
  %1303 = vmatprep.subr.bf16.mxu0 0
  %1304 = vmatpush1.bf16.msra.mxu0 0
  %1305 = vmatprep.subr.bf16.mxu0 0
  %1306 = vmatpush1.bf16.msra.mxu0 0
  %1307 = vmatprep.subr.bf16.mxu0 0
  %1308 = vmatpush1.bf16.msra.mxu0 0
  %1309 = vmatprep.subr.bf16.mxu0 0
  %1310 = vmatpush1.bf16.msra.mxu0 0
  %1311 = vmatprep.subr.bf16.mxu0 0
  %1312 = vmatpush1.bf16.msra.mxu0 0
  %1313 = vmatprep.subr.bf16.mxu0 0
  %1314 = vmatpush1.bf16.msra.mxu0 %v1289
  %1315 = vmatprep.subr.bf16.mxu0 0
  %1316 = vmatpush1.bf16.msra.mxu0 %v1288
  %1317 = vmatprep.subr.bf16.mxu0 0
  %1318 = vmatpush2.bf16.msra.mxu0 0
  %1319 = vmatprep.subr.bf16.mxu0 0
  %1320 = vmatpush2.bf16.msra.mxu0 0
  %1321 = vmatprep.subr.bf16.mxu0 0
  %1322 = vmatpush2.bf16.msra.mxu0 0
  %1323 = vmatprep.subr.bf16.mxu0 0
  %1324 = vmatpush2.bf16.msra.mxu0 0
  %1325 = vmatprep.subr.bf16.mxu0 0
  %1326 = vmatpush2.bf16.msra.mxu0 0
  %1327 = vmatprep.subr.bf16.mxu0 0
  %1328 = vmatpush2.bf16.msra.mxu0 0
  %1329 = vmatprep.subr.bf16.mxu0 0
  %1330 = vmatpush2.bf16.msra.mxu0 0
  %1331 = vmatprep.subr.bf16.mxu0 0
  %1332 = vmatpush2.bf16.msra.mxu0 0
  %1333 = vmatprep.mubr.bf16.mxu0 0
  %1334 = vmatmul.mubr.bf16.gmra.mxu0 %v1293
  %v1335 = vpop.f32.mrf.mxu0
  %v1336 = vadd.f32 0.0, %v1335
  %v1337 = vpop.f32.mrf.mxu0
  %v1338 = vpop.f32.mrf.mxu0
  %v1339 = vadd.f32 0.0, %v1338
  %v1340 = vpop.f32.mrf.mxu0
  %1341 = vmatprep.mubr.bf16.mxu0 0
  %1342 = vmatmul.mubr.bf16.gmra.mxu0 %v1296
  %v1343 = vpop.f32.mrf.mxu0
  %v1344 = vadd.f32 0.0, %v1343
  %v1345 = vpop.f32.mrf.mxu0
  %v1346 = vpop.f32.mrf.mxu0
  %v1347 = vadd.f32 0.0, %v1346
  %v1348 = vpop.f32.mrf.mxu0
  %1349 = vmatprep.mubr.bf16.mxu0 0
  %1350 = vmatmul.mubr.bf16.gmra.mxu0 %v1299
  %v1351 = vpop.f32.mrf.mxu0
  %v1352 = vadd.f32 0.0, %v1351
  %v1353 = vpop.f32.mrf.mxu0
  %v1354 = vpop.f32.mrf.mxu0
  %v1355 = vadd.f32 0.0, %v1354
  %v1356 = vpop.f32.mrf.mxu0
  %1357 = vdwg.mxu0
  %v1362 = vunpack.c.l.b16 %v743
  %v1363 = vunpack.c.l.b16 %v744
  %v1364 = vunpack.c.l.b16 %v745
  %v1365 = vunpack.c.l.b16 %v746
  %v1366 = vpack.c.b16 %v1363, %v1362
  %v1367 = vpack.c.b16 %v1365, %v1364
  %v1371 = vsel %vm513, %v740, 0
  %v1374 = vsel %vm513, %v741, 0
  %v1377 = vsel %vm513, %v742, 0
  %1379 = vmatprep.subr.bf16.mxu0 0
  %1380 = vmatpush1.bf16.msra.mxu0 0
  %1381 = vmatprep.subr.bf16.mxu0 0
  %1382 = vmatpush1.bf16.msra.mxu0 0
  %1383 = vmatprep.subr.bf16.mxu0 0
  %1384 = vmatpush1.bf16.msra.mxu0 0
  %1385 = vmatprep.subr.bf16.mxu0 0
  %1386 = vmatpush1.bf16.msra.mxu0 0
  %1387 = vmatprep.subr.bf16.mxu0 0
  %1388 = vmatpush1.bf16.msra.mxu0 0
  %1389 = vmatprep.subr.bf16.mxu0 0
  %1390 = vmatpush1.bf16.msra.mxu0 0
  %1391 = vmatprep.subr.bf16.mxu0 0
  %1392 = vmatpush1.bf16.msra.mxu0 %v1367
  %1393 = vmatprep.subr.bf16.mxu0 0
  %1394 = vmatpush1.bf16.msra.mxu0 %v1366
  %1395 = vmatprep.subr.bf16.mxu0 0
  %1396 = vmatpush2.bf16.msra.mxu0 0
  %1397 = vmatprep.subr.bf16.mxu0 0
  %1398 = vmatpush2.bf16.msra.mxu0 0
  %1399 = vmatprep.subr.bf16.mxu0 0
  %1400 = vmatpush2.bf16.msra.mxu0 0
  %1401 = vmatprep.subr.bf16.mxu0 0
  %1402 = vmatpush2.bf16.msra.mxu0 0
  %1403 = vmatprep.subr.bf16.mxu0 0
  %1404 = vmatpush2.bf16.msra.mxu0 0
  %1405 = vmatprep.subr.bf16.mxu0 0
  %1406 = vmatpush2.bf16.msra.mxu0 0
  %1407 = vmatprep.subr.bf16.mxu0 0
  %1408 = vmatpush2.bf16.msra.mxu0 0
  %1409 = vmatprep.subr.bf16.mxu0 0
  %1410 = vmatpush2.bf16.msra.mxu0 0
  %1411 = vmatprep.mubr.bf16.mxu0 0
  %1412 = vmatmul.mubr.bf16.gmra.mxu0 %v1371
  %v1413 = vpop.f32.mrf.mxu0
  %v1414 = vadd.f32 %v1336, %v1413
  %v1415 = vpop.f32.mrf.mxu0
  %v1416 = vpop.f32.mrf.mxu0
  %v1417 = vadd.f32 %v1339, %v1416
  %v1418 = vpop.f32.mrf.mxu0
  %1419 = vmatprep.mubr.bf16.mxu0 0
  %1420 = vmatmul.mubr.bf16.gmra.mxu0 %v1374
  %v1421 = vpop.f32.mrf.mxu0
  %v1422 = vadd.f32 %v1344, %v1421
  %v1423 = vpop.f32.mrf.mxu0
  %v1424 = vpop.f32.mrf.mxu0
  %v1425 = vadd.f32 %v1347, %v1424
  %v1426 = vpop.f32.mrf.mxu0
  %1427 = vmatprep.mubr.bf16.mxu0 0
  %1428 = vmatmul.mubr.bf16.gmra.mxu0 %v1377
  %v1429 = vpop.f32.mrf.mxu0
  %v1430 = vadd.f32 %v1352, %v1429
  %v1431 = vpop.f32.mrf.mxu0
  %v1432 = vpop.f32.mrf.mxu0
  %v1433 = vadd.f32 %v1355, %v1432
  %v1434 = vpop.f32.mrf.mxu0
  %1435 = vdwg.mxu0
  %v1436 = vadd.f32 %v77, %v1414
  %v1437 = vadd.f32 %v78, %v1417
  %v1438 = vadd.f32 %v79, %v1422
  %v1439 = vadd.f32 %v80, %v1425
  %v1440 = vadd.f32 %v81, %v1430
  %v1441 = vadd.f32 %v82, %v1433
  %v1442 = vld [vmem:[%s11] sm:$0x1]
  %v1444 = vlaneseq
  %v1445 = vshrl.u32 %v1444, 7
  %v1446 = vsub.s32 0, %v1445
  %v1447 = vrot.slane %v1442, %v1446
  %v1449 = vadd.f32 %v1436, %v1447
  %v1450 = vadd.f32 %v1437, %v1447
  %v1451 = vadd.f32 %v1438, %v1447
  %v1452 = vadd.f32 %v1439, %v1447
  %v1453 = vadd.f32 %v1440, %v1447
  %v1454 = vadd.f32 %v1441, %v1447
  %v1455 = vld [vmem:[%s12] sm:$0x1]
  %v1456 = vld [vmem:[%s13] sm:$0x1]
  %v1457 = vsel %vm91, %v1449, 0.0
  %1458 = vadd.xlane.f32.xlu0 %v1457
  %v1459 = vpop.xlane.xlu0 %1458
  %v1460 = vsel %vm91, %v1450, 0.0
  %1461 = vadd.xlane.f32.xlu0 %v1460
  %v1462 = vpop.xlane.xlu0 %1461
  %v1463 = vsel %vm91, %v1451, 0.0
  %1464 = vadd.xlane.f32.xlu0 %v1463
  %v1465 = vpop.xlane.xlu0 %1464
  %v1466 = vsel %vm91, %v1452, 0.0
  %1467 = vadd.xlane.f32.xlu0 %v1466
  %v1468 = vpop.xlane.xlu0 %1467
  %v1469 = vsel %vm91, %v1453, 0.0
  %1470 = vadd.xlane.f32.xlu0 %v1469
  %v1471 = vpop.xlane.xlu0 %1470
  %v1472 = vsel %vm91, %v1454, 0.0
  %1473 = vadd.xlane.f32.xlu0 %v1472
  %v1474 = vpop.xlane.xlu0 %1473
  %v1475 = vmul.f32 %v1459, %v110
  %v1476 = vmul.f32 %v1462, %v110
  %v1477 = vmul.f32 %v1465, %v110
  %v1478 = vmul.f32 %v1468, %v110
  %v1479 = vmul.f32 %v1471, %v110
  %v1480 = vmul.f32 %v1474, %v110
  %v1481 = vmul.f32 %v1449, %v1449
  %v1482 = vmul.f32 %v1450, %v1450
  %v1483 = vmul.f32 %v1451, %v1451
  %v1484 = vmul.f32 %v1452, %v1452
  %v1485 = vmul.f32 %v1453, %v1453
  %v1486 = vmul.f32 %v1454, %v1454
  %v1487 = vsel %vm91, %v1481, 0.0
  %1488 = vadd.xlane.f32.xlu0 %v1487
  %v1489 = vpop.xlane.xlu0 %1488
  %v1490 = vsel %vm91, %v1482, 0.0
  %1491 = vadd.xlane.f32.xlu0 %v1490
  %v1492 = vpop.xlane.xlu0 %1491
  %v1493 = vsel %vm91, %v1483, 0.0
  %1494 = vadd.xlane.f32.xlu0 %v1493
  %v1495 = vpop.xlane.xlu0 %1494
  %v1496 = vsel %vm91, %v1484, 0.0
  %1497 = vadd.xlane.f32.xlu0 %v1496
  %v1498 = vpop.xlane.xlu0 %1497
  %v1499 = vsel %vm91, %v1485, 0.0
  %1500 = vadd.xlane.f32.xlu0 %v1499
  %v1501 = vpop.xlane.xlu0 %1500
  %v1502 = vsel %vm91, %v1486, 0.0
  %1503 = vadd.xlane.f32.xlu0 %v1502
  %v1504 = vpop.xlane.xlu0 %1503
  %v1505 = vmul.f32 %v1489, %v110
  %v1506 = vmul.f32 %v1492, %v110
  %v1507 = vmul.f32 %v1495, %v110
  %v1508 = vmul.f32 %v1498, %v110
  %v1509 = vmul.f32 %v1501, %v110
  %v1510 = vmul.f32 %v1504, %v110
  %v1511 = vmul.f32 %v1475, %v1475
  %v1512 = vmul.f32 %v1476, %v1476
  %v1513 = vmul.f32 %v1477, %v1477
  %v1514 = vmul.f32 %v1478, %v1478
  %v1515 = vmul.f32 %v1479, %v1479
  %v1516 = vmul.f32 %v1480, %v1480
  %v1517 = vsub.f32 %v1505, %v1511
  %v1518 = vsub.f32 %v1506, %v1512
  %v1519 = vsub.f32 %v1507, %v1513
  %v1520 = vsub.f32 %v1508, %v1514
  %v1521 = vsub.f32 %v1509, %v1515
  %v1522 = vsub.f32 %v1510, %v1516
  %v1523 = vsub.f32 %v1449, %v1475
  %v1524 = vsub.f32 %v1450, %v1476
  %v1525 = vsub.f32 %v1451, %v1477
  %v1526 = vsub.f32 %v1452, %v1478
  %v1527 = vsub.f32 %v1453, %v1479
  %v1528 = vsub.f32 %v1454, %v1480
  %v1529 = vadd.f32 %v1517, 1e-05
  %v1530 = vadd.f32 %v1518, 1e-05
  %v1531 = vadd.f32 %v1519, 1e-05
  %v1532 = vadd.f32 %v1520, 1e-05
  %v1533 = vadd.f32 %v1521, 1e-05
  %v1534 = vadd.f32 %v1522, 1e-05
  %v1535 = vrsqrt.pop %v1529
  %v1536 = vrsqrt.pop %v1530
  %v1537 = vrsqrt.pop %v1531
  %v1538 = vrsqrt.pop %v1532
  %v1539 = vrsqrt.pop %v1533
  %v1540 = vrsqrt.pop %v1534
  %v1541 = vmul.f32 %v1523, %v1535
  %v1542 = vmul.f32 %v1524, %v1536
  %v1543 = vmul.f32 %v1525, %v1537
  %v1544 = vmul.f32 %v1526, %v1538
  %v1545 = vmul.f32 %v1527, %v1539
  %v1546 = vmul.f32 %v1528, %v1540
  %v1548 = vlaneseq
  %v1549 = vshrl.u32 %v1548, 7
  %v1550 = vsub.s32 0, %v1549
  %v1551 = vrot.slane %v1455, %v1550
  %v1553 = vmul.f32 %v1541, %v1551
  %v1554 = vmul.f32 %v1542, %v1551
  %v1555 = vmul.f32 %v1543, %v1551
  %v1556 = vmul.f32 %v1544, %v1551
  %v1557 = vmul.f32 %v1545, %v1551
  %v1558 = vmul.f32 %v1546, %v1551
  %v1560 = vlaneseq
  %v1561 = vshrl.u32 %v1560, 7
  %v1562 = vsub.s32 0, %v1561
  %v1563 = vrot.slane %v1456, %v1562
  %v1565 = vadd.f32 %v1553, %v1563
  %v1566 = vadd.f32 %v1554, %v1563
  %v1567 = vadd.f32 %v1555, %v1563
  %v1568 = vadd.f32 %v1556, %v1563
  %v1569 = vadd.f32 %v1557, %v1563
  %v1570 = vadd.f32 %v1558, %v1563
  %v1571 = vpack.c.bf16 %v1566, %v1565
  %v1572 = vpack.c.bf16 %v1568, %v1567
  %v1573 = vpack.c.bf16 %v1570, %v1569
  %v1574 = vld [vmem:[%s14] sm:$0xff]
  %v1575 = vld [vmem:[%s14 + $0x8] sm:$0xff]
  %v1576 = vld [vmem:[%s14 + $0x10] sm:$0xff]
  %v1577 = vld [vmem:[%s14 + $0x18] sm:$0xff]
  %v1578 = vld [vmem:[%s14 + $0x20] sm:$0xff]
  %v1579 = vld [vmem:[%s14 + $0x28] sm:$0xff]
  %v1580 = vld [vmem:[%s14 + $0x30] sm:$0xff]
  %v1581 = vld [vmem:[%s14 + $0x38] sm:$0xff]
  %v1582 = vld [vmem:[%s15] sm:$0x3]
  %v1584 = vlaneseq
  %v1585 = vshrl.u32 %v1584, 7
  %v1586 = vsub.s32 0, %v1585
  %v1587 = vrot.slane %v1582, %v1586
  %v1588 = vlaneseq
  %v1589 = vshrl.u32 %v1588, 7
  %v1590 = vsub.s32 1, %v1589
  %v1591 = vrot.slane %v1582, %v1590
  %v1602 = vunpack.c.l.b16 %v1574
  %v1603 = vunpack.c.h.b16 %v1574
  %v1604 = vunpack.c.l.b16 %v1575
  %v1605 = vunpack.c.h.b16 %v1575
  %v1606 = vunpack.c.l.b16 %v1576
  %v1607 = vunpack.c.h.b16 %v1576
  %v1608 = vunpack.c.l.b16 %v1577
  %v1609 = vunpack.c.h.b16 %v1577
  %v1610 = vunpack.c.l.b16 %v1578
  %v1611 = vunpack.c.h.b16 %v1578
  %v1612 = vunpack.c.l.b16 %v1579
  %v1613 = vunpack.c.h.b16 %v1579
  %v1614 = vunpack.c.l.b16 %v1580
  %v1615 = vunpack.c.h.b16 %v1580
  %v1616 = vunpack.c.l.b16 %v1581
  %v1617 = vunpack.c.h.b16 %v1581
  %v1618 = vpack.c.b16 %v1604, %v1602
  %v1619 = vpack.c.b16 %v1605, %v1603
  %v1620 = vpack.c.b16 %v1608, %v1606
  %v1621 = vpack.c.b16 %v1609, %v1607
  %v1622 = vpack.c.b16 %v1612, %v1610
  %v1623 = vpack.c.b16 %v1613, %v1611
  %v1624 = vpack.c.b16 %v1616, %v1614
  %v1625 = vpack.c.b16 %v1617, %v1615
  %v1635 = vsel %vm91, %v1571, 0
  %v1638 = vsel %vm91, %v1572, 0
  %v1641 = vsel %vm91, %v1573, 0
  %1643 = vmatprep.subr.bf16.mxu0 0
  %1644 = vmatpush1.bf16.msra.mxu0 0
  %1645 = vmatprep.subr.bf16.mxu0 0
  %1646 = vmatpush1.bf16.msra.mxu0 0
  %1647 = vmatprep.subr.bf16.mxu0 0
  %1648 = vmatpush1.bf16.msra.mxu0 0
  %1649 = vmatprep.subr.bf16.mxu0 0
  %1650 = vmatpush1.bf16.msra.mxu0 0
  %1651 = vmatprep.subr.bf16.mxu0 %v1625
  %1652 = vmatpush1.bf16.msra.mxu0 %v1624
  %1653 = vmatprep.subr.bf16.mxu0 %v1623
  %1654 = vmatpush1.bf16.msra.mxu0 %v1622
  %1655 = vmatprep.subr.bf16.mxu0 %v1621
  %1656 = vmatpush1.bf16.msra.mxu0 %v1620
  %1657 = vmatprep.subr.bf16.mxu0 %v1619
  %1658 = vmatpush1.bf16.msra.mxu0 %v1618
  %1659 = vmatprep.subr.bf16.mxu0 0
  %1660 = vmatpush2.bf16.msra.mxu0 0
  %1661 = vmatprep.subr.bf16.mxu0 0
  %1662 = vmatpush2.bf16.msra.mxu0 0
  %1663 = vmatprep.subr.bf16.mxu0 0
  %1664 = vmatpush2.bf16.msra.mxu0 0
  %1665 = vmatprep.subr.bf16.mxu0 0
  %1666 = vmatpush2.bf16.msra.mxu0 0
  %1667 = vmatprep.subr.bf16.mxu0 0
  %1668 = vmatpush2.bf16.msra.mxu0 0
  %1669 = vmatprep.subr.bf16.mxu0 0
  %1670 = vmatpush2.bf16.msra.mxu0 0
  %1671 = vmatprep.subr.bf16.mxu0 0
  %1672 = vmatpush2.bf16.msra.mxu0 0
  %1673 = vmatprep.subr.bf16.mxu0 0
  %1674 = vmatpush2.bf16.msra.mxu0 0
  %1675 = vmatprep.mubr.bf16.mxu0 0
  %1676 = vmatmul.mubr.bf16.gmra.mxu0 %v1635
  %v1677 = vpop.f32.mrf.mxu0
  %v1678 = vadd.f32 %v1587, %v1677
  %v1679 = vpop.f32.mrf.mxu0
  %v1680 = vadd.f32 %v1591, %v1679
  %v1681 = vpop.f32.mrf.mxu0
  %v1682 = vadd.f32 %v1587, %v1681
  %v1683 = vpop.f32.mrf.mxu0
  %v1684 = vadd.f32 %v1591, %v1683
  %1685 = vmatprep.mubr.bf16.mxu0 0
  %1686 = vmatmul.mubr.bf16.gmra.mxu0 %v1638
  %v1687 = vpop.f32.mrf.mxu0
  %v1688 = vadd.f32 %v1587, %v1687
  %v1689 = vpop.f32.mrf.mxu0
  %v1690 = vadd.f32 %v1591, %v1689
  %v1691 = vpop.f32.mrf.mxu0
  %v1692 = vadd.f32 %v1587, %v1691
  %v1693 = vpop.f32.mrf.mxu0
  %v1694 = vadd.f32 %v1591, %v1693
  %1695 = vmatprep.mubr.bf16.mxu0 0
  %1696 = vmatmul.mubr.bf16.gmra.mxu0 %v1641
  %v1697 = vpop.f32.mrf.mxu0
  %v1698 = vadd.f32 %v1587, %v1697
  %v1699 = vpop.f32.mrf.mxu0
  %v1700 = vadd.f32 %v1591, %v1699
  %v1701 = vpop.f32.mrf.mxu0
  %v1702 = vadd.f32 %v1587, %v1701
  %v1703 = vpop.f32.mrf.mxu0
  %v1704 = vadd.f32 %v1591, %v1703
  %1705 = vdwg.mxu0
  %v1706 = vmul.f32 %v1678, 0.5
  %v1707 = vmul.f32 %v1680, 0.5
  %v1708 = vmul.f32 %v1682, 0.5
  %v1709 = vmul.f32 %v1684, 0.5
  %v1710 = vmul.f32 %v1688, 0.5
  %v1711 = vmul.f32 %v1690, 0.5
  %v1712 = vmul.f32 %v1692, 0.5
  %v1713 = vmul.f32 %v1694, 0.5
  %v1714 = vmul.f32 %v1698, 0.5
  %v1715 = vmul.f32 %v1700, 0.5
  %v1716 = vmul.f32 %v1702, 0.5
  %v1717 = vmul.f32 %v1704, 0.5
  %v1718 = vmul.f32 %v1678, 0.044715
  %v1719 = vmul.f32 %v1680, 0.044715
  %v1720 = vmul.f32 %v1682, 0.044715
  %v1721 = vmul.f32 %v1684, 0.044715
  %v1722 = vmul.f32 %v1688, 0.044715
  %v1723 = vmul.f32 %v1690, 0.044715
  %v1724 = vmul.f32 %v1692, 0.044715
  %v1725 = vmul.f32 %v1694, 0.044715
  %v1726 = vmul.f32 %v1698, 0.044715
  %v1727 = vmul.f32 %v1700, 0.044715
  %v1728 = vmul.f32 %v1702, 0.044715
  %v1729 = vmul.f32 %v1704, 0.044715
  %v1730 = vmul.f32 %v1718, %v1678
  %v1731 = vmul.f32 %v1719, %v1680
  %v1732 = vmul.f32 %v1720, %v1682
  %v1733 = vmul.f32 %v1721, %v1684
  %v1734 = vmul.f32 %v1722, %v1688
  %v1735 = vmul.f32 %v1723, %v1690
  %v1736 = vmul.f32 %v1724, %v1692
  %v1737 = vmul.f32 %v1725, %v1694
  %v1738 = vmul.f32 %v1726, %v1698
  %v1739 = vmul.f32 %v1727, %v1700
  %v1740 = vmul.f32 %v1728, %v1702
  %v1741 = vmul.f32 %v1729, %v1704
  %v1742 = vmul.f32 %v1730, %v1678
  %v1743 = vmul.f32 %v1731, %v1680
  %v1744 = vmul.f32 %v1732, %v1682
  %v1745 = vmul.f32 %v1733, %v1684
  %v1746 = vmul.f32 %v1734, %v1688
  %v1747 = vmul.f32 %v1735, %v1690
  %v1748 = vmul.f32 %v1736, %v1692
  %v1749 = vmul.f32 %v1737, %v1694
  %v1750 = vmul.f32 %v1738, %v1698
  %v1751 = vmul.f32 %v1739, %v1700
  %v1752 = vmul.f32 %v1740, %v1702
  %v1753 = vmul.f32 %v1741, %v1704
  %v1754 = vadd.f32 %v1678, %v1742
  %v1755 = vadd.f32 %v1680, %v1743
  %v1756 = vadd.f32 %v1682, %v1744
  %v1757 = vadd.f32 %v1684, %v1745
  %v1758 = vadd.f32 %v1688, %v1746
  %v1759 = vadd.f32 %v1690, %v1747
  %v1760 = vadd.f32 %v1692, %v1748
  %v1761 = vadd.f32 %v1694, %v1749
  %v1762 = vadd.f32 %v1698, %v1750
  %v1763 = vadd.f32 %v1700, %v1751
  %v1764 = vadd.f32 %v1702, %v1752
  %v1765 = vadd.f32 %v1704, %v1753
  %v1766 = vmul.f32 %v1754, 0.7978846
  %v1767 = vmul.f32 %v1755, 0.7978846
  %v1768 = vmul.f32 %v1756, 0.7978846
  %v1769 = vmul.f32 %v1757, 0.7978846
  %v1770 = vmul.f32 %v1758, 0.7978846
  %v1771 = vmul.f32 %v1759, 0.7978846
  %v1772 = vmul.f32 %v1760, 0.7978846
  %v1773 = vmul.f32 %v1761, 0.7978846
  %v1774 = vmul.f32 %v1762, 0.7978846
  %v1775 = vmul.f32 %v1763, 0.7978846
  %v1776 = vmul.f32 %v1764, 0.7978846
  %v1777 = vmul.f32 %v1765, 0.7978846
  %v1778 = vtanh.pop %v1766
  %v1779 = vtanh.pop %v1767
  %v1780 = vtanh.pop %v1768
  %v1781 = vtanh.pop %v1769
  %v1782 = vtanh.pop %v1770
  %v1783 = vtanh.pop %v1771
  %v1784 = vtanh.pop %v1772
  %v1785 = vtanh.pop %v1773
  %v1786 = vtanh.pop %v1774
  %v1787 = vtanh.pop %v1775
  %v1788 = vtanh.pop %v1776
  %v1789 = vtanh.pop %v1777
  %v1790 = vadd.f32 %v1778, 1.0
  %v1791 = vadd.f32 %v1779, 1.0
  %v1792 = vadd.f32 %v1780, 1.0
  %v1793 = vadd.f32 %v1781, 1.0
  %v1794 = vadd.f32 %v1782, 1.0
  %v1795 = vadd.f32 %v1783, 1.0
  %v1796 = vadd.f32 %v1784, 1.0
  %v1797 = vadd.f32 %v1785, 1.0
  %v1798 = vadd.f32 %v1786, 1.0
  %v1799 = vadd.f32 %v1787, 1.0
  %v1800 = vadd.f32 %v1788, 1.0
  %v1801 = vadd.f32 %v1789, 1.0
  %v1802 = vmul.f32 %v1706, %v1790
  %v1803 = vmul.f32 %v1707, %v1791
  %v1804 = vmul.f32 %v1708, %v1792
  %v1805 = vmul.f32 %v1709, %v1793
  %v1806 = vmul.f32 %v1710, %v1794
  %v1807 = vmul.f32 %v1711, %v1795
  %v1808 = vmul.f32 %v1712, %v1796
  %v1809 = vmul.f32 %v1713, %v1797
  %v1810 = vmul.f32 %v1714, %v1798
  %v1811 = vmul.f32 %v1715, %v1799
  %v1812 = vmul.f32 %v1716, %v1800
  %v1813 = vmul.f32 %v1717, %v1801
  %v1814 = vpack.c.bf16 %v1804, %v1802
  %v1815 = vpack.c.bf16 %v1805, %v1803
  %v1816 = vpack.c.bf16 %v1808, %v1806
  %v1817 = vpack.c.bf16 %v1809, %v1807
  %v1818 = vpack.c.bf16 %v1812, %v1810
  %v1819 = vpack.c.bf16 %v1813, %v1811
  %v1820 = vld [vmem:[%s16] sm:$0xf]
  %v1821 = vld [vmem:[%s16 + $0x4] sm:$0xf]
  %v1822 = vld [vmem:[%s16 + $0x8] sm:$0xf]
  %v1823 = vld [vmem:[%s16 + $0xc] sm:$0xf]
  %v1824 = vld [vmem:[%s16 + $0x10] sm:$0xf]
  %v1825 = vld [vmem:[%s16 + $0x14] sm:$0xf]
  %v1826 = vld [vmem:[%s16 + $0x18] sm:$0xf]
  %v1827 = vld [vmem:[%s16 + $0x1c] sm:$0xf]
  %v1828 = vld [vmem:[%s16 + $0x20] sm:$0xf]
  %v1829 = vld [vmem:[%s16 + $0x24] sm:$0xf]
  %v1830 = vld [vmem:[%s16 + $0x28] sm:$0xf]
  %v1831 = vld [vmem:[%s16 + $0x2c] sm:$0xf]
  %v1832 = vld [vmem:[%s16 + $0x30] sm:$0xf]
  %v1833 = vld [vmem:[%s16 + $0x34] sm:$0xf]
  %v1834 = vld [vmem:[%s16 + $0x38] sm:$0xf]
  %v1835 = vld [vmem:[%s16 + $0x3c] sm:$0xf]
  %v1836 = vld [vmem:[%s16 + $0x40] sm:$0xf]
  %v1837 = vld [vmem:[%s16 + $0x44] sm:$0xf]
  %v1838 = vld [vmem:[%s16 + $0x48] sm:$0xf]
  %v1839 = vld [vmem:[%s16 + $0x4c] sm:$0xf]
  %v1840 = vld [vmem:[%s16 + $0x50] sm:$0xf]
  %v1841 = vld [vmem:[%s16 + $0x54] sm:$0xf]
  %v1842 = vld [vmem:[%s16 + $0x58] sm:$0xf]
  %v1843 = vld [vmem:[%s16 + $0x5c] sm:$0xf]
  %v1844 = vld [vmem:[%s16 + $0x60] sm:$0xf]
  %v1845 = vld [vmem:[%s16 + $0x64] sm:$0xf]
  %v1846 = vld [vmem:[%s16 + $0x68] sm:$0xf]
  %v1847 = vld [vmem:[%s16 + $0x6c] sm:$0xf]
  %v1848 = vld [vmem:[%s16 + $0x70] sm:$0xf]
  %v1849 = vld [vmem:[%s16 + $0x74] sm:$0xf]
  %v1850 = vld [vmem:[%s16 + $0x78] sm:$0xf]
  %v1851 = vld [vmem:[%s16 + $0x7c] sm:$0xf]
  %v1884 = vunpack.c.l.b16 %v1820
  %v1885 = vunpack.c.l.b16 %v1821
  %v1886 = vunpack.c.l.b16 %v1822
  %v1887 = vunpack.c.l.b16 %v1823
  %v1888 = vunpack.c.l.b16 %v1824
  %v1889 = vunpack.c.l.b16 %v1825
  %v1890 = vunpack.c.l.b16 %v1826
  %v1891 = vunpack.c.l.b16 %v1827
  %v1892 = vunpack.c.l.b16 %v1828
  %v1893 = vunpack.c.l.b16 %v1829
  %v1894 = vunpack.c.l.b16 %v1830
  %v1895 = vunpack.c.l.b16 %v1831
  %v1896 = vunpack.c.l.b16 %v1832
  %v1897 = vunpack.c.l.b16 %v1833
  %v1898 = vunpack.c.l.b16 %v1834
  %v1899 = vunpack.c.l.b16 %v1835
  %v1900 = vunpack.c.l.b16 %v1836
  %v1901 = vunpack.c.l.b16 %v1837
  %v1902 = vunpack.c.l.b16 %v1838
  %v1903 = vunpack.c.l.b16 %v1839
  %v1904 = vunpack.c.l.b16 %v1840
  %v1905 = vunpack.c.l.b16 %v1841
  %v1906 = vunpack.c.l.b16 %v1842
  %v1907 = vunpack.c.l.b16 %v1843
  %v1908 = vunpack.c.l.b16 %v1844
  %v1909 = vunpack.c.l.b16 %v1845
  %v1910 = vunpack.c.l.b16 %v1846
  %v1911 = vunpack.c.l.b16 %v1847
  %v1912 = vunpack.c.l.b16 %v1848
  %v1913 = vunpack.c.l.b16 %v1849
  %v1914 = vunpack.c.l.b16 %v1850
  %v1915 = vunpack.c.l.b16 %v1851
  %v1916 = vpack.c.b16 %v1885, %v1884
  %v1917 = vpack.c.b16 %v1887, %v1886
  %v1918 = vpack.c.b16 %v1889, %v1888
  %v1919 = vpack.c.b16 %v1891, %v1890
  %v1920 = vpack.c.b16 %v1893, %v1892
  %v1921 = vpack.c.b16 %v1895, %v1894
  %v1922 = vpack.c.b16 %v1897, %v1896
  %v1923 = vpack.c.b16 %v1899, %v1898
  %v1924 = vpack.c.b16 %v1901, %v1900
  %v1925 = vpack.c.b16 %v1903, %v1902
  %v1926 = vpack.c.b16 %v1905, %v1904
  %v1927 = vpack.c.b16 %v1907, %v1906
  %v1928 = vpack.c.b16 %v1909, %v1908
  %v1929 = vpack.c.b16 %v1911, %v1910
  %v1930 = vpack.c.b16 %v1913, %v1912
  %v1931 = vpack.c.b16 %v1915, %v1914
  %1948 = vmatprep.subr.bf16.mxu0 0
  %1949 = vmatpush1.bf16.msra.mxu0 %v1923
  %1950 = vmatprep.subr.bf16.mxu0 0
  %1951 = vmatpush1.bf16.msra.mxu0 %v1922
  %1952 = vmatprep.subr.bf16.mxu0 0
  %1953 = vmatpush1.bf16.msra.mxu0 %v1921
  %1954 = vmatprep.subr.bf16.mxu0 0
  %1955 = vmatpush1.bf16.msra.mxu0 %v1920
  %1956 = vmatprep.subr.bf16.mxu0 0
  %1957 = vmatpush1.bf16.msra.mxu0 %v1919
  %1958 = vmatprep.subr.bf16.mxu0 0
  %1959 = vmatpush1.bf16.msra.mxu0 %v1918
  %1960 = vmatprep.subr.bf16.mxu0 0
  %1961 = vmatpush1.bf16.msra.mxu0 %v1917
  %1962 = vmatprep.subr.bf16.mxu0 0
  %1963 = vmatpush1.bf16.msra.mxu0 %v1916
  %1964 = vmatprep.subr.bf16.mxu0 0
  %1965 = vmatpush2.bf16.msra.mxu0 %v1931
  %1966 = vmatprep.subr.bf16.mxu0 0
  %1967 = vmatpush2.bf16.msra.mxu0 %v1930
  %1968 = vmatprep.subr.bf16.mxu0 0
  %1969 = vmatpush2.bf16.msra.mxu0 %v1929
  %1970 = vmatprep.subr.bf16.mxu0 0
  %1971 = vmatpush2.bf16.msra.mxu0 %v1928
  %1972 = vmatprep.subr.bf16.mxu0 0
  %1973 = vmatpush2.bf16.msra.mxu0 %v1927
  %1974 = vmatprep.subr.bf16.mxu0 0
  %1975 = vmatpush2.bf16.msra.mxu0 %v1926
  %1976 = vmatprep.subr.bf16.mxu0 0
  %1977 = vmatpush2.bf16.msra.mxu0 %v1925
  %1978 = vmatprep.subr.bf16.mxu0 0
  %1979 = vmatpush2.bf16.msra.mxu0 %v1924
  %1980 = vmatprep.mubr.bf16.mxu0 %v1815
  %1981 = vmatmul.mubr.bf16.gmra.mxu0 %v1814
  %v1982 = vpop.f32.mrf.mxu0
  %v1983 = vadd.f32 0.0, %v1982
  %v1984 = vpop.f32.mrf.mxu0
  %v1985 = vpop.f32.mrf.mxu0
  %v1986 = vadd.f32 0.0, %v1985
  %v1987 = vpop.f32.mrf.mxu0
  %1988 = vmatprep.mubr.bf16.mxu0 %v1817
  %1989 = vmatmul.mubr.bf16.gmra.mxu0 %v1816
  %v1990 = vpop.f32.mrf.mxu0
  %v1991 = vadd.f32 0.0, %v1990
  %v1992 = vpop.f32.mrf.mxu0
  %v1993 = vpop.f32.mrf.mxu0
  %v1994 = vadd.f32 0.0, %v1993
  %v1995 = vpop.f32.mrf.mxu0
  %1996 = vmatprep.mubr.bf16.mxu0 %v1819
  %1997 = vmatmul.mubr.bf16.gmra.mxu0 %v1818
  %v1998 = vpop.f32.mrf.mxu0
  %v1999 = vadd.f32 0.0, %v1998
  %v2000 = vpop.f32.mrf.mxu0
  %v2001 = vpop.f32.mrf.mxu0
  %v2002 = vadd.f32 0.0, %v2001
  %v2003 = vpop.f32.mrf.mxu0
  %2004 = vdwg.mxu0
  %v2005 = vadd.f32 %v1449, %v1983
  %v2006 = vadd.f32 %v1450, %v1986
  %v2007 = vadd.f32 %v1451, %v1991
  %v2008 = vadd.f32 %v1452, %v1994
  %v2009 = vadd.f32 %v1453, %v1999
  %v2010 = vadd.f32 %v1454, %v2002
  %v2011 = vld [vmem:[%s17] sm:$0x1]
  %v2013 = vlaneseq
  %v2014 = vshrl.u32 %v2013, 7
  %v2015 = vsub.s32 0, %v2014
  %v2016 = vrot.slane %v2011, %v2015
  %v2018 = vadd.f32 %v2005, %v2016
  %v2019 = vadd.f32 %v2006, %v2016
  %v2020 = vadd.f32 %v2007, %v2016
  %v2021 = vadd.f32 %v2008, %v2016
  %v2022 = vadd.f32 %v2009, %v2016
  %v2023 = vadd.f32 %v2010, %v2016
  %s2024 = scalar_lea.vmem %s2, 1
  %v2025 = vld [vmem:[%s2024] sm:$0x1]
  %s2026 = scalar_lea.vmem %s3, 1
  %v2027 = vld [vmem:[%s2026] sm:$0x1]
  %v2028 = vsel %vm91, %v2018, 0.0
  %2029 = vadd.xlane.f32.xlu0 %v2028
  %v2030 = vpop.xlane.xlu0 %2029
  %v2031 = vsel %vm91, %v2019, 0.0
  %2032 = vadd.xlane.f32.xlu0 %v2031
  %v2033 = vpop.xlane.xlu0 %2032
  %v2034 = vsel %vm91, %v2020, 0.0
  %2035 = vadd.xlane.f32.xlu0 %v2034
  %v2036 = vpop.xlane.xlu0 %2035
  %v2037 = vsel %vm91, %v2021, 0.0
  %2038 = vadd.xlane.f32.xlu0 %v2037
  %v2039 = vpop.xlane.xlu0 %2038
  %v2040 = vsel %vm91, %v2022, 0.0
  %2041 = vadd.xlane.f32.xlu0 %v2040
  %v2042 = vpop.xlane.xlu0 %2041
  %v2043 = vsel %vm91, %v2023, 0.0
  %2044 = vadd.xlane.f32.xlu0 %v2043
  %v2045 = vpop.xlane.xlu0 %2044
  %v2046 = vmul.f32 %v2030, %v110
  %v2047 = vmul.f32 %v2033, %v110
  %v2048 = vmul.f32 %v2036, %v110
  %v2049 = vmul.f32 %v2039, %v110
  %v2050 = vmul.f32 %v2042, %v110
  %v2051 = vmul.f32 %v2045, %v110
  %v2052 = vmul.f32 %v2018, %v2018
  %v2053 = vmul.f32 %v2019, %v2019
  %v2054 = vmul.f32 %v2020, %v2020
  %v2055 = vmul.f32 %v2021, %v2021
  %v2056 = vmul.f32 %v2022, %v2022
  %v2057 = vmul.f32 %v2023, %v2023
  %v2058 = vsel %vm91, %v2052, 0.0
  %2059 = vadd.xlane.f32.xlu0 %v2058
  %v2060 = vpop.xlane.xlu0 %2059
  %v2061 = vsel %vm91, %v2053, 0.0
  %2062 = vadd.xlane.f32.xlu0 %v2061
  %v2063 = vpop.xlane.xlu0 %2062
  %v2064 = vsel %vm91, %v2054, 0.0
  %2065 = vadd.xlane.f32.xlu0 %v2064
  %v2066 = vpop.xlane.xlu0 %2065
  %v2067 = vsel %vm91, %v2055, 0.0
  %2068 = vadd.xlane.f32.xlu0 %v2067
  %v2069 = vpop.xlane.xlu0 %2068
  %v2070 = vsel %vm91, %v2056, 0.0
  %2071 = vadd.xlane.f32.xlu0 %v2070
  %v2072 = vpop.xlane.xlu0 %2071
  %v2073 = vsel %vm91, %v2057, 0.0
  %2074 = vadd.xlane.f32.xlu0 %v2073
  %v2075 = vpop.xlane.xlu0 %2074
  %v2076 = vmul.f32 %v2060, %v110
  %v2077 = vmul.f32 %v2063, %v110
  %v2078 = vmul.f32 %v2066, %v110
  %v2079 = vmul.f32 %v2069, %v110
  %v2080 = vmul.f32 %v2072, %v110
  %v2081 = vmul.f32 %v2075, %v110
  %v2082 = vmul.f32 %v2046, %v2046
  %v2083 = vmul.f32 %v2047, %v2047
  %v2084 = vmul.f32 %v2048, %v2048
  %v2085 = vmul.f32 %v2049, %v2049
  %v2086 = vmul.f32 %v2050, %v2050
  %v2087 = vmul.f32 %v2051, %v2051
  %v2088 = vsub.f32 %v2076, %v2082
  %v2089 = vsub.f32 %v2077, %v2083
  %v2090 = vsub.f32 %v2078, %v2084
  %v2091 = vsub.f32 %v2079, %v2085
  %v2092 = vsub.f32 %v2080, %v2086
  %v2093 = vsub.f32 %v2081, %v2087
  %v2094 = vsub.f32 %v2018, %v2046
  %v2095 = vsub.f32 %v2019, %v2047
  %v2096 = vsub.f32 %v2020, %v2048
  %v2097 = vsub.f32 %v2021, %v2049
  %v2098 = vsub.f32 %v2022, %v2050
  %v2099 = vsub.f32 %v2023, %v2051
  %v2100 = vadd.f32 %v2088, 1e-05
  %v2101 = vadd.f32 %v2089, 1e-05
  %v2102 = vadd.f32 %v2090, 1e-05
  %v2103 = vadd.f32 %v2091, 1e-05
  %v2104 = vadd.f32 %v2092, 1e-05
  %v2105 = vadd.f32 %v2093, 1e-05
  %v2106 = vrsqrt.pop %v2100
  %v2107 = vrsqrt.pop %v2101
  %v2108 = vrsqrt.pop %v2102
  %v2109 = vrsqrt.pop %v2103
  %v2110 = vrsqrt.pop %v2104
  %v2111 = vrsqrt.pop %v2105
  %v2112 = vmul.f32 %v2094, %v2106
  %v2113 = vmul.f32 %v2095, %v2107
  %v2114 = vmul.f32 %v2096, %v2108
  %v2115 = vmul.f32 %v2097, %v2109
  %v2116 = vmul.f32 %v2098, %v2110
  %v2117 = vmul.f32 %v2099, %v2111
  %v2119 = vlaneseq
  %v2120 = vshrl.u32 %v2119, 7
  %v2121 = vsub.s32 0, %v2120
  %v2122 = vrot.slane %v2025, %v2121
  %v2124 = vmul.f32 %v2112, %v2122
  %v2125 = vmul.f32 %v2113, %v2122
  %v2126 = vmul.f32 %v2114, %v2122
  %v2127 = vmul.f32 %v2115, %v2122
  %v2128 = vmul.f32 %v2116, %v2122
  %v2129 = vmul.f32 %v2117, %v2122
  %v2131 = vlaneseq
  %v2132 = vshrl.u32 %v2131, 7
  %v2133 = vsub.s32 0, %v2132
  %v2134 = vrot.slane %v2027, %v2133
  %v2136 = vadd.f32 %v2124, %v2134
  %v2137 = vadd.f32 %v2125, %v2134
  %v2138 = vadd.f32 %v2126, %v2134
  %v2139 = vadd.f32 %v2127, %v2134
  %v2140 = vadd.f32 %v2128, %v2134
  %v2141 = vadd.f32 %v2129, %v2134
  %v2142 = vpack.c.bf16 %v2137, %v2136
  %v2143 = vpack.c.bf16 %v2139, %v2138
  %v2144 = vpack.c.bf16 %v2141, %v2140
  %s2145 = scalar_lea.vmem %s4, 64
  %v2146 = vld [vmem:[%s2145] sm:$0xf]
  %v2147 = vld [vmem:[%s2145 + $0x4] sm:$0xf]
  %v2148 = vld [vmem:[%s2145 + $0x8] sm:$0xf]
  %v2149 = vld [vmem:[%s2145 + $0xc] sm:$0xf]
  %v2150 = vld [vmem:[%s2145 + $0x10] sm:$0xf]
  %v2151 = vld [vmem:[%s2145 + $0x14] sm:$0xf]
  %v2152 = vld [vmem:[%s2145 + $0x18] sm:$0xf]
  %v2153 = vld [vmem:[%s2145 + $0x1c] sm:$0xf]
  %s2154 = scalar_lea.vmem %s7, 2
  %v2155 = vld [vmem:[%s2154] sm:$0x1]
  %v2157 = vlaneseq
  %v2158 = vshrl.u32 %v2157, 7
  %v2159 = vsub.s32 0, %v2158
  %v2160 = vrot.slane %v2155, %v2159
  %v2170 = vunpack.c.l.b16 %v2146
  %v2171 = vunpack.c.l.b16 %v2147
  %v2172 = vunpack.c.l.b16 %v2148
  %v2173 = vunpack.c.l.b16 %v2149
  %v2174 = vunpack.c.l.b16 %v2150
  %v2175 = vunpack.c.l.b16 %v2151
  %v2176 = vunpack.c.l.b16 %v2152
  %v2177 = vunpack.c.l.b16 %v2153
  %v2178 = vpack.c.b16 %v2171, %v2170
  %v2179 = vpack.c.b16 %v2173, %v2172
  %v2180 = vpack.c.b16 %v2175, %v2174
  %v2181 = vpack.c.b16 %v2177, %v2176
  %v2187 = vsel %vm91, %v2142, 0
  %v2190 = vsel %vm91, %v2143, 0
  %v2193 = vsel %vm91, %v2144, 0
  %2195 = vmatprep.subr.bf16.mxu0 0
  %2196 = vmatpush1.bf16.msra.mxu0 0
  %2197 = vmatprep.subr.bf16.mxu0 0
  %2198 = vmatpush1.bf16.msra.mxu0 0
  %2199 = vmatprep.subr.bf16.mxu0 0
  %2200 = vmatpush1.bf16.msra.mxu0 0
  %2201 = vmatprep.subr.bf16.mxu0 0
  %2202 = vmatpush1.bf16.msra.mxu0 0
  %2203 = vmatprep.subr.bf16.mxu0 0
  %2204 = vmatpush1.bf16.msra.mxu0 %v2181
  %2205 = vmatprep.subr.bf16.mxu0 0
  %2206 = vmatpush1.bf16.msra.mxu0 %v2180
  %2207 = vmatprep.subr.bf16.mxu0 0
  %2208 = vmatpush1.bf16.msra.mxu0 %v2179
  %2209 = vmatprep.subr.bf16.mxu0 0
  %2210 = vmatpush1.bf16.msra.mxu0 %v2178
  %2211 = vmatprep.subr.bf16.mxu0 0
  %2212 = vmatpush2.bf16.msra.mxu0 0
  %2213 = vmatprep.subr.bf16.mxu0 0
  %2214 = vmatpush2.bf16.msra.mxu0 0
  %2215 = vmatprep.subr.bf16.mxu0 0
  %2216 = vmatpush2.bf16.msra.mxu0 0
  %2217 = vmatprep.subr.bf16.mxu0 0
  %2218 = vmatpush2.bf16.msra.mxu0 0
  %2219 = vmatprep.subr.bf16.mxu0 0
  %2220 = vmatpush2.bf16.msra.mxu0 0
  %2221 = vmatprep.subr.bf16.mxu0 0
  %2222 = vmatpush2.bf16.msra.mxu0 0
  %2223 = vmatprep.subr.bf16.mxu0 0
  %2224 = vmatpush2.bf16.msra.mxu0 0
  %2225 = vmatprep.subr.bf16.mxu0 0
  %2226 = vmatpush2.bf16.msra.mxu0 0
  %2227 = vmatprep.mubr.bf16.mxu0 0
  %2228 = vmatmul.mubr.bf16.gmra.mxu0 %v2187
  %v2229 = vpop.f32.mrf.mxu0
  %v2230 = vadd.f32 %v2160, %v2229
  %v2231 = vpop.f32.mrf.mxu0
  %v2232 = vpop.f32.mrf.mxu0
  %v2233 = vadd.f32 %v2160, %v2232
  %v2234 = vpop.f32.mrf.mxu0
  %2235 = vmatprep.mubr.bf16.mxu0 0
  %2236 = vmatmul.mubr.bf16.gmra.mxu0 %v2190
  %v2237 = vpop.f32.mrf.mxu0
  %v2238 = vadd.f32 %v2160, %v2237
  %v2239 = vpop.f32.mrf.mxu0
  %v2240 = vpop.f32.mrf.mxu0
  %v2241 = vadd.f32 %v2160, %v2240
  %v2242 = vpop.f32.mrf.mxu0
  %2243 = vmatprep.mubr.bf16.mxu0 0
  %2244 = vmatmul.mubr.bf16.gmra.mxu0 %v2193
  %v2245 = vpop.f32.mrf.mxu0
  %v2246 = vadd.f32 %v2160, %v2245
  %v2247 = vpop.f32.mrf.mxu0
  %v2248 = vpop.f32.mrf.mxu0
  %v2249 = vadd.f32 %v2160, %v2248
  %v2250 = vpop.f32.mrf.mxu0
  %2251 = vdwg.mxu0
  %s2252 = scalar_lea.vmem %s5, 64
  %v2253 = vld [vmem:[%s2252] sm:$0xf]
  %v2254 = vld [vmem:[%s2252 + $0x4] sm:$0xf]
  %v2255 = vld [vmem:[%s2252 + $0x8] sm:$0xf]
  %v2256 = vld [vmem:[%s2252 + $0xc] sm:$0xf]
  %v2257 = vld [vmem:[%s2252 + $0x10] sm:$0xf]
  %v2258 = vld [vmem:[%s2252 + $0x14] sm:$0xf]
  %v2259 = vld [vmem:[%s2252 + $0x18] sm:$0xf]
  %v2260 = vld [vmem:[%s2252 + $0x1c] sm:$0xf]
  %s2261 = scalar_lea.vmem %s8, 2
  %v2262 = vld [vmem:[%s2261] sm:$0x1]
  %v2264 = vlaneseq
  %v2265 = vshrl.u32 %v2264, 7
  %v2266 = vsub.s32 0, %v2265
  %v2267 = vrot.slane %v2262, %v2266
  %v2277 = vunpack.c.l.b16 %v2253
  %v2278 = vunpack.c.l.b16 %v2254
  %v2279 = vunpack.c.l.b16 %v2255
  %v2280 = vunpack.c.l.b16 %v2256
  %v2281 = vunpack.c.l.b16 %v2257
  %v2282 = vunpack.c.l.b16 %v2258
  %v2283 = vunpack.c.l.b16 %v2259
  %v2284 = vunpack.c.l.b16 %v2260
  %v2285 = vpack.c.b16 %v2278, %v2277
  %v2286 = vpack.c.b16 %v2280, %v2279
  %v2287 = vpack.c.b16 %v2282, %v2281
  %v2288 = vpack.c.b16 %v2284, %v2283
  %2293 = vmatprep.subr.bf16.mxu0 0
  %2294 = vmatpush1.bf16.msra.mxu0 0
  %2295 = vmatprep.subr.bf16.mxu0 0
  %2296 = vmatpush1.bf16.msra.mxu0 0
  %2297 = vmatprep.subr.bf16.mxu0 0
  %2298 = vmatpush1.bf16.msra.mxu0 0
  %2299 = vmatprep.subr.bf16.mxu0 0
  %2300 = vmatpush1.bf16.msra.mxu0 0
  %2301 = vmatprep.subr.bf16.mxu0 0
  %2302 = vmatpush1.bf16.msra.mxu0 %v2288
  %2303 = vmatprep.subr.bf16.mxu0 0
  %2304 = vmatpush1.bf16.msra.mxu0 %v2287
  %2305 = vmatprep.subr.bf16.mxu0 0
  %2306 = vmatpush1.bf16.msra.mxu0 %v2286
  %2307 = vmatprep.subr.bf16.mxu0 0
  %2308 = vmatpush1.bf16.msra.mxu0 %v2285
  %2309 = vmatprep.subr.bf16.mxu0 0
  %2310 = vmatpush2.bf16.msra.mxu0 0
  %2311 = vmatprep.subr.bf16.mxu0 0
  %2312 = vmatpush2.bf16.msra.mxu0 0
  %2313 = vmatprep.subr.bf16.mxu0 0
  %2314 = vmatpush2.bf16.msra.mxu0 0
  %2315 = vmatprep.subr.bf16.mxu0 0
  %2316 = vmatpush2.bf16.msra.mxu0 0
  %2317 = vmatprep.subr.bf16.mxu0 0
  %2318 = vmatpush2.bf16.msra.mxu0 0
  %2319 = vmatprep.subr.bf16.mxu0 0
  %2320 = vmatpush2.bf16.msra.mxu0 0
  %2321 = vmatprep.subr.bf16.mxu0 0
  %2322 = vmatpush2.bf16.msra.mxu0 0
  %2323 = vmatprep.subr.bf16.mxu0 0
  %2324 = vmatpush2.bf16.msra.mxu0 0
  %2325 = vmatprep.mubr.bf16.mxu0 0
  %2326 = vmatmul.mubr.bf16.gmra.mxu0 %v2187
  %v2327 = vpop.f32.mrf.mxu0
  %v2328 = vadd.f32 %v2267, %v2327
  %v2329 = vpop.f32.mrf.mxu0
  %v2330 = vpop.f32.mrf.mxu0
  %v2331 = vadd.f32 %v2267, %v2330
  %v2332 = vpop.f32.mrf.mxu0
  %2333 = vmatprep.mubr.bf16.mxu0 0
  %2334 = vmatmul.mubr.bf16.gmra.mxu0 %v2190
  %v2335 = vpop.f32.mrf.mxu0
  %v2336 = vadd.f32 %v2267, %v2335
  %v2337 = vpop.f32.mrf.mxu0
  %v2338 = vpop.f32.mrf.mxu0
  %v2339 = vadd.f32 %v2267, %v2338
  %v2340 = vpop.f32.mrf.mxu0
  %2341 = vmatprep.mubr.bf16.mxu0 0
  %2342 = vmatmul.mubr.bf16.gmra.mxu0 %v2193
  %v2343 = vpop.f32.mrf.mxu0
  %v2344 = vadd.f32 %v2267, %v2343
  %v2345 = vpop.f32.mrf.mxu0
  %v2346 = vpop.f32.mrf.mxu0
  %v2347 = vadd.f32 %v2267, %v2346
  %v2348 = vpop.f32.mrf.mxu0
  %2349 = vdwg.mxu0
  %s2350 = scalar_lea.vmem %s6, 64
  %v2351 = vld [vmem:[%s2350] sm:$0xf]
  %v2352 = vld [vmem:[%s2350 + $0x4] sm:$0xf]
  %v2353 = vld [vmem:[%s2350 + $0x8] sm:$0xf]
  %v2354 = vld [vmem:[%s2350 + $0xc] sm:$0xf]
  %v2355 = vld [vmem:[%s2350 + $0x10] sm:$0xf]
  %v2356 = vld [vmem:[%s2350 + $0x14] sm:$0xf]
  %v2357 = vld [vmem:[%s2350 + $0x18] sm:$0xf]
  %v2358 = vld [vmem:[%s2350 + $0x1c] sm:$0xf]
  %s2359 = scalar_lea.vmem %s9, 2
  %v2360 = vld [vmem:[%s2359] sm:$0x1]
  %v2362 = vlaneseq
  %v2363 = vshrl.u32 %v2362, 7
  %v2364 = vsub.s32 0, %v2363
  %v2365 = vrot.slane %v2360, %v2364
  %v2375 = vunpack.c.l.b16 %v2351
  %v2376 = vunpack.c.l.b16 %v2352
  %v2377 = vunpack.c.l.b16 %v2353
  %v2378 = vunpack.c.l.b16 %v2354
  %v2379 = vunpack.c.l.b16 %v2355
  %v2380 = vunpack.c.l.b16 %v2356
  %v2381 = vunpack.c.l.b16 %v2357
  %v2382 = vunpack.c.l.b16 %v2358
  %v2383 = vpack.c.b16 %v2376, %v2375
  %v2384 = vpack.c.b16 %v2378, %v2377
  %v2385 = vpack.c.b16 %v2380, %v2379
  %v2386 = vpack.c.b16 %v2382, %v2381
  %2391 = vmatprep.subr.bf16.mxu0 0
  %2392 = vmatpush1.bf16.msra.mxu0 0
  %2393 = vmatprep.subr.bf16.mxu0 0
  %2394 = vmatpush1.bf16.msra.mxu0 0
  %2395 = vmatprep.subr.bf16.mxu0 0
  %2396 = vmatpush1.bf16.msra.mxu0 0
  %2397 = vmatprep.subr.bf16.mxu0 0
  %2398 = vmatpush1.bf16.msra.mxu0 0
  %2399 = vmatprep.subr.bf16.mxu0 0
  %2400 = vmatpush1.bf16.msra.mxu0 %v2386
  %2401 = vmatprep.subr.bf16.mxu0 0
  %2402 = vmatpush1.bf16.msra.mxu0 %v2385
  %2403 = vmatprep.subr.bf16.mxu0 0
  %2404 = vmatpush1.bf16.msra.mxu0 %v2384
  %2405 = vmatprep.subr.bf16.mxu0 0
  %2406 = vmatpush1.bf16.msra.mxu0 %v2383
  %2407 = vmatprep.subr.bf16.mxu0 0
  %2408 = vmatpush2.bf16.msra.mxu0 0
  %2409 = vmatprep.subr.bf16.mxu0 0
  %2410 = vmatpush2.bf16.msra.mxu0 0
  %2411 = vmatprep.subr.bf16.mxu0 0
  %2412 = vmatpush2.bf16.msra.mxu0 0
  %2413 = vmatprep.subr.bf16.mxu0 0
  %2414 = vmatpush2.bf16.msra.mxu0 0
  %2415 = vmatprep.subr.bf16.mxu0 0
  %2416 = vmatpush2.bf16.msra.mxu0 0
  %2417 = vmatprep.subr.bf16.mxu0 0
  %2418 = vmatpush2.bf16.msra.mxu0 0
  %2419 = vmatprep.subr.bf16.mxu0 0
  %2420 = vmatpush2.bf16.msra.mxu0 0
  %2421 = vmatprep.subr.bf16.mxu0 0
  %2422 = vmatpush2.bf16.msra.mxu0 0
  %2423 = vmatprep.mubr.bf16.mxu0 0
  %2424 = vmatmul.mubr.bf16.gmra.mxu0 %v2187
  %v2425 = vpop.f32.mrf.mxu0
  %v2426 = vadd.f32 %v2365, %v2425
  %v2427 = vpop.f32.mrf.mxu0
  %v2428 = vpop.f32.mrf.mxu0
  %v2429 = vadd.f32 %v2365, %v2428
  %v2430 = vpop.f32.mrf.mxu0
  %2431 = vmatprep.mubr.bf16.mxu0 0
  %2432 = vmatmul.mubr.bf16.gmra.mxu0 %v2190
  %v2433 = vpop.f32.mrf.mxu0
  %v2434 = vadd.f32 %v2365, %v2433
  %v2435 = vpop.f32.mrf.mxu0
  %v2436 = vpop.f32.mrf.mxu0
  %v2437 = vadd.f32 %v2365, %v2436
  %v2438 = vpop.f32.mrf.mxu0
  %2439 = vmatprep.mubr.bf16.mxu0 0
  %2440 = vmatmul.mubr.bf16.gmra.mxu0 %v2193
  %v2441 = vpop.f32.mrf.mxu0
  %v2442 = vadd.f32 %v2365, %v2441
  %v2443 = vpop.f32.mrf.mxu0
  %v2444 = vpop.f32.mrf.mxu0
  %v2445 = vadd.f32 %v2365, %v2444
  %v2446 = vpop.f32.mrf.mxu0
  %2447 = vdwg.mxu0
  %v2448 = vpack.c.bf16 %v2233, %v2230
  %v2449 = vpack.c.bf16 %v2241, %v2238
  %v2450 = vpack.c.bf16 %v2249, %v2246
  %v2451 = vpack.c.bf16 %v2331, %v2328
  %v2452 = vpack.c.bf16 %v2339, %v2336
  %v2453 = vpack.c.bf16 %v2347, %v2344
  %v2455 = vsel %vm513, %v2448, 0
  %v2458 = vsel %vm513, %v2449, 0
  %v2461 = vsel %vm513, %v2450, 0
  %v2464 = vsel %vm513, %v2451, 0
  %v2467 = vsel %vm513, %v2452, 0
  %v2470 = vsel %vm513, %v2453, 0
  %2472 = vmatprep.subr.bf16.mxu0 0
  %2473 = vmatpush1.bf16.xpose.msra.mxu0 0
  %2474 = vmatprep.subr.bf16.mxu0 0
  %2475 = vmatpush1.bf16.xpose.msra.mxu0 0
  %2476 = vmatprep.subr.bf16.mxu0 0
  %2477 = vmatpush1.bf16.xpose.msra.mxu0 0
  %2478 = vmatprep.subr.bf16.mxu0 0
  %2479 = vmatpush1.bf16.xpose.msra.mxu0 0
  %2480 = vmatprep.subr.bf16.mxu0 0
  %2481 = vmatpush1.bf16.xpose.msra.mxu0 0
  %2482 = vmatprep.subr.bf16.mxu0 0
  %2483 = vmatpush1.bf16.xpose.msra.mxu0 %v2470
  %2484 = vmatprep.subr.bf16.mxu0 0
  %2485 = vmatpush1.bf16.xpose.msra.mxu0 %v2467
  %2486 = vmatprep.subr.bf16.mxu0 0
  %2487 = vmatpush1.bf16.xpose.msra.mxu0 %v2464
  %2488 = vmatprep.subr.bf16.mxu0 0
  %2489 = vmatpush2.bf16.xpose.msra.mxu0 0
  %2490 = vmatprep.subr.bf16.mxu0 0
  %2491 = vmatpush2.bf16.xpose.msra.mxu0 0
  %2492 = vmatprep.subr.bf16.mxu0 0
  %2493 = vmatpush2.bf16.xpose.msra.mxu0 0
  %2494 = vmatprep.subr.bf16.mxu0 0
  %2495 = vmatpush2.bf16.xpose.msra.mxu0 0
  %2496 = vmatprep.subr.bf16.mxu0 0
  %2497 = vmatpush2.bf16.xpose.msra.mxu0 0
  %2498 = vmatprep.subr.bf16.mxu0 0
  %2499 = vmatpush2.bf16.xpose.msra.mxu0 0
  %2500 = vmatprep.subr.bf16.mxu0 0
  %2501 = vmatpush2.bf16.xpose.msra.mxu0 0
  %2502 = vmatprep.subr.bf16.mxu0 0
  %2503 = vmatpush2.bf16.xpose.msra.mxu0 0
  %2504 = vmatprep.mubr.bf16.mxu0 0
  %2505 = vmatmul.mubr.bf16.gmra.mxu0 %v2455
  %v2506 = vpop.f32.mrf.mxu0
  %v2507 = vadd.f32 0.0, %v2506
  %v2508 = vpop.f32.mrf.mxu0
  %v2509 = vpop.f32.mrf.mxu0
  %v2510 = vadd.f32 0.0, %v2509
  %v2511 = vpop.f32.mrf.mxu0
  %2512 = vmatprep.mubr.bf16.mxu0 0
  %2513 = vmatmul.mubr.bf16.gmra.mxu0 %v2458
  %v2514 = vpop.f32.mrf.mxu0
  %v2515 = vadd.f32 0.0, %v2514
  %v2516 = vpop.f32.mrf.mxu0
  %v2517 = vpop.f32.mrf.mxu0
  %v2518 = vadd.f32 0.0, %v2517
  %v2519 = vpop.f32.mrf.mxu0
  %2520 = vmatprep.mubr.bf16.mxu0 0
  %2521 = vmatmul.mubr.bf16.gmra.mxu0 %v2461
  %v2522 = vpop.f32.mrf.mxu0
  %v2523 = vadd.f32 0.0, %v2522
  %v2524 = vpop.f32.mrf.mxu0
  %v2525 = vpop.f32.mrf.mxu0
  %v2526 = vadd.f32 0.0, %v2525
  %v2527 = vpop.f32.mrf.mxu0
  %2528 = vdwg.mxu0
  %v2529 = vmul.f32 %v2507, 0.17677669
  %v2530 = vmul.f32 %v2510, 0.17677669
  %v2531 = vmul.f32 %v2515, 0.17677669
  %v2532 = vmul.f32 %v2518, 0.17677669
  %v2533 = vmul.f32 %v2523, 0.17677669
  %v2534 = vmul.f32 %v2526, 0.17677669
  %v2535 = vadd.f32 %v2529, %v83
  %v2536 = vadd.f32 %v2530, %v84
  %v2537 = vadd.f32 %v2531, %v85
  %v2538 = vadd.f32 %v2532, %v86
  %v2539 = vadd.f32 %v2533, %v87
  %v2540 = vadd.f32 %v2534, %v88
  %v2541 = vsel %vm601, %v2535, -inf
  %2542 = vmax.xlane.f32.xlu0 %v2541
  %v2543 = vpop.xlane.xlu0 %2542
  %v2544 = vsel %vm601, %v2536, -inf
  %2545 = vmax.xlane.f32.xlu0 %v2544
  %v2546 = vpop.xlane.xlu0 %2545
  %v2547 = vsel %vm601, %v2537, -inf
  %2548 = vmax.xlane.f32.xlu0 %v2547
  %v2549 = vpop.xlane.xlu0 %2548
  %v2550 = vsel %vm601, %v2538, -inf
  %2551 = vmax.xlane.f32.xlu0 %v2550
  %v2552 = vpop.xlane.xlu0 %2551
  %v2553 = vsel %vm601, %v2539, -inf
  %2554 = vmax.xlane.f32.xlu0 %v2553
  %v2555 = vpop.xlane.xlu0 %2554
  %v2556 = vsel %vm601, %v2540, -inf
  %2557 = vmax.xlane.f32.xlu0 %v2556
  %v2558 = vpop.xlane.xlu0 %2557
  %v2559 = vsub.f32 %v2535, %v2543
  %v2560 = vsub.f32 %v2536, %v2546
  %v2561 = vsub.f32 %v2537, %v2549
  %v2562 = vsub.f32 %v2538, %v2552
  %v2563 = vsub.f32 %v2539, %v2555
  %v2564 = vsub.f32 %v2540, %v2558
  %v2565 = vmul.f32 %v2559, 1.442695
  %v2566 = vpow.pop %v2565
  %v2567 = vmul.f32 %v2560, 1.442695
  %v2568 = vpow.pop %v2567
  %v2569 = vmul.f32 %v2561, 1.442695
  %v2570 = vpow.pop %v2569
  %v2571 = vmul.f32 %v2562, 1.442695
  %v2572 = vpow.pop %v2571
  %v2573 = vmul.f32 %v2563, 1.442695
  %v2574 = vpow.pop %v2573
  %v2575 = vmul.f32 %v2564, 1.442695
  %v2576 = vpow.pop %v2575
  %v2577 = vsel %vm601, %v2566, 0.0
  %2578 = vadd.xlane.f32.xlu0 %v2577
  %v2579 = vpop.xlane.xlu0 %2578
  %v2580 = vsel %vm601, %v2568, 0.0
  %2581 = vadd.xlane.f32.xlu0 %v2580
  %v2582 = vpop.xlane.xlu0 %2581
  %v2583 = vsel %vm601, %v2570, 0.0
  %2584 = vadd.xlane.f32.xlu0 %v2583
  %v2585 = vpop.xlane.xlu0 %2584
  %v2586 = vsel %vm601, %v2572, 0.0
  %2587 = vadd.xlane.f32.xlu0 %v2586
  %v2588 = vpop.xlane.xlu0 %2587
  %v2589 = vsel %vm601, %v2574, 0.0
  %2590 = vadd.xlane.f32.xlu0 %v2589
  %v2591 = vpop.xlane.xlu0 %2590
  %v2592 = vsel %vm601, %v2576, 0.0
  %2593 = vadd.xlane.f32.xlu0 %v2592
  %v2594 = vpop.xlane.xlu0 %2593
  %v2595 = vrcp.pop %v2579
  %v2596 = vrcp.pop %v2582
  %v2597 = vrcp.pop %v2585
  %v2598 = vrcp.pop %v2588
  %v2599 = vrcp.pop %v2591
  %v2600 = vrcp.pop %v2594
  %v2601 = vmul.f32 %v2566, %v2595
  %v2602 = vmul.f32 %v2568, %v2596
  %v2603 = vmul.f32 %v2570, %v2597
  %v2604 = vmul.f32 %v2572, %v2598
  %v2605 = vmul.f32 %v2574, %v2599
  %v2606 = vmul.f32 %v2576, %v2600
  %v2607 = vpack.c.bf16 %v2602, %v2601
  %v2608 = vpack.c.bf16 %v2604, %v2603
  %v2609 = vpack.c.bf16 %v2606, %v2605
  %v2610 = vpack.c.bf16 %v2429, %v2426
  %v2611 = vpack.c.bf16 %v2437, %v2434
  %v2612 = vpack.c.bf16 %v2445, %v2442
  %v2614 = vsel %vm601, %v2607, 0
  %v2617 = vsel %vm601, %v2608, 0
  %v2620 = vsel %vm601, %v2609, 0
  %2622 = vmatprep.subr.bf16.mxu0 0
  %2623 = vmatpush1.bf16.msra.mxu0 0
  %2624 = vmatprep.subr.bf16.mxu0 0
  %2625 = vmatpush1.bf16.msra.mxu0 0
  %2626 = vmatprep.subr.bf16.mxu0 0
  %2627 = vmatpush1.bf16.msra.mxu0 0
  %2628 = vmatprep.subr.bf16.mxu0 0
  %2629 = vmatpush1.bf16.msra.mxu0 0
  %2630 = vmatprep.subr.bf16.mxu0 0
  %2631 = vmatpush1.bf16.msra.mxu0 0
  %2632 = vmatprep.subr.bf16.mxu0 0
  %2633 = vmatpush1.bf16.msra.mxu0 %v2612
  %2634 = vmatprep.subr.bf16.mxu0 0
  %2635 = vmatpush1.bf16.msra.mxu0 %v2611
  %2636 = vmatprep.subr.bf16.mxu0 0
  %2637 = vmatpush1.bf16.msra.mxu0 %v2610
  %2638 = vmatprep.subr.bf16.mxu0 0
  %2639 = vmatpush2.bf16.msra.mxu0 0
  %2640 = vmatprep.subr.bf16.mxu0 0
  %2641 = vmatpush2.bf16.msra.mxu0 0
  %2642 = vmatprep.subr.bf16.mxu0 0
  %2643 = vmatpush2.bf16.msra.mxu0 0
  %2644 = vmatprep.subr.bf16.mxu0 0
  %2645 = vmatpush2.bf16.msra.mxu0 0
  %2646 = vmatprep.subr.bf16.mxu0 0
  %2647 = vmatpush2.bf16.msra.mxu0 0
  %2648 = vmatprep.subr.bf16.mxu0 0
  %2649 = vmatpush2.bf16.msra.mxu0 0
  %2650 = vmatprep.subr.bf16.mxu0 0
  %2651 = vmatpush2.bf16.msra.mxu0 0
  %2652 = vmatprep.subr.bf16.mxu0 0
  %2653 = vmatpush2.bf16.msra.mxu0 0
  %2654 = vmatprep.mubr.bf16.mxu0 0
  %2655 = vmatmul.mubr.bf16.gmra.mxu0 %v2614
  %v2656 = vpop.f32.mrf.mxu0
  %v2657 = vadd.f32 0.0, %v2656
  %v2658 = vpop.f32.mrf.mxu0
  %v2659 = vpop.f32.mrf.mxu0
  %v2660 = vadd.f32 0.0, %v2659
  %v2661 = vpop.f32.mrf.mxu0
  %2662 = vmatprep.mubr.bf16.mxu0 0
  %2663 = vmatmul.mubr.bf16.gmra.mxu0 %v2617
  %v2664 = vpop.f32.mrf.mxu0
  %v2665 = vadd.f32 0.0, %v2664
  %v2666 = vpop.f32.mrf.mxu0
  %v2667 = vpop.f32.mrf.mxu0
  %v2668 = vadd.f32 0.0, %v2667
  %v2669 = vpop.f32.mrf.mxu0
  %2670 = vmatprep.mubr.bf16.mxu0 0
  %2671 = vmatmul.mubr.bf16.gmra.mxu0 %v2620
  %v2672 = vpop.f32.mrf.mxu0
  %v2673 = vadd.f32 0.0, %v2672
  %v2674 = vpop.f32.mrf.mxu0
  %v2675 = vpop.f32.mrf.mxu0
  %v2676 = vadd.f32 0.0, %v2675
  %v2677 = vpop.f32.mrf.mxu0
  %2678 = vdwg.mxu0
  %v2679 = vpack.c.bf16 %v2660, %v2657
  %v2680 = vpack.c.bf16 %v2668, %v2665
  %v2681 = vpack.c.bf16 %v2676, %v2673
  %s2682 = scalar_lea.vmem %s10, 32
  %v2683 = vld [vmem:[%s2682] sm:$0xf]
  %v2684 = vld [vmem:[%s2682 + $0x4] sm:$0xf]
  %v2685 = vld [vmem:[%s2682 + $0x8] sm:$0xf]
  %v2686 = vld [vmem:[%s2682 + $0xc] sm:$0xf]
  %s2687 = scalar_lea.vmem %s4, 96
  %v2688 = vld [vmem:[%s2687] sm:$0xf]
  %v2689 = vld [vmem:[%s2687 + $0x4] sm:$0xf]
  %v2690 = vld [vmem:[%s2687 + $0x8] sm:$0xf]
  %v2691 = vld [vmem:[%s2687 + $0xc] sm:$0xf]
  %v2692 = vld [vmem:[%s2687 + $0x10] sm:$0xf]
  %v2693 = vld [vmem:[%s2687 + $0x14] sm:$0xf]
  %v2694 = vld [vmem:[%s2687 + $0x18] sm:$0xf]
  %v2695 = vld [vmem:[%s2687 + $0x1c] sm:$0xf]
  %s2696 = scalar_lea.vmem %s7, 3
  %v2697 = vld [vmem:[%s2696] sm:$0x1]
  %v2699 = vlaneseq
  %v2700 = vshrl.u32 %v2699, 7
  %v2701 = vsub.s32 0, %v2700
  %v2702 = vrot.slane %v2697, %v2701
  %v2712 = vunpack.c.l.b16 %v2688
  %v2713 = vunpack.c.l.b16 %v2689
  %v2714 = vunpack.c.l.b16 %v2690
  %v2715 = vunpack.c.l.b16 %v2691
  %v2716 = vunpack.c.l.b16 %v2692
  %v2717 = vunpack.c.l.b16 %v2693
  %v2718 = vunpack.c.l.b16 %v2694
  %v2719 = vunpack.c.l.b16 %v2695
  %v2720 = vpack.c.b16 %v2713, %v2712
  %v2721 = vpack.c.b16 %v2715, %v2714
  %v2722 = vpack.c.b16 %v2717, %v2716
  %v2723 = vpack.c.b16 %v2719, %v2718
  %2728 = vmatprep.subr.bf16.mxu0 0
  %2729 = vmatpush1.bf16.msra.mxu0 0
  %2730 = vmatprep.subr.bf16.mxu0 0
  %2731 = vmatpush1.bf16.msra.mxu0 0
  %2732 = vmatprep.subr.bf16.mxu0 0
  %2733 = vmatpush1.bf16.msra.mxu0 0
  %2734 = vmatprep.subr.bf16.mxu0 0
  %2735 = vmatpush1.bf16.msra.mxu0 0
  %2736 = vmatprep.subr.bf16.mxu0 0
  %2737 = vmatpush1.bf16.msra.mxu0 %v2723
  %2738 = vmatprep.subr.bf16.mxu0 0
  %2739 = vmatpush1.bf16.msra.mxu0 %v2722
  %2740 = vmatprep.subr.bf16.mxu0 0
  %2741 = vmatpush1.bf16.msra.mxu0 %v2721
  %2742 = vmatprep.subr.bf16.mxu0 0
  %2743 = vmatpush1.bf16.msra.mxu0 %v2720
  %2744 = vmatprep.subr.bf16.mxu0 0
  %2745 = vmatpush2.bf16.msra.mxu0 0
  %2746 = vmatprep.subr.bf16.mxu0 0
  %2747 = vmatpush2.bf16.msra.mxu0 0
  %2748 = vmatprep.subr.bf16.mxu0 0
  %2749 = vmatpush2.bf16.msra.mxu0 0
  %2750 = vmatprep.subr.bf16.mxu0 0
  %2751 = vmatpush2.bf16.msra.mxu0 0
  %2752 = vmatprep.subr.bf16.mxu0 0
  %2753 = vmatpush2.bf16.msra.mxu0 0
  %2754 = vmatprep.subr.bf16.mxu0 0
  %2755 = vmatpush2.bf16.msra.mxu0 0
  %2756 = vmatprep.subr.bf16.mxu0 0
  %2757 = vmatpush2.bf16.msra.mxu0 0
  %2758 = vmatprep.subr.bf16.mxu0 0
  %2759 = vmatpush2.bf16.msra.mxu0 0
  %2760 = vmatprep.mubr.bf16.mxu0 0
  %2761 = vmatmul.mubr.bf16.gmra.mxu0 %v2187
  %v2762 = vpop.f32.mrf.mxu0
  %v2763 = vadd.f32 %v2702, %v2762
  %v2764 = vpop.f32.mrf.mxu0
  %v2765 = vpop.f32.mrf.mxu0
  %v2766 = vadd.f32 %v2702, %v2765
  %v2767 = vpop.f32.mrf.mxu0
  %2768 = vmatprep.mubr.bf16.mxu0 0
  %2769 = vmatmul.mubr.bf16.gmra.mxu0 %v2190
  %v2770 = vpop.f32.mrf.mxu0
  %v2771 = vadd.f32 %v2702, %v2770
  %v2772 = vpop.f32.mrf.mxu0
  %v2773 = vpop.f32.mrf.mxu0
  %v2774 = vadd.f32 %v2702, %v2773
  %v2775 = vpop.f32.mrf.mxu0
  %2776 = vmatprep.mubr.bf16.mxu0 0
  %2777 = vmatmul.mubr.bf16.gmra.mxu0 %v2193
  %v2778 = vpop.f32.mrf.mxu0
  %v2779 = vadd.f32 %v2702, %v2778
  %v2780 = vpop.f32.mrf.mxu0
  %v2781 = vpop.f32.mrf.mxu0
  %v2782 = vadd.f32 %v2702, %v2781
  %v2783 = vpop.f32.mrf.mxu0
  %2784 = vdwg.mxu0
  %s2785 = scalar_lea.vmem %s5, 96
  %v2786 = vld [vmem:[%s2785] sm:$0xf]
  %v2787 = vld [vmem:[%s2785 + $0x4] sm:$0xf]
  %v2788 = vld [vmem:[%s2785 + $0x8] sm:$0xf]
  %v2789 = vld [vmem:[%s2785 + $0xc] sm:$0xf]
  %v2790 = vld [vmem:[%s2785 + $0x10] sm:$0xf]
  %v2791 = vld [vmem:[%s2785 + $0x14] sm:$0xf]
  %v2792 = vld [vmem:[%s2785 + $0x18] sm:$0xf]
  %v2793 = vld [vmem:[%s2785 + $0x1c] sm:$0xf]
  %s2794 = scalar_lea.vmem %s8, 3
  %v2795 = vld [vmem:[%s2794] sm:$0x1]
  %v2797 = vlaneseq
  %v2798 = vshrl.u32 %v2797, 7
  %v2799 = vsub.s32 0, %v2798
  %v2800 = vrot.slane %v2795, %v2799
  %v2810 = vunpack.c.l.b16 %v2786
  %v2811 = vunpack.c.l.b16 %v2787
  %v2812 = vunpack.c.l.b16 %v2788
  %v2813 = vunpack.c.l.b16 %v2789
  %v2814 = vunpack.c.l.b16 %v2790
  %v2815 = vunpack.c.l.b16 %v2791
  %v2816 = vunpack.c.l.b16 %v2792
  %v2817 = vunpack.c.l.b16 %v2793
  %v2818 = vpack.c.b16 %v2811, %v2810
  %v2819 = vpack.c.b16 %v2813, %v2812
  %v2820 = vpack.c.b16 %v2815, %v2814
  %v2821 = vpack.c.b16 %v2817, %v2816
  %2826 = vmatprep.subr.bf16.mxu0 0
  %2827 = vmatpush1.bf16.msra.mxu0 0
  %2828 = vmatprep.subr.bf16.mxu0 0
  %2829 = vmatpush1.bf16.msra.mxu0 0
  %2830 = vmatprep.subr.bf16.mxu0 0
  %2831 = vmatpush1.bf16.msra.mxu0 0
  %2832 = vmatprep.subr.bf16.mxu0 0
  %2833 = vmatpush1.bf16.msra.mxu0 0
  %2834 = vmatprep.subr.bf16.mxu0 0
  %2835 = vmatpush1.bf16.msra.mxu0 %v2821
  %2836 = vmatprep.subr.bf16.mxu0 0
  %2837 = vmatpush1.bf16.msra.mxu0 %v2820
  %2838 = vmatprep.subr.bf16.mxu0 0
  %2839 = vmatpush1.bf16.msra.mxu0 %v2819
  %2840 = vmatprep.subr.bf16.mxu0 0
  %2841 = vmatpush1.bf16.msra.mxu0 %v2818
  %2842 = vmatprep.subr.bf16.mxu0 0
  %2843 = vmatpush2.bf16.msra.mxu0 0
  %2844 = vmatprep.subr.bf16.mxu0 0
  %2845 = vmatpush2.bf16.msra.mxu0 0
  %2846 = vmatprep.subr.bf16.mxu0 0
  %2847 = vmatpush2.bf16.msra.mxu0 0
  %2848 = vmatprep.subr.bf16.mxu0 0
  %2849 = vmatpush2.bf16.msra.mxu0 0
  %2850 = vmatprep.subr.bf16.mxu0 0
  %2851 = vmatpush2.bf16.msra.mxu0 0
  %2852 = vmatprep.subr.bf16.mxu0 0
  %2853 = vmatpush2.bf16.msra.mxu0 0
  %2854 = vmatprep.subr.bf16.mxu0 0
  %2855 = vmatpush2.bf16.msra.mxu0 0
  %2856 = vmatprep.subr.bf16.mxu0 0
  %2857 = vmatpush2.bf16.msra.mxu0 0
  %2858 = vmatprep.mubr.bf16.mxu0 0
  %2859 = vmatmul.mubr.bf16.gmra.mxu0 %v2187
  %v2860 = vpop.f32.mrf.mxu0
  %v2861 = vadd.f32 %v2800, %v2860
  %v2862 = vpop.f32.mrf.mxu0
  %v2863 = vpop.f32.mrf.mxu0
  %v2864 = vadd.f32 %v2800, %v2863
  %v2865 = vpop.f32.mrf.mxu0
  %2866 = vmatprep.mubr.bf16.mxu0 0
  %2867 = vmatmul.mubr.bf16.gmra.mxu0 %v2190
  %v2868 = vpop.f32.mrf.mxu0
  %v2869 = vadd.f32 %v2800, %v2868
  %v2870 = vpop.f32.mrf.mxu0
  %v2871 = vpop.f32.mrf.mxu0
  %v2872 = vadd.f32 %v2800, %v2871
  %v2873 = vpop.f32.mrf.mxu0
  %2874 = vmatprep.mubr.bf16.mxu0 0
  %2875 = vmatmul.mubr.bf16.gmra.mxu0 %v2193
  %v2876 = vpop.f32.mrf.mxu0
  %v2877 = vadd.f32 %v2800, %v2876
  %v2878 = vpop.f32.mrf.mxu0
  %v2879 = vpop.f32.mrf.mxu0
  %v2880 = vadd.f32 %v2800, %v2879
  %v2881 = vpop.f32.mrf.mxu0
  %2882 = vdwg.mxu0
  %s2883 = scalar_lea.vmem %s6, 96
  %v2884 = vld [vmem:[%s2883] sm:$0xf]
  %v2885 = vld [vmem:[%s2883 + $0x4] sm:$0xf]
  %v2886 = vld [vmem:[%s2883 + $0x8] sm:$0xf]
  %v2887 = vld [vmem:[%s2883 + $0xc] sm:$0xf]
  %v2888 = vld [vmem:[%s2883 + $0x10] sm:$0xf]
  %v2889 = vld [vmem:[%s2883 + $0x14] sm:$0xf]
  %v2890 = vld [vmem:[%s2883 + $0x18] sm:$0xf]
  %v2891 = vld [vmem:[%s2883 + $0x1c] sm:$0xf]
  %s2892 = scalar_lea.vmem %s9, 3
  %v2893 = vld [vmem:[%s2892] sm:$0x1]
  %v2895 = vlaneseq
  %v2896 = vshrl.u32 %v2895, 7
  %v2897 = vsub.s32 0, %v2896
  %v2898 = vrot.slane %v2893, %v2897
  %v2908 = vunpack.c.l.b16 %v2884
  %v2909 = vunpack.c.l.b16 %v2885
  %v2910 = vunpack.c.l.b16 %v2886
  %v2911 = vunpack.c.l.b16 %v2887
  %v2912 = vunpack.c.l.b16 %v2888
  %v2913 = vunpack.c.l.b16 %v2889
  %v2914 = vunpack.c.l.b16 %v2890
  %v2915 = vunpack.c.l.b16 %v2891
  %v2916 = vpack.c.b16 %v2909, %v2908
  %v2917 = vpack.c.b16 %v2911, %v2910
  %v2918 = vpack.c.b16 %v2913, %v2912
  %v2919 = vpack.c.b16 %v2915, %v2914
  %2924 = vmatprep.subr.bf16.mxu0 0
  %2925 = vmatpush1.bf16.msra.mxu0 0
  %2926 = vmatprep.subr.bf16.mxu0 0
  %2927 = vmatpush1.bf16.msra.mxu0 0
  %2928 = vmatprep.subr.bf16.mxu0 0
  %2929 = vmatpush1.bf16.msra.mxu0 0
  %2930 = vmatprep.subr.bf16.mxu0 0
  %2931 = vmatpush1.bf16.msra.mxu0 0
  %2932 = vmatprep.subr.bf16.mxu0 0
  %2933 = vmatpush1.bf16.msra.mxu0 %v2919
  %2934 = vmatprep.subr.bf16.mxu0 0
  %2935 = vmatpush1.bf16.msra.mxu0 %v2918
  %2936 = vmatprep.subr.bf16.mxu0 0
  %2937 = vmatpush1.bf16.msra.mxu0 %v2917
  %2938 = vmatprep.subr.bf16.mxu0 0
  %2939 = vmatpush1.bf16.msra.mxu0 %v2916
  %2940 = vmatprep.subr.bf16.mxu0 0
  %2941 = vmatpush2.bf16.msra.mxu0 0
  %2942 = vmatprep.subr.bf16.mxu0 0
  %2943 = vmatpush2.bf16.msra.mxu0 0
  %2944 = vmatprep.subr.bf16.mxu0 0
  %2945 = vmatpush2.bf16.msra.mxu0 0
  %2946 = vmatprep.subr.bf16.mxu0 0
  %2947 = vmatpush2.bf16.msra.mxu0 0
  %2948 = vmatprep.subr.bf16.mxu0 0
  %2949 = vmatpush2.bf16.msra.mxu0 0
  %2950 = vmatprep.subr.bf16.mxu0 0
  %2951 = vmatpush2.bf16.msra.mxu0 0
  %2952 = vmatprep.subr.bf16.mxu0 0
  %2953 = vmatpush2.bf16.msra.mxu0 0
  %2954 = vmatprep.subr.bf16.mxu0 0
  %2955 = vmatpush2.bf16.msra.mxu0 0
  %2956 = vmatprep.mubr.bf16.mxu0 0
  %2957 = vmatmul.mubr.bf16.gmra.mxu0 %v2187
  %v2958 = vpop.f32.mrf.mxu0
  %v2959 = vadd.f32 %v2898, %v2958
  %v2960 = vpop.f32.mrf.mxu0
  %v2961 = vpop.f32.mrf.mxu0
  %v2962 = vadd.f32 %v2898, %v2961
  %v2963 = vpop.f32.mrf.mxu0
  %2964 = vmatprep.mubr.bf16.mxu0 0
  %2965 = vmatmul.mubr.bf16.gmra.mxu0 %v2190
  %v2966 = vpop.f32.mrf.mxu0
  %v2967 = vadd.f32 %v2898, %v2966
  %v2968 = vpop.f32.mrf.mxu0
  %v2969 = vpop.f32.mrf.mxu0
  %v2970 = vadd.f32 %v2898, %v2969
  %v2971 = vpop.f32.mrf.mxu0
  %2972 = vmatprep.mubr.bf16.mxu0 0
  %2973 = vmatmul.mubr.bf16.gmra.mxu0 %v2193
  %v2974 = vpop.f32.mrf.mxu0
  %v2975 = vadd.f32 %v2898, %v2974
  %v2976 = vpop.f32.mrf.mxu0
  %v2977 = vpop.f32.mrf.mxu0
  %v2978 = vadd.f32 %v2898, %v2977
  %v2979 = vpop.f32.mrf.mxu0
  %2980 = vdwg.mxu0
  %v2981 = vpack.c.bf16 %v2766, %v2763
  %v2982 = vpack.c.bf16 %v2774, %v2771
  %v2983 = vpack.c.bf16 %v2782, %v2779
  %v2984 = vpack.c.bf16 %v2864, %v2861
  %v2985 = vpack.c.bf16 %v2872, %v2869
  %v2986 = vpack.c.bf16 %v2880, %v2877
  %v2988 = vsel %vm513, %v2981, 0
  %v2991 = vsel %vm513, %v2982, 0
  %v2994 = vsel %vm513, %v2983, 0
  %v2997 = vsel %vm513, %v2984, 0
  %v3000 = vsel %vm513, %v2985, 0
  %v3003 = vsel %vm513, %v2986, 0
  %3005 = vmatprep.subr.bf16.mxu0 0
  %3006 = vmatpush1.bf16.xpose.msra.mxu0 0
  %3007 = vmatprep.subr.bf16.mxu0 0
  %3008 = vmatpush1.bf16.xpose.msra.mxu0 0
  %3009 = vmatprep.subr.bf16.mxu0 0
  %3010 = vmatpush1.bf16.xpose.msra.mxu0 0
  %3011 = vmatprep.subr.bf16.mxu0 0
  %3012 = vmatpush1.bf16.xpose.msra.mxu0 0
  %3013 = vmatprep.subr.bf16.mxu0 0
  %3014 = vmatpush1.bf16.xpose.msra.mxu0 0
  %3015 = vmatprep.subr.bf16.mxu0 0
  %3016 = vmatpush1.bf16.xpose.msra.mxu0 %v3003
  %3017 = vmatprep.subr.bf16.mxu0 0
  %3018 = vmatpush1.bf16.xpose.msra.mxu0 %v3000
  %3019 = vmatprep.subr.bf16.mxu0 0
  %3020 = vmatpush1.bf16.xpose.msra.mxu0 %v2997
  %3021 = vmatprep.subr.bf16.mxu0 0
  %3022 = vmatpush2.bf16.xpose.msra.mxu0 0
  %3023 = vmatprep.subr.bf16.mxu0 0
  %3024 = vmatpush2.bf16.xpose.msra.mxu0 0
  %3025 = vmatprep.subr.bf16.mxu0 0
  %3026 = vmatpush2.bf16.xpose.msra.mxu0 0
  %3027 = vmatprep.subr.bf16.mxu0 0
  %3028 = vmatpush2.bf16.xpose.msra.mxu0 0
  %3029 = vmatprep.subr.bf16.mxu0 0
  %3030 = vmatpush2.bf16.xpose.msra.mxu0 0
  %3031 = vmatprep.subr.bf16.mxu0 0
  %3032 = vmatpush2.bf16.xpose.msra.mxu0 0
  %3033 = vmatprep.subr.bf16.mxu0 0
  %3034 = vmatpush2.bf16.xpose.msra.mxu0 0
  %3035 = vmatprep.subr.bf16.mxu0 0
  %3036 = vmatpush2.bf16.xpose.msra.mxu0 0
  %3037 = vmatprep.mubr.bf16.mxu0 0
  %3038 = vmatmul.mubr.bf16.gmra.mxu0 %v2988
  %v3039 = vpop.f32.mrf.mxu0
  %v3040 = vadd.f32 0.0, %v3039
  %v3041 = vpop.f32.mrf.mxu0
  %v3042 = vpop.f32.mrf.mxu0
  %v3043 = vadd.f32 0.0, %v3042
  %v3044 = vpop.f32.mrf.mxu0
  %3045 = vmatprep.mubr.bf16.mxu0 0
  %3046 = vmatmul.mubr.bf16.gmra.mxu0 %v2991
  %v3047 = vpop.f32.mrf.mxu0
  %v3048 = vadd.f32 0.0, %v3047
  %v3049 = vpop.f32.mrf.mxu0
  %v3050 = vpop.f32.mrf.mxu0
  %v3051 = vadd.f32 0.0, %v3050
  %v3052 = vpop.f32.mrf.mxu0
  %3053 = vmatprep.mubr.bf16.mxu0 0
  %3054 = vmatmul.mubr.bf16.gmra.mxu0 %v2994
  %v3055 = vpop.f32.mrf.mxu0
  %v3056 = vadd.f32 0.0, %v3055
  %v3057 = vpop.f32.mrf.mxu0
  %v3058 = vpop.f32.mrf.mxu0
  %v3059 = vadd.f32 0.0, %v3058
  %v3060 = vpop.f32.mrf.mxu0
  %3061 = vdwg.mxu0
  %v3062 = vmul.f32 %v3040, 0.17677669
  %v3063 = vmul.f32 %v3043, 0.17677669
  %v3064 = vmul.f32 %v3048, 0.17677669
  %v3065 = vmul.f32 %v3051, 0.17677669
  %v3066 = vmul.f32 %v3056, 0.17677669
  %v3067 = vmul.f32 %v3059, 0.17677669
  %v3068 = vadd.f32 %v3062, %v83
  %v3069 = vadd.f32 %v3063, %v84
  %v3070 = vadd.f32 %v3064, %v85
  %v3071 = vadd.f32 %v3065, %v86
  %v3072 = vadd.f32 %v3066, %v87
  %v3073 = vadd.f32 %v3067, %v88
  %v3074 = vsel %vm601, %v3068, -inf
  %3075 = vmax.xlane.f32.xlu0 %v3074
  %v3076 = vpop.xlane.xlu0 %3075
  %v3077 = vsel %vm601, %v3069, -inf
  %3078 = vmax.xlane.f32.xlu0 %v3077
  %v3079 = vpop.xlane.xlu0 %3078
  %v3080 = vsel %vm601, %v3070, -inf
  %3081 = vmax.xlane.f32.xlu0 %v3080
  %v3082 = vpop.xlane.xlu0 %3081
  %v3083 = vsel %vm601, %v3071, -inf
  %3084 = vmax.xlane.f32.xlu0 %v3083
  %v3085 = vpop.xlane.xlu0 %3084
  %v3086 = vsel %vm601, %v3072, -inf
  %3087 = vmax.xlane.f32.xlu0 %v3086
  %v3088 = vpop.xlane.xlu0 %3087
  %v3089 = vsel %vm601, %v3073, -inf
  %3090 = vmax.xlane.f32.xlu0 %v3089
  %v3091 = vpop.xlane.xlu0 %3090
  %v3092 = vsub.f32 %v3068, %v3076
  %v3093 = vsub.f32 %v3069, %v3079
  %v3094 = vsub.f32 %v3070, %v3082
  %v3095 = vsub.f32 %v3071, %v3085
  %v3096 = vsub.f32 %v3072, %v3088
  %v3097 = vsub.f32 %v3073, %v3091
  %v3098 = vmul.f32 %v3092, 1.442695
  %v3099 = vpow.pop %v3098
  %v3100 = vmul.f32 %v3093, 1.442695
  %v3101 = vpow.pop %v3100
  %v3102 = vmul.f32 %v3094, 1.442695
  %v3103 = vpow.pop %v3102
  %v3104 = vmul.f32 %v3095, 1.442695
  %v3105 = vpow.pop %v3104
  %v3106 = vmul.f32 %v3096, 1.442695
  %v3107 = vpow.pop %v3106
  %v3108 = vmul.f32 %v3097, 1.442695
  %v3109 = vpow.pop %v3108
  %v3110 = vsel %vm601, %v3099, 0.0
  %3111 = vadd.xlane.f32.xlu0 %v3110
  %v3112 = vpop.xlane.xlu0 %3111
  %v3113 = vsel %vm601, %v3101, 0.0
  %3114 = vadd.xlane.f32.xlu0 %v3113
  %v3115 = vpop.xlane.xlu0 %3114
  %v3116 = vsel %vm601, %v3103, 0.0
  %3117 = vadd.xlane.f32.xlu0 %v3116
  %v3118 = vpop.xlane.xlu0 %3117
  %v3119 = vsel %vm601, %v3105, 0.0
  %3120 = vadd.xlane.f32.xlu0 %v3119
  %v3121 = vpop.xlane.xlu0 %3120
  %v3122 = vsel %vm601, %v3107, 0.0
  %3123 = vadd.xlane.f32.xlu0 %v3122
  %v3124 = vpop.xlane.xlu0 %3123
  %v3125 = vsel %vm601, %v3109, 0.0
  %3126 = vadd.xlane.f32.xlu0 %v3125
  %v3127 = vpop.xlane.xlu0 %3126
  %v3128 = vrcp.pop %v3112
  %v3129 = vrcp.pop %v3115
  %v3130 = vrcp.pop %v3118
  %v3131 = vrcp.pop %v3121
  %v3132 = vrcp.pop %v3124
  %v3133 = vrcp.pop %v3127
  %v3134 = vmul.f32 %v3099, %v3128
  %v3135 = vmul.f32 %v3101, %v3129
  %v3136 = vmul.f32 %v3103, %v3130
  %v3137 = vmul.f32 %v3105, %v3131
  %v3138 = vmul.f32 %v3107, %v3132
  %v3139 = vmul.f32 %v3109, %v3133
  %v3140 = vpack.c.bf16 %v3135, %v3134
  %v3141 = vpack.c.bf16 %v3137, %v3136
  %v3142 = vpack.c.bf16 %v3139, %v3138
  %v3143 = vpack.c.bf16 %v2962, %v2959
  %v3144 = vpack.c.bf16 %v2970, %v2967
  %v3145 = vpack.c.bf16 %v2978, %v2975
  %v3147 = vsel %vm601, %v3140, 0
  %v3150 = vsel %vm601, %v3141, 0
  %v3153 = vsel %vm601, %v3142, 0
  %3155 = vmatprep.subr.bf16.mxu0 0
  %3156 = vmatpush1.bf16.msra.mxu0 0
  %3157 = vmatprep.subr.bf16.mxu0 0
  %3158 = vmatpush1.bf16.msra.mxu0 0
  %3159 = vmatprep.subr.bf16.mxu0 0
  %3160 = vmatpush1.bf16.msra.mxu0 0
  %3161 = vmatprep.subr.bf16.mxu0 0
  %3162 = vmatpush1.bf16.msra.mxu0 0
  %3163 = vmatprep.subr.bf16.mxu0 0
  %3164 = vmatpush1.bf16.msra.mxu0 0
  %3165 = vmatprep.subr.bf16.mxu0 0
  %3166 = vmatpush1.bf16.msra.mxu0 %v3145
  %3167 = vmatprep.subr.bf16.mxu0 0
  %3168 = vmatpush1.bf16.msra.mxu0 %v3144
  %3169 = vmatprep.subr.bf16.mxu0 0
  %3170 = vmatpush1.bf16.msra.mxu0 %v3143
  %3171 = vmatprep.subr.bf16.mxu0 0
  %3172 = vmatpush2.bf16.msra.mxu0 0
  %3173 = vmatprep.subr.bf16.mxu0 0
  %3174 = vmatpush2.bf16.msra.mxu0 0
  %3175 = vmatprep.subr.bf16.mxu0 0
  %3176 = vmatpush2.bf16.msra.mxu0 0
  %3177 = vmatprep.subr.bf16.mxu0 0
  %3178 = vmatpush2.bf16.msra.mxu0 0
  %3179 = vmatprep.subr.bf16.mxu0 0
  %3180 = vmatpush2.bf16.msra.mxu0 0
  %3181 = vmatprep.subr.bf16.mxu0 0
  %3182 = vmatpush2.bf16.msra.mxu0 0
  %3183 = vmatprep.subr.bf16.mxu0 0
  %3184 = vmatpush2.bf16.msra.mxu0 0
  %3185 = vmatprep.subr.bf16.mxu0 0
  %3186 = vmatpush2.bf16.msra.mxu0 0
  %3187 = vmatprep.mubr.bf16.mxu0 0
  %3188 = vmatmul.mubr.bf16.gmra.mxu0 %v3147
  %v3189 = vpop.f32.mrf.mxu0
  %v3190 = vadd.f32 0.0, %v3189
  %v3191 = vpop.f32.mrf.mxu0
  %v3192 = vpop.f32.mrf.mxu0
  %v3193 = vadd.f32 0.0, %v3192
  %v3194 = vpop.f32.mrf.mxu0
  %3195 = vmatprep.mubr.bf16.mxu0 0
  %3196 = vmatmul.mubr.bf16.gmra.mxu0 %v3150
  %v3197 = vpop.f32.mrf.mxu0
  %v3198 = vadd.f32 0.0, %v3197
  %v3199 = vpop.f32.mrf.mxu0
  %v3200 = vpop.f32.mrf.mxu0
  %v3201 = vadd.f32 0.0, %v3200
  %v3202 = vpop.f32.mrf.mxu0
  %3203 = vmatprep.mubr.bf16.mxu0 0
  %3204 = vmatmul.mubr.bf16.gmra.mxu0 %v3153
  %v3205 = vpop.f32.mrf.mxu0
  %v3206 = vadd.f32 0.0, %v3205
  %v3207 = vpop.f32.mrf.mxu0
  %v3208 = vpop.f32.mrf.mxu0
  %v3209 = vadd.f32 0.0, %v3208
  %v3210 = vpop.f32.mrf.mxu0
  %3211 = vdwg.mxu0
  %v3212 = vpack.c.bf16 %v3193, %v3190
  %v3213 = vpack.c.bf16 %v3201, %v3198
  %v3214 = vpack.c.bf16 %v3209, %v3206
  %s3215 = scalar_lea.vmem %s10, 48
  %v3216 = vld [vmem:[%s3215] sm:$0xf]
  %v3217 = vld [vmem:[%s3215 + $0x4] sm:$0xf]
  %v3218 = vld [vmem:[%s3215 + $0x8] sm:$0xf]
  %v3219 = vld [vmem:[%s3215 + $0xc] sm:$0xf]
  %v3224 = vunpack.c.l.b16 %v3216
  %v3225 = vunpack.c.l.b16 %v3217
  %v3226 = vunpack.c.l.b16 %v3218
  %v3227 = vunpack.c.l.b16 %v3219
  %v3228 = vpack.c.b16 %v3225, %v3224
  %v3229 = vpack.c.b16 %v3227, %v3226
  %v3233 = vsel %vm513, %v3212, 0
  %v3236 = vsel %vm513, %v3213, 0
  %v3239 = vsel %vm513, %v3214, 0
  %3241 = vmatprep.subr.bf16.mxu0 0
  %3242 = vmatpush1.bf16.msra.mxu0 0
  %3243 = vmatprep.subr.bf16.mxu0 0
  %3244 = vmatpush1.bf16.msra.mxu0 0
  %3245 = vmatprep.subr.bf16.mxu0 0
  %3246 = vmatpush1.bf16.msra.mxu0 0
  %3247 = vmatprep.subr.bf16.mxu0 0
  %3248 = vmatpush1.bf16.msra.mxu0 0
  %3249 = vmatprep.subr.bf16.mxu0 0
  %3250 = vmatpush1.bf16.msra.mxu0 0
  %3251 = vmatprep.subr.bf16.mxu0 0
  %3252 = vmatpush1.bf16.msra.mxu0 0
  %3253 = vmatprep.subr.bf16.mxu0 0
  %3254 = vmatpush1.bf16.msra.mxu0 %v3229
  %3255 = vmatprep.subr.bf16.mxu0 0
  %3256 = vmatpush1.bf16.msra.mxu0 %v3228
  %3257 = vmatprep.subr.bf16.mxu0 0
  %3258 = vmatpush2.bf16.msra.mxu0 0
  %3259 = vmatprep.subr.bf16.mxu0 0
  %3260 = vmatpush2.bf16.msra.mxu0 0
  %3261 = vmatprep.subr.bf16.mxu0 0
  %3262 = vmatpush2.bf16.msra.mxu0 0
  %3263 = vmatprep.subr.bf16.mxu0 0
  %3264 = vmatpush2.bf16.msra.mxu0 0
  %3265 = vmatprep.subr.bf16.mxu0 0
  %3266 = vmatpush2.bf16.msra.mxu0 0
  %3267 = vmatprep.subr.bf16.mxu0 0
  %3268 = vmatpush2.bf16.msra.mxu0 0
  %3269 = vmatprep.subr.bf16.mxu0 0
  %3270 = vmatpush2.bf16.msra.mxu0 0
  %3271 = vmatprep.subr.bf16.mxu0 0
  %3272 = vmatpush2.bf16.msra.mxu0 0
  %3273 = vmatprep.mubr.bf16.mxu0 0
  %3274 = vmatmul.mubr.bf16.gmra.mxu0 %v3233
  %v3275 = vpop.f32.mrf.mxu0
  %v3276 = vadd.f32 0.0, %v3275
  %v3277 = vpop.f32.mrf.mxu0
  %v3278 = vpop.f32.mrf.mxu0
  %v3279 = vadd.f32 0.0, %v3278
  %v3280 = vpop.f32.mrf.mxu0
  %3281 = vmatprep.mubr.bf16.mxu0 0
  %3282 = vmatmul.mubr.bf16.gmra.mxu0 %v3236
  %v3283 = vpop.f32.mrf.mxu0
  %v3284 = vadd.f32 0.0, %v3283
  %v3285 = vpop.f32.mrf.mxu0
  %v3286 = vpop.f32.mrf.mxu0
  %v3287 = vadd.f32 0.0, %v3286
  %v3288 = vpop.f32.mrf.mxu0
  %3289 = vmatprep.mubr.bf16.mxu0 0
  %3290 = vmatmul.mubr.bf16.gmra.mxu0 %v3239
  %v3291 = vpop.f32.mrf.mxu0
  %v3292 = vadd.f32 0.0, %v3291
  %v3293 = vpop.f32.mrf.mxu0
  %v3294 = vpop.f32.mrf.mxu0
  %v3295 = vadd.f32 0.0, %v3294
  %v3296 = vpop.f32.mrf.mxu0
  %3297 = vdwg.mxu0
  %v3302 = vunpack.c.l.b16 %v2683
  %v3303 = vunpack.c.l.b16 %v2684
  %v3304 = vunpack.c.l.b16 %v2685
  %v3305 = vunpack.c.l.b16 %v2686
  %v3306 = vpack.c.b16 %v3303, %v3302
  %v3307 = vpack.c.b16 %v3305, %v3304
  %v3311 = vsel %vm513, %v2679, 0
  %v3314 = vsel %vm513, %v2680, 0
  %v3317 = vsel %vm513, %v2681, 0
  %3319 = vmatprep.subr.bf16.mxu0 0
  %3320 = vmatpush1.bf16.msra.mxu0 0
  %3321 = vmatprep.subr.bf16.mxu0 0
  %3322 = vmatpush1.bf16.msra.mxu0 0
  %3323 = vmatprep.subr.bf16.mxu0 0
  %3324 = vmatpush1.bf16.msra.mxu0 0
  %3325 = vmatprep.subr.bf16.mxu0 0
  %3326 = vmatpush1.bf16.msra.mxu0 0
  %3327 = vmatprep.subr.bf16.mxu0 0
  %3328 = vmatpush1.bf16.msra.mxu0 0
  %3329 = vmatprep.subr.bf16.mxu0 0
  %3330 = vmatpush1.bf16.msra.mxu0 0
  %3331 = vmatprep.subr.bf16.mxu0 0
  %3332 = vmatpush1.bf16.msra.mxu0 %v3307
  %3333 = vmatprep.subr.bf16.mxu0 0
  %3334 = vmatpush1.bf16.msra.mxu0 %v3306
  %3335 = vmatprep.subr.bf16.mxu0 0
  %3336 = vmatpush2.bf16.msra.mxu0 0
  %3337 = vmatprep.subr.bf16.mxu0 0
  %3338 = vmatpush2.bf16.msra.mxu0 0
  %3339 = vmatprep.subr.bf16.mxu0 0
  %3340 = vmatpush2.bf16.msra.mxu0 0
  %3341 = vmatprep.subr.bf16.mxu0 0
  %3342 = vmatpush2.bf16.msra.mxu0 0
  %3343 = vmatprep.subr.bf16.mxu0 0
  %3344 = vmatpush2.bf16.msra.mxu0 0
  %3345 = vmatprep.subr.bf16.mxu0 0
  %3346 = vmatpush2.bf16.msra.mxu0 0
  %3347 = vmatprep.subr.bf16.mxu0 0
  %3348 = vmatpush2.bf16.msra.mxu0 0
  %3349 = vmatprep.subr.bf16.mxu0 0
  %3350 = vmatpush2.bf16.msra.mxu0 0
  %3351 = vmatprep.mubr.bf16.mxu0 0
  %3352 = vmatmul.mubr.bf16.gmra.mxu0 %v3311
  %v3353 = vpop.f32.mrf.mxu0
  %v3354 = vadd.f32 %v3276, %v3353
  %v3355 = vpop.f32.mrf.mxu0
  %v3356 = vpop.f32.mrf.mxu0
  %v3357 = vadd.f32 %v3279, %v3356
  %v3358 = vpop.f32.mrf.mxu0
  %3359 = vmatprep.mubr.bf16.mxu0 0
  %3360 = vmatmul.mubr.bf16.gmra.mxu0 %v3314
  %v3361 = vpop.f32.mrf.mxu0
  %v3362 = vadd.f32 %v3284, %v3361
  %v3363 = vpop.f32.mrf.mxu0
  %v3364 = vpop.f32.mrf.mxu0
  %v3365 = vadd.f32 %v3287, %v3364
  %v3366 = vpop.f32.mrf.mxu0
  %3367 = vmatprep.mubr.bf16.mxu0 0
  %3368 = vmatmul.mubr.bf16.gmra.mxu0 %v3317
  %v3369 = vpop.f32.mrf.mxu0
  %v3370 = vadd.f32 %v3292, %v3369
  %v3371 = vpop.f32.mrf.mxu0
  %v3372 = vpop.f32.mrf.mxu0
  %v3373 = vadd.f32 %v3295, %v3372
  %v3374 = vpop.f32.mrf.mxu0
  %3375 = vdwg.mxu0
  %v3376 = vadd.f32 %v2018, %v3354
  %v3377 = vadd.f32 %v2019, %v3357
  %v3378 = vadd.f32 %v2020, %v3362
  %v3379 = vadd.f32 %v2021, %v3365
  %v3380 = vadd.f32 %v2022, %v3370
  %v3381 = vadd.f32 %v2023, %v3373
  %s3382 = scalar_lea.vmem %s11, 1
  %v3383 = vld [vmem:[%s3382] sm:$0x1]
  %v3385 = vlaneseq
  %v3386 = vshrl.u32 %v3385, 7
  %v3387 = vsub.s32 0, %v3386
  %v3388 = vrot.slane %v3383, %v3387
  %v3390 = vadd.f32 %v3376, %v3388
  %v3391 = vadd.f32 %v3377, %v3388
  %v3392 = vadd.f32 %v3378, %v3388
  %v3393 = vadd.f32 %v3379, %v3388
  %v3394 = vadd.f32 %v3380, %v3388
  %v3395 = vadd.f32 %v3381, %v3388
  %s3396 = scalar_lea.vmem %s12, 1
  %v3397 = vld [vmem:[%s3396] sm:$0x1]
  %s3398 = scalar_lea.vmem %s13, 1
  %v3399 = vld [vmem:[%s3398] sm:$0x1]
  %v3400 = vsel %vm91, %v3390, 0.0
  %3401 = vadd.xlane.f32.xlu0 %v3400
  %v3402 = vpop.xlane.xlu0 %3401
  %v3403 = vsel %vm91, %v3391, 0.0
  %3404 = vadd.xlane.f32.xlu0 %v3403
  %v3405 = vpop.xlane.xlu0 %3404
  %v3406 = vsel %vm91, %v3392, 0.0
  %3407 = vadd.xlane.f32.xlu0 %v3406
  %v3408 = vpop.xlane.xlu0 %3407
  %v3409 = vsel %vm91, %v3393, 0.0
  %3410 = vadd.xlane.f32.xlu0 %v3409
  %v3411 = vpop.xlane.xlu0 %3410
  %v3412 = vsel %vm91, %v3394, 0.0
  %3413 = vadd.xlane.f32.xlu0 %v3412
  %v3414 = vpop.xlane.xlu0 %3413
  %v3415 = vsel %vm91, %v3395, 0.0
  %3416 = vadd.xlane.f32.xlu0 %v3415
  %v3417 = vpop.xlane.xlu0 %3416
  %v3418 = vmul.f32 %v3402, %v110
  %v3419 = vmul.f32 %v3405, %v110
  %v3420 = vmul.f32 %v3408, %v110
  %v3421 = vmul.f32 %v3411, %v110
  %v3422 = vmul.f32 %v3414, %v110
  %v3423 = vmul.f32 %v3417, %v110
  %v3424 = vmul.f32 %v3390, %v3390
  %v3425 = vmul.f32 %v3391, %v3391
  %v3426 = vmul.f32 %v3392, %v3392
  %v3427 = vmul.f32 %v3393, %v3393
  %v3428 = vmul.f32 %v3394, %v3394
  %v3429 = vmul.f32 %v3395, %v3395
  %v3430 = vsel %vm91, %v3424, 0.0
  %3431 = vadd.xlane.f32.xlu0 %v3430
  %v3432 = vpop.xlane.xlu0 %3431
  %v3433 = vsel %vm91, %v3425, 0.0
  %3434 = vadd.xlane.f32.xlu0 %v3433
  %v3435 = vpop.xlane.xlu0 %3434
  %v3436 = vsel %vm91, %v3426, 0.0
  %3437 = vadd.xlane.f32.xlu0 %v3436
  %v3438 = vpop.xlane.xlu0 %3437
  %v3439 = vsel %vm91, %v3427, 0.0
  %3440 = vadd.xlane.f32.xlu0 %v3439
  %v3441 = vpop.xlane.xlu0 %3440
  %v3442 = vsel %vm91, %v3428, 0.0
  %3443 = vadd.xlane.f32.xlu0 %v3442
  %v3444 = vpop.xlane.xlu0 %3443
  %v3445 = vsel %vm91, %v3429, 0.0
  %3446 = vadd.xlane.f32.xlu0 %v3445
  %v3447 = vpop.xlane.xlu0 %3446
  %v3448 = vmul.f32 %v3432, %v110
  %v3449 = vmul.f32 %v3435, %v110
  %v3450 = vmul.f32 %v3438, %v110
  %v3451 = vmul.f32 %v3441, %v110
  %v3452 = vmul.f32 %v3444, %v110
  %v3453 = vmul.f32 %v3447, %v110
  %v3454 = vmul.f32 %v3418, %v3418
  %v3455 = vmul.f32 %v3419, %v3419
  %v3456 = vmul.f32 %v3420, %v3420
  %v3457 = vmul.f32 %v3421, %v3421
  %v3458 = vmul.f32 %v3422, %v3422
  %v3459 = vmul.f32 %v3423, %v3423
  %v3460 = vsub.f32 %v3448, %v3454
  %v3461 = vsub.f32 %v3449, %v3455
  %v3462 = vsub.f32 %v3450, %v3456
  %v3463 = vsub.f32 %v3451, %v3457
  %v3464 = vsub.f32 %v3452, %v3458
  %v3465 = vsub.f32 %v3453, %v3459
  %v3466 = vsub.f32 %v3390, %v3418
  %v3467 = vsub.f32 %v3391, %v3419
  %v3468 = vsub.f32 %v3392, %v3420
  %v3469 = vsub.f32 %v3393, %v3421
  %v3470 = vsub.f32 %v3394, %v3422
  %v3471 = vsub.f32 %v3395, %v3423
  %v3472 = vadd.f32 %v3460, 1e-05
  %v3473 = vadd.f32 %v3461, 1e-05
  %v3474 = vadd.f32 %v3462, 1e-05
  %v3475 = vadd.f32 %v3463, 1e-05
  %v3476 = vadd.f32 %v3464, 1e-05
  %v3477 = vadd.f32 %v3465, 1e-05
  %v3478 = vrsqrt.pop %v3472
  %v3479 = vrsqrt.pop %v3473
  %v3480 = vrsqrt.pop %v3474
  %v3481 = vrsqrt.pop %v3475
  %v3482 = vrsqrt.pop %v3476
  %v3483 = vrsqrt.pop %v3477
  %v3484 = vmul.f32 %v3466, %v3478
  %v3485 = vmul.f32 %v3467, %v3479
  %v3486 = vmul.f32 %v3468, %v3480
  %v3487 = vmul.f32 %v3469, %v3481
  %v3488 = vmul.f32 %v3470, %v3482
  %v3489 = vmul.f32 %v3471, %v3483
  %v3491 = vlaneseq
  %v3492 = vshrl.u32 %v3491, 7
  %v3493 = vsub.s32 0, %v3492
  %v3494 = vrot.slane %v3397, %v3493
  %v3496 = vmul.f32 %v3484, %v3494
  %v3497 = vmul.f32 %v3485, %v3494
  %v3498 = vmul.f32 %v3486, %v3494
  %v3499 = vmul.f32 %v3487, %v3494
  %v3500 = vmul.f32 %v3488, %v3494
  %v3501 = vmul.f32 %v3489, %v3494
  %v3503 = vlaneseq
  %v3504 = vshrl.u32 %v3503, 7
  %v3505 = vsub.s32 0, %v3504
  %v3506 = vrot.slane %v3399, %v3505
  %v3508 = vadd.f32 %v3496, %v3506
  %v3509 = vadd.f32 %v3497, %v3506
  %v3510 = vadd.f32 %v3498, %v3506
  %v3511 = vadd.f32 %v3499, %v3506
  %v3512 = vadd.f32 %v3500, %v3506
  %v3513 = vadd.f32 %v3501, %v3506
  %v3514 = vpack.c.bf16 %v3509, %v3508
  %v3515 = vpack.c.bf16 %v3511, %v3510
  %v3516 = vpack.c.bf16 %v3513, %v3512
  %s3517 = scalar_lea.vmem %s14, 64
  %v3518 = vld [vmem:[%s3517] sm:$0xff]
  %v3519 = vld [vmem:[%s3517 + $0x8] sm:$0xff]
  %v3520 = vld [vmem:[%s3517 + $0x10] sm:$0xff]
  %v3521 = vld [vmem:[%s3517 + $0x18] sm:$0xff]
  %v3522 = vld [vmem:[%s3517 + $0x20] sm:$0xff]
  %v3523 = vld [vmem:[%s3517 + $0x28] sm:$0xff]
  %v3524 = vld [vmem:[%s3517 + $0x30] sm:$0xff]
  %v3525 = vld [vmem:[%s3517 + $0x38] sm:$0xff]
  %s3526 = scalar_lea.vmem %s15, 2
  %v3527 = vld [vmem:[%s3526] sm:$0x3]
  %v3529 = vlaneseq
  %v3530 = vshrl.u32 %v3529, 7
  %v3531 = vsub.s32 0, %v3530
  %v3532 = vrot.slane %v3527, %v3531
  %v3533 = vlaneseq
  %v3534 = vshrl.u32 %v3533, 7
  %v3535 = vsub.s32 1, %v3534
  %v3536 = vrot.slane %v3527, %v3535
  %v3547 = vunpack.c.l.b16 %v3518
  %v3548 = vunpack.c.h.b16 %v3518
  %v3549 = vunpack.c.l.b16 %v3519
  %v3550 = vunpack.c.h.b16 %v3519
  %v3551 = vunpack.c.l.b16 %v3520
  %v3552 = vunpack.c.h.b16 %v3520
  %v3553 = vunpack.c.l.b16 %v3521
  %v3554 = vunpack.c.h.b16 %v3521
  %v3555 = vunpack.c.l.b16 %v3522
  %v3556 = vunpack.c.h.b16 %v3522
  %v3557 = vunpack.c.l.b16 %v3523
  %v3558 = vunpack.c.h.b16 %v3523
  %v3559 = vunpack.c.l.b16 %v3524
  %v3560 = vunpack.c.h.b16 %v3524
  %v3561 = vunpack.c.l.b16 %v3525
  %v3562 = vunpack.c.h.b16 %v3525
  %v3563 = vpack.c.b16 %v3549, %v3547
  %v3564 = vpack.c.b16 %v3550, %v3548
  %v3565 = vpack.c.b16 %v3553, %v3551
  %v3566 = vpack.c.b16 %v3554, %v3552
  %v3567 = vpack.c.b16 %v3557, %v3555
  %v3568 = vpack.c.b16 %v3558, %v3556
  %v3569 = vpack.c.b16 %v3561, %v3559
  %v3570 = vpack.c.b16 %v3562, %v3560
  %v3580 = vsel %vm91, %v3514, 0
  %v3583 = vsel %vm91, %v3515, 0
  %v3586 = vsel %vm91, %v3516, 0
  %3588 = vmatprep.subr.bf16.mxu0 0
  %3589 = vmatpush1.bf16.msra.mxu0 0
  %3590 = vmatprep.subr.bf16.mxu0 0
  %3591 = vmatpush1.bf16.msra.mxu0 0
  %3592 = vmatprep.subr.bf16.mxu0 0
  %3593 = vmatpush1.bf16.msra.mxu0 0
  %3594 = vmatprep.subr.bf16.mxu0 0
  %3595 = vmatpush1.bf16.msra.mxu0 0
  %3596 = vmatprep.subr.bf16.mxu0 %v3570
  %3597 = vmatpush1.bf16.msra.mxu0 %v3569
  %3598 = vmatprep.subr.bf16.mxu0 %v3568
  %3599 = vmatpush1.bf16.msra.mxu0 %v3567
  %3600 = vmatprep.subr.bf16.mxu0 %v3566
  %3601 = vmatpush1.bf16.msra.mxu0 %v3565
  %3602 = vmatprep.subr.bf16.mxu0 %v3564
  %3603 = vmatpush1.bf16.msra.mxu0 %v3563
  %3604 = vmatprep.subr.bf16.mxu0 0
  %3605 = vmatpush2.bf16.msra.mxu0 0
  %3606 = vmatprep.subr.bf16.mxu0 0
  %3607 = vmatpush2.bf16.msra.mxu0 0
  %3608 = vmatprep.subr.bf16.mxu0 0
  %3609 = vmatpush2.bf16.msra.mxu0 0
  %3610 = vmatprep.subr.bf16.mxu0 0
  %3611 = vmatpush2.bf16.msra.mxu0 0
  %3612 = vmatprep.subr.bf16.mxu0 0
  %3613 = vmatpush2.bf16.msra.mxu0 0
  %3614 = vmatprep.subr.bf16.mxu0 0
  %3615 = vmatpush2.bf16.msra.mxu0 0
  %3616 = vmatprep.subr.bf16.mxu0 0
  %3617 = vmatpush2.bf16.msra.mxu0 0
  %3618 = vmatprep.subr.bf16.mxu0 0
  %3619 = vmatpush2.bf16.msra.mxu0 0
  %3620 = vmatprep.mubr.bf16.mxu0 0
  %3621 = vmatmul.mubr.bf16.gmra.mxu0 %v3580
  %v3622 = vpop.f32.mrf.mxu0
  %v3623 = vadd.f32 %v3532, %v3622
  %v3624 = vpop.f32.mrf.mxu0
  %v3625 = vadd.f32 %v3536, %v3624
  %v3626 = vpop.f32.mrf.mxu0
  %v3627 = vadd.f32 %v3532, %v3626
  %v3628 = vpop.f32.mrf.mxu0
  %v3629 = vadd.f32 %v3536, %v3628
  %3630 = vmatprep.mubr.bf16.mxu0 0
  %3631 = vmatmul.mubr.bf16.gmra.mxu0 %v3583
  %v3632 = vpop.f32.mrf.mxu0
  %v3633 = vadd.f32 %v3532, %v3632
  %v3634 = vpop.f32.mrf.mxu0
  %v3635 = vadd.f32 %v3536, %v3634
  %v3636 = vpop.f32.mrf.mxu0
  %v3637 = vadd.f32 %v3532, %v3636
  %v3638 = vpop.f32.mrf.mxu0
  %v3639 = vadd.f32 %v3536, %v3638
  %3640 = vmatprep.mubr.bf16.mxu0 0
  %3641 = vmatmul.mubr.bf16.gmra.mxu0 %v3586
  %v3642 = vpop.f32.mrf.mxu0
  %v3643 = vadd.f32 %v3532, %v3642
  %v3644 = vpop.f32.mrf.mxu0
  %v3645 = vadd.f32 %v3536, %v3644
  %v3646 = vpop.f32.mrf.mxu0
  %v3647 = vadd.f32 %v3532, %v3646
  %v3648 = vpop.f32.mrf.mxu0
  %v3649 = vadd.f32 %v3536, %v3648
  %3650 = vdwg.mxu0
  %v3651 = vmul.f32 %v3623, 0.5
  %v3652 = vmul.f32 %v3625, 0.5
  %v3653 = vmul.f32 %v3627, 0.5
  %v3654 = vmul.f32 %v3629, 0.5
  %v3655 = vmul.f32 %v3633, 0.5
  %v3656 = vmul.f32 %v3635, 0.5
  %v3657 = vmul.f32 %v3637, 0.5
  %v3658 = vmul.f32 %v3639, 0.5
  %v3659 = vmul.f32 %v3643, 0.5
  %v3660 = vmul.f32 %v3645, 0.5
  %v3661 = vmul.f32 %v3647, 0.5
  %v3662 = vmul.f32 %v3649, 0.5
  %v3663 = vmul.f32 %v3623, 0.044715
  %v3664 = vmul.f32 %v3625, 0.044715
  %v3665 = vmul.f32 %v3627, 0.044715
  %v3666 = vmul.f32 %v3629, 0.044715
  %v3667 = vmul.f32 %v3633, 0.044715
  %v3668 = vmul.f32 %v3635, 0.044715
  %v3669 = vmul.f32 %v3637, 0.044715
  %v3670 = vmul.f32 %v3639, 0.044715
  %v3671 = vmul.f32 %v3643, 0.044715
  %v3672 = vmul.f32 %v3645, 0.044715
  %v3673 = vmul.f32 %v3647, 0.044715
  %v3674 = vmul.f32 %v3649, 0.044715
  %v3675 = vmul.f32 %v3663, %v3623
  %v3676 = vmul.f32 %v3664, %v3625
  %v3677 = vmul.f32 %v3665, %v3627
  %v3678 = vmul.f32 %v3666, %v3629
  %v3679 = vmul.f32 %v3667, %v3633
  %v3680 = vmul.f32 %v3668, %v3635
  %v3681 = vmul.f32 %v3669, %v3637
  %v3682 = vmul.f32 %v3670, %v3639
  %v3683 = vmul.f32 %v3671, %v3643
  %v3684 = vmul.f32 %v3672, %v3645
  %v3685 = vmul.f32 %v3673, %v3647
  %v3686 = vmul.f32 %v3674, %v3649
  %v3687 = vmul.f32 %v3675, %v3623
  %v3688 = vmul.f32 %v3676, %v3625
  %v3689 = vmul.f32 %v3677, %v3627
  %v3690 = vmul.f32 %v3678, %v3629
  %v3691 = vmul.f32 %v3679, %v3633
  %v3692 = vmul.f32 %v3680, %v3635
  %v3693 = vmul.f32 %v3681, %v3637
  %v3694 = vmul.f32 %v3682, %v3639
  %v3695 = vmul.f32 %v3683, %v3643
  %v3696 = vmul.f32 %v3684, %v3645
  %v3697 = vmul.f32 %v3685, %v3647
  %v3698 = vmul.f32 %v3686, %v3649
  %v3699 = vadd.f32 %v3623, %v3687
  %v3700 = vadd.f32 %v3625, %v3688
  %v3701 = vadd.f32 %v3627, %v3689
  %v3702 = vadd.f32 %v3629, %v3690
  %v3703 = vadd.f32 %v3633, %v3691
  %v3704 = vadd.f32 %v3635, %v3692
  %v3705 = vadd.f32 %v3637, %v3693
  %v3706 = vadd.f32 %v3639, %v3694
  %v3707 = vadd.f32 %v3643, %v3695
  %v3708 = vadd.f32 %v3645, %v3696
  %v3709 = vadd.f32 %v3647, %v3697
  %v3710 = vadd.f32 %v3649, %v3698
  %v3711 = vmul.f32 %v3699, 0.7978846
  %v3712 = vmul.f32 %v3700, 0.7978846
  %v3713 = vmul.f32 %v3701, 0.7978846
  %v3714 = vmul.f32 %v3702, 0.7978846
  %v3715 = vmul.f32 %v3703, 0.7978846
  %v3716 = vmul.f32 %v3704, 0.7978846
  %v3717 = vmul.f32 %v3705, 0.7978846
  %v3718 = vmul.f32 %v3706, 0.7978846
  %v3719 = vmul.f32 %v3707, 0.7978846
  %v3720 = vmul.f32 %v3708, 0.7978846
  %v3721 = vmul.f32 %v3709, 0.7978846
  %v3722 = vmul.f32 %v3710, 0.7978846
  %v3723 = vtanh.pop %v3711
  %v3724 = vtanh.pop %v3712
  %v3725 = vtanh.pop %v3713
  %v3726 = vtanh.pop %v3714
  %v3727 = vtanh.pop %v3715
  %v3728 = vtanh.pop %v3716
  %v3729 = vtanh.pop %v3717
  %v3730 = vtanh.pop %v3718
  %v3731 = vtanh.pop %v3719
  %v3732 = vtanh.pop %v3720
  %v3733 = vtanh.pop %v3721
  %v3734 = vtanh.pop %v3722
  %v3735 = vadd.f32 %v3723, 1.0
  %v3736 = vadd.f32 %v3724, 1.0
  %v3737 = vadd.f32 %v3725, 1.0
  %v3738 = vadd.f32 %v3726, 1.0
  %v3739 = vadd.f32 %v3727, 1.0
  %v3740 = vadd.f32 %v3728, 1.0
  %v3741 = vadd.f32 %v3729, 1.0
  %v3742 = vadd.f32 %v3730, 1.0
  %v3743 = vadd.f32 %v3731, 1.0
  %v3744 = vadd.f32 %v3732, 1.0
  %v3745 = vadd.f32 %v3733, 1.0
  %v3746 = vadd.f32 %v3734, 1.0
  %v3747 = vmul.f32 %v3651, %v3735
  %v3748 = vmul.f32 %v3652, %v3736
  %v3749 = vmul.f32 %v3653, %v3737
  %v3750 = vmul.f32 %v3654, %v3738
  %v3751 = vmul.f32 %v3655, %v3739
  %v3752 = vmul.f32 %v3656, %v3740
  %v3753 = vmul.f32 %v3657, %v3741
  %v3754 = vmul.f32 %v3658, %v3742
  %v3755 = vmul.f32 %v3659, %v3743
  %v3756 = vmul.f32 %v3660, %v3744
  %v3757 = vmul.f32 %v3661, %v3745
  %v3758 = vmul.f32 %v3662, %v3746
  %v3759 = vpack.c.bf16 %v3749, %v3747
  %v3760 = vpack.c.bf16 %v3750, %v3748
  %v3761 = vpack.c.bf16 %v3753, %v3751
  %v3762 = vpack.c.bf16 %v3754, %v3752
  %v3763 = vpack.c.bf16 %v3757, %v3755
  %v3764 = vpack.c.bf16 %v3758, %v3756
  %s3765 = scalar_lea.vmem %s16, 128
  %v3766 = vld [vmem:[%s3765] sm:$0xf]
  %v3767 = vld [vmem:[%s3765 + $0x4] sm:$0xf]
  %v3768 = vld [vmem:[%s3765 + $0x8] sm:$0xf]
  %v3769 = vld [vmem:[%s3765 + $0xc] sm:$0xf]
  %v3770 = vld [vmem:[%s3765 + $0x10] sm:$0xf]
  %v3771 = vld [vmem:[%s3765 + $0x14] sm:$0xf]
  %v3772 = vld [vmem:[%s3765 + $0x18] sm:$0xf]
  %v3773 = vld [vmem:[%s3765 + $0x1c] sm:$0xf]
  %v3774 = vld [vmem:[%s3765 + $0x20] sm:$0xf]
  %v3775 = vld [vmem:[%s3765 + $0x24] sm:$0xf]
  %v3776 = vld [vmem:[%s3765 + $0x28] sm:$0xf]
  %v3777 = vld [vmem:[%s3765 + $0x2c] sm:$0xf]
  %v3778 = vld [vmem:[%s3765 + $0x30] sm:$0xf]
  %v3779 = vld [vmem:[%s3765 + $0x34] sm:$0xf]
  %v3780 = vld [vmem:[%s3765 + $0x38] sm:$0xf]
  %v3781 = vld [vmem:[%s3765 + $0x3c] sm:$0xf]
  %v3782 = vld [vmem:[%s3765 + $0x40] sm:$0xf]
  %v3783 = vld [vmem:[%s3765 + $0x44] sm:$0xf]
  %v3784 = vld [vmem:[%s3765 + $0x48] sm:$0xf]
  %v3785 = vld [vmem:[%s3765 + $0x4c] sm:$0xf]
  %v3786 = vld [vmem:[%s3765 + $0x50] sm:$0xf]
  %v3787 = vld [vmem:[%s3765 + $0x54] sm:$0xf]
  %v3788 = vld [vmem:[%s3765 + $0x58] sm:$0xf]
  %v3789 = vld [vmem:[%s3765 + $0x5c] sm:$0xf]
  %v3790 = vld [vmem:[%s3765 + $0x60] sm:$0xf]
  %v3791 = vld [vmem:[%s3765 + $0x64] sm:$0xf]
  %v3792 = vld [vmem:[%s3765 + $0x68] sm:$0xf]
  %v3793 = vld [vmem:[%s3765 + $0x6c] sm:$0xf]
  %v3794 = vld [vmem:[%s3765 + $0x70] sm:$0xf]
  %v3795 = vld [vmem:[%s3765 + $0x74] sm:$0xf]
  %v3796 = vld [vmem:[%s3765 + $0x78] sm:$0xf]
  %v3797 = vld [vmem:[%s3765 + $0x7c] sm:$0xf]
  %v3830 = vunpack.c.l.b16 %v3766
  %v3831 = vunpack.c.l.b16 %v3767
  %v3832 = vunpack.c.l.b16 %v3768
  %v3833 = vunpack.c.l.b16 %v3769
  %v3834 = vunpack.c.l.b16 %v3770
  %v3835 = vunpack.c.l.b16 %v3771
  %v3836 = vunpack.c.l.b16 %v3772
  %v3837 = vunpack.c.l.b16 %v3773
  %v3838 = vunpack.c.l.b16 %v3774
  %v3839 = vunpack.c.l.b16 %v3775
  %v3840 = vunpack.c.l.b16 %v3776
  %v3841 = vunpack.c.l.b16 %v3777
  %v3842 = vunpack.c.l.b16 %v3778
  %v3843 = vunpack.c.l.b16 %v3779
  %v3844 = vunpack.c.l.b16 %v3780
  %v3845 = vunpack.c.l.b16 %v3781
  %v3846 = vunpack.c.l.b16 %v3782
  %v3847 = vunpack.c.l.b16 %v3783
  %v3848 = vunpack.c.l.b16 %v3784
  %v3849 = vunpack.c.l.b16 %v3785
  %v3850 = vunpack.c.l.b16 %v3786
  %v3851 = vunpack.c.l.b16 %v3787
  %v3852 = vunpack.c.l.b16 %v3788
  %v3853 = vunpack.c.l.b16 %v3789
  %v3854 = vunpack.c.l.b16 %v3790
  %v3855 = vunpack.c.l.b16 %v3791
  %v3856 = vunpack.c.l.b16 %v3792
  %v3857 = vunpack.c.l.b16 %v3793
  %v3858 = vunpack.c.l.b16 %v3794
  %v3859 = vunpack.c.l.b16 %v3795
  %v3860 = vunpack.c.l.b16 %v3796
  %v3861 = vunpack.c.l.b16 %v3797
  %v3862 = vpack.c.b16 %v3831, %v3830
  %v3863 = vpack.c.b16 %v3833, %v3832
  %v3864 = vpack.c.b16 %v3835, %v3834
  %v3865 = vpack.c.b16 %v3837, %v3836
  %v3866 = vpack.c.b16 %v3839, %v3838
  %v3867 = vpack.c.b16 %v3841, %v3840
  %v3868 = vpack.c.b16 %v3843, %v3842
  %v3869 = vpack.c.b16 %v3845, %v3844
  %v3870 = vpack.c.b16 %v3847, %v3846
  %v3871 = vpack.c.b16 %v3849, %v3848
  %v3872 = vpack.c.b16 %v3851, %v3850
  %v3873 = vpack.c.b16 %v3853, %v3852
  %v3874 = vpack.c.b16 %v3855, %v3854
  %v3875 = vpack.c.b16 %v3857, %v3856
  %v3876 = vpack.c.b16 %v3859, %v3858
  %v3877 = vpack.c.b16 %v3861, %v3860
  %3894 = vmatprep.subr.bf16.mxu0 0
  %3895 = vmatpush1.bf16.msra.mxu0 %v3869
  %3896 = vmatprep.subr.bf16.mxu0 0
  %3897 = vmatpush1.bf16.msra.mxu0 %v3868
  %3898 = vmatprep.subr.bf16.mxu0 0
  %3899 = vmatpush1.bf16.msra.mxu0 %v3867
  %3900 = vmatprep.subr.bf16.mxu0 0
  %3901 = vmatpush1.bf16.msra.mxu0 %v3866
  %3902 = vmatprep.subr.bf16.mxu0 0
  %3903 = vmatpush1.bf16.msra.mxu0 %v3865
  %3904 = vmatprep.subr.bf16.mxu0 0
  %3905 = vmatpush1.bf16.msra.mxu0 %v3864
  %3906 = vmatprep.subr.bf16.mxu0 0
  %3907 = vmatpush1.bf16.msra.mxu0 %v3863
  %3908 = vmatprep.subr.bf16.mxu0 0
  %3909 = vmatpush1.bf16.msra.mxu0 %v3862
  %3910 = vmatprep.subr.bf16.mxu0 0
  %3911 = vmatpush2.bf16.msra.mxu0 %v3877
  %3912 = vmatprep.subr.bf16.mxu0 0
  %3913 = vmatpush2.bf16.msra.mxu0 %v3876
  %3914 = vmatprep.subr.bf16.mxu0 0
  %3915 = vmatpush2.bf16.msra.mxu0 %v3875
  %3916 = vmatprep.subr.bf16.mxu0 0
  %3917 = vmatpush2.bf16.msra.mxu0 %v3874
  %3918 = vmatprep.subr.bf16.mxu0 0
  %3919 = vmatpush2.bf16.msra.mxu0 %v3873
  %3920 = vmatprep.subr.bf16.mxu0 0
  %3921 = vmatpush2.bf16.msra.mxu0 %v3872
  %3922 = vmatprep.subr.bf16.mxu0 0
  %3923 = vmatpush2.bf16.msra.mxu0 %v3871
  %3924 = vmatprep.subr.bf16.mxu0 0
  %3925 = vmatpush2.bf16.msra.mxu0 %v3870
  %3926 = vmatprep.mubr.bf16.mxu0 %v3760
  %3927 = vmatmul.mubr.bf16.gmra.mxu0 %v3759
  %v3928 = vpop.f32.mrf.mxu0
  %v3929 = vadd.f32 0.0, %v3928
  %v3930 = vpop.f32.mrf.mxu0
  %v3931 = vpop.f32.mrf.mxu0
  %v3932 = vadd.f32 0.0, %v3931
  %v3933 = vpop.f32.mrf.mxu0
  %3934 = vmatprep.mubr.bf16.mxu0 %v3762
  %3935 = vmatmul.mubr.bf16.gmra.mxu0 %v3761
  %v3936 = vpop.f32.mrf.mxu0
  %v3937 = vadd.f32 0.0, %v3936
  %v3938 = vpop.f32.mrf.mxu0
  %v3939 = vpop.f32.mrf.mxu0
  %v3940 = vadd.f32 0.0, %v3939
  %v3941 = vpop.f32.mrf.mxu0
  %3942 = vmatprep.mubr.bf16.mxu0 %v3764
  %3943 = vmatmul.mubr.bf16.gmra.mxu0 %v3763
  %v3944 = vpop.f32.mrf.mxu0
  %v3945 = vadd.f32 0.0, %v3944
  %v3946 = vpop.f32.mrf.mxu0
  %v3947 = vpop.f32.mrf.mxu0
  %v3948 = vadd.f32 0.0, %v3947
  %v3949 = vpop.f32.mrf.mxu0
  %3950 = vdwg.mxu0
  %v3951 = vadd.f32 %v3390, %v3929
  %v3952 = vadd.f32 %v3391, %v3932
  %v3953 = vadd.f32 %v3392, %v3937
  %v3954 = vadd.f32 %v3393, %v3940
  %v3955 = vadd.f32 %v3394, %v3945
  %v3956 = vadd.f32 %v3395, %v3948
  %s3957 = scalar_lea.vmem %s17, 1
  %v3958 = vld [vmem:[%s3957] sm:$0x1]
  %v3960 = vlaneseq
  %v3961 = vshrl.u32 %v3960, 7
  %v3962 = vsub.s32 0, %v3961
  %v3963 = vrot.slane %v3958, %v3962
  %v3965 = vadd.f32 %v3951, %v3963
  %v3966 = vadd.f32 %v3952, %v3963
  %v3967 = vadd.f32 %v3953, %v3963
  %v3968 = vadd.f32 %v3954, %v3963
  %v3969 = vadd.f32 %v3955, %v3963
  %v3970 = vadd.f32 %v3956, %v3963
  %v3971 = vld [vmem:[%s18] sm:$0x1]
  %v3972 = vld [vmem:[%s19] sm:$0x1]
  %v3973 = vsel %vm91, %v3965, 0.0
  %3974 = vadd.xlane.f32.xlu0 %v3973
  %v3975 = vpop.xlane.xlu0 %3974
  %v3976 = vsel %vm91, %v3966, 0.0
  %3977 = vadd.xlane.f32.xlu0 %v3976
  %v3978 = vpop.xlane.xlu0 %3977
  %v3979 = vsel %vm91, %v3967, 0.0
  %3980 = vadd.xlane.f32.xlu0 %v3979
  %v3981 = vpop.xlane.xlu0 %3980
  %v3982 = vsel %vm91, %v3968, 0.0
  %3983 = vadd.xlane.f32.xlu0 %v3982
  %v3984 = vpop.xlane.xlu0 %3983
  %v3985 = vsel %vm91, %v3969, 0.0
  %3986 = vadd.xlane.f32.xlu0 %v3985
  %v3987 = vpop.xlane.xlu0 %3986
  %v3988 = vsel %vm91, %v3970, 0.0
  %3989 = vadd.xlane.f32.xlu0 %v3988
  %v3990 = vpop.xlane.xlu0 %3989
  %v3991 = vmul.f32 %v3975, %v110
  %v3992 = vmul.f32 %v3978, %v110
  %v3993 = vmul.f32 %v3981, %v110
  %v3994 = vmul.f32 %v3984, %v110
  %v3995 = vmul.f32 %v3987, %v110
  %v3996 = vmul.f32 %v3990, %v110
  %v3997 = vmul.f32 %v3965, %v3965
  %v3998 = vmul.f32 %v3966, %v3966
  %v3999 = vmul.f32 %v3967, %v3967
  %v4000 = vmul.f32 %v3968, %v3968
  %v4001 = vmul.f32 %v3969, %v3969
  %v4002 = vmul.f32 %v3970, %v3970
  %v4003 = vsel %vm91, %v3997, 0.0
  %4004 = vadd.xlane.f32.xlu0 %v4003
  %v4005 = vpop.xlane.xlu0 %4004
  %v4006 = vsel %vm91, %v3998, 0.0
  %4007 = vadd.xlane.f32.xlu0 %v4006
  %v4008 = vpop.xlane.xlu0 %4007
  %v4009 = vsel %vm91, %v3999, 0.0
  %4010 = vadd.xlane.f32.xlu0 %v4009
  %v4011 = vpop.xlane.xlu0 %4010
  %v4012 = vsel %vm91, %v4000, 0.0
  %4013 = vadd.xlane.f32.xlu0 %v4012
  %v4014 = vpop.xlane.xlu0 %4013
  %v4015 = vsel %vm91, %v4001, 0.0
  %4016 = vadd.xlane.f32.xlu0 %v4015
  %v4017 = vpop.xlane.xlu0 %4016
  %v4018 = vsel %vm91, %v4002, 0.0
  %4019 = vadd.xlane.f32.xlu0 %v4018
  %v4020 = vpop.xlane.xlu0 %4019
  %v4021 = vmul.f32 %v4005, %v110
  %v4022 = vmul.f32 %v4008, %v110
  %v4023 = vmul.f32 %v4011, %v110
  %v4024 = vmul.f32 %v4014, %v110
  %v4025 = vmul.f32 %v4017, %v110
  %v4026 = vmul.f32 %v4020, %v110
  %v4027 = vmul.f32 %v3991, %v3991
  %v4028 = vmul.f32 %v3992, %v3992
  %v4029 = vmul.f32 %v3993, %v3993
  %v4030 = vmul.f32 %v3994, %v3994
  %v4031 = vmul.f32 %v3995, %v3995
  %v4032 = vmul.f32 %v3996, %v3996
  %v4033 = vsub.f32 %v4021, %v4027
  %v4034 = vsub.f32 %v4022, %v4028
  %v4035 = vsub.f32 %v4023, %v4029
  %v4036 = vsub.f32 %v4024, %v4030
  %v4037 = vsub.f32 %v4025, %v4031
  %v4038 = vsub.f32 %v4026, %v4032
  %v4039 = vsub.f32 %v3965, %v3991
  %v4040 = vsub.f32 %v3966, %v3992
  %v4041 = vsub.f32 %v3967, %v3993
  %v4042 = vsub.f32 %v3968, %v3994
  %v4043 = vsub.f32 %v3969, %v3995
  %v4044 = vsub.f32 %v3970, %v3996
  %v4045 = vadd.f32 %v4033, 1e-05
  %v4046 = vadd.f32 %v4034, 1e-05
  %v4047 = vadd.f32 %v4035, 1e-05
  %v4048 = vadd.f32 %v4036, 1e-05
  %v4049 = vadd.f32 %v4037, 1e-05
  %v4050 = vadd.f32 %v4038, 1e-05
  %v4051 = vrsqrt.pop %v4045
  %v4052 = vrsqrt.pop %v4046
  %v4053 = vrsqrt.pop %v4047
  %v4054 = vrsqrt.pop %v4048
  %v4055 = vrsqrt.pop %v4049
  %v4056 = vrsqrt.pop %v4050
  %v4057 = vmul.f32 %v4039, %v4051
  %v4058 = vmul.f32 %v4040, %v4052
  %v4059 = vmul.f32 %v4041, %v4053
  %v4060 = vmul.f32 %v4042, %v4054
  %v4061 = vmul.f32 %v4043, %v4055
  %v4062 = vmul.f32 %v4044, %v4056
  %v4064 = vlaneseq
  %v4065 = vshrl.u32 %v4064, 7
  %v4066 = vsub.s32 0, %v4065
  %v4067 = vrot.slane %v3971, %v4066
  %v4069 = vmul.f32 %v4057, %v4067
  %v4070 = vmul.f32 %v4058, %v4067
  %v4071 = vmul.f32 %v4059, %v4067
  %v4072 = vmul.f32 %v4060, %v4067
  %v4073 = vmul.f32 %v4061, %v4067
  %v4074 = vmul.f32 %v4062, %v4067
  %v4076 = vlaneseq
  %v4077 = vshrl.u32 %v4076, 7
  %v4078 = vsub.s32 0, %v4077
  %v4079 = vrot.slane %v3972, %v4078
  %v4081 = vadd.f32 %v4069, %v4079
  %v4082 = vadd.f32 %v4070, %v4079
  %v4083 = vadd.f32 %v4071, %v4079
  %v4084 = vadd.f32 %v4072, %v4079
  %v4085 = vadd.f32 %v4073, %v4079
  %v4086 = vadd.f32 %v4074, %v4079
  %v4087 = vpack.c.bf16 %v4082, %v4081
  %v4088 = vpack.c.bf16 %v4084, %v4083
  %v4089 = vpack.c.bf16 %v4086, %v4085
  %v4090 = vld [vmem:[%s20] sm:$0xf]
  %v4091 = vld [vmem:[%s20 + $0x4] sm:$0xf]
  %v4092 = vld [vmem:[%s20 + $0x8] sm:$0xf]
  %v4093 = vld [vmem:[%s20 + $0xc] sm:$0xf]
  %v4094 = vld [vmem:[%s20 + $0x10] sm:$0xf]
  %v4095 = vld [vmem:[%s20 + $0x14] sm:$0xf]
  %v4096 = vld [vmem:[%s20 + $0x18] sm:$0xf]
  %v4097 = vld [vmem:[%s20 + $0x1c] sm:$0xf]
  %v4098 = vld [vmem:[%s20 + $0x20] sm:$0xf]
  %v4099 = vld [vmem:[%s20 + $0x24] sm:$0xf]
  %v4100 = vld [vmem:[%s20 + $0x28] sm:$0xf]
  %v4101 = vld [vmem:[%s20 + $0x2c] sm:$0xf]
  %v4102 = vld [vmem:[%s20 + $0x30] sm:$0xf]
  %v4103 = vld [vmem:[%s20 + $0x34] sm:$0xf]
  %v4104 = vld [vmem:[%s20 + $0x38] sm:$0xf]
  %v4105 = vld [vmem:[%s20 + $0x3c] sm:$0xf]
  %v4122 = vunpack.c.l.b16 %v4090
  %v4123 = vunpack.c.l.b16 %v4091
  %v4124 = vunpack.c.l.b16 %v4092
  %v4125 = vunpack.c.l.b16 %v4093
  %v4126 = vunpack.c.l.b16 %v4094
  %v4127 = vunpack.c.l.b16 %v4095
  %v4128 = vunpack.c.l.b16 %v4096
  %v4129 = vunpack.c.l.b16 %v4097
  %v4130 = vunpack.c.l.b16 %v4098
  %v4131 = vunpack.c.l.b16 %v4099
  %v4132 = vunpack.c.l.b16 %v4100
  %v4133 = vunpack.c.l.b16 %v4101
  %v4134 = vunpack.c.l.b16 %v4102
  %v4135 = vunpack.c.l.b16 %v4103
  %v4136 = vunpack.c.l.b16 %v4104
  %v4137 = vunpack.c.l.b16 %v4105
  %v4138 = vpack.c.b16 %v4123, %v4122
  %v4139 = vpack.c.b16 %v4125, %v4124
  %v4140 = vpack.c.b16 %v4127, %v4126
  %v4141 = vpack.c.b16 %v4129, %v4128
  %v4142 = vpack.c.b16 %v4131, %v4130
  %v4143 = vpack.c.b16 %v4133, %v4132
  %v4144 = vpack.c.b16 %v4135, %v4134
  %v4145 = vpack.c.b16 %v4137, %v4136
  %v4147 = vsel %vm91, %v4087, 0
  %v4150 = vsel %vm91, %v4088, 0
  %v4153 = vsel %vm91, %v4089, 0
  %v4156 = vsel %vm91, %v4138, 0
  %v4159 = vsel %vm91, %v4139, 0
  %v4162 = vsel %vm91, %v4140, 0
  %v4165 = vsel %vm91, %v4141, 0
  %v4168 = vsel %vm91, %v4142, 0
  %v4171 = vsel %vm91, %v4143, 0
  %v4174 = vsel %vm91, %v4144, 0
  %v4177 = vsel %vm91, %v4145, 0
  %4179 = vmatprep.subr.bf16.mxu0 0
  %4180 = vmatpush1.bf16.xpose.msra.mxu0 %v4177
  %4181 = vmatprep.subr.bf16.mxu0 0
  %4182 = vmatpush1.bf16.xpose.msra.mxu0 %v4174
  %4183 = vmatprep.subr.bf16.mxu0 0
  %4184 = vmatpush1.bf16.xpose.msra.mxu0 %v4171
  %4185 = vmatprep.subr.bf16.mxu0 0
  %4186 = vmatpush1.bf16.xpose.msra.mxu0 %v4168
  %4187 = vmatprep.subr.bf16.mxu0 0
  %4188 = vmatpush1.bf16.xpose.msra.mxu0 %v4165
  %4189 = vmatprep.subr.bf16.mxu0 0
  %4190 = vmatpush1.bf16.xpose.msra.mxu0 %v4162
  %4191 = vmatprep.subr.bf16.mxu0 0
  %4192 = vmatpush1.bf16.xpose.msra.mxu0 %v4159
  %4193 = vmatprep.subr.bf16.mxu0 0
  %4194 = vmatpush1.bf16.xpose.msra.mxu0 %v4156
  %4195 = vmatprep.subr.bf16.mxu0 0
  %4196 = vmatpush2.bf16.xpose.msra.mxu0 0
  %4197 = vmatprep.subr.bf16.mxu0 0
  %4198 = vmatpush2.bf16.xpose.msra.mxu0 0
  %4199 = vmatprep.subr.bf16.mxu0 0
  %4200 = vmatpush2.bf16.xpose.msra.mxu0 0
  %4201 = vmatprep.subr.bf16.mxu0 0
  %4202 = vmatpush2.bf16.xpose.msra.mxu0 0
  %4203 = vmatprep.subr.bf16.mxu0 0
  %4204 = vmatpush2.bf16.xpose.msra.mxu0 0
  %4205 = vmatprep.subr.bf16.mxu0 0
  %4206 = vmatpush2.bf16.xpose.msra.mxu0 0
  %4207 = vmatprep.subr.bf16.mxu0 0
  %4208 = vmatpush2.bf16.xpose.msra.mxu0 0
  %4209 = vmatprep.subr.bf16.mxu0 0
  %4210 = vmatpush2.bf16.xpose.msra.mxu0 0
  %4211 = vmatprep.mubr.bf16.mxu0 0
  %4212 = vmatmul.mubr.bf16.gmra.mxu0 %v4147
  %v4213 = vpop.f32.mrf.mxu0
  %v4214 = vadd.f32 0.0, %v4213
  %v4215 = vpop.f32.mrf.mxu0
  %v4216 = vpop.f32.mrf.mxu0
  %v4217 = vadd.f32 0.0, %v4216
  %v4218 = vpop.f32.mrf.mxu0
  %4219 = vmatprep.mubr.bf16.mxu0 0
  %4220 = vmatmul.mubr.bf16.gmra.mxu0 %v4150
  %v4221 = vpop.f32.mrf.mxu0
  %v4222 = vadd.f32 0.0, %v4221
  %v4223 = vpop.f32.mrf.mxu0
  %v4224 = vpop.f32.mrf.mxu0
  %v4225 = vadd.f32 0.0, %v4224
  %v4226 = vpop.f32.mrf.mxu0
  %4227 = vmatprep.mubr.bf16.mxu0 0
  %4228 = vmatmul.mubr.bf16.gmra.mxu0 %v4153
  %v4229 = vpop.f32.mrf.mxu0
  %v4230 = vadd.f32 0.0, %v4229
  %v4231 = vpop.f32.mrf.mxu0
  %v4232 = vpop.f32.mrf.mxu0
  %v4233 = vadd.f32 0.0, %v4232
  %v4234 = vpop.f32.mrf.mxu0
  %4235 = vdwg.mxu0
  %4236 = vst [vmem:[%s23] sm:$0xff] %v4214
  %4237 = vst [vmem:[%s23 + $0x8] sm:$0xff] %v4217
  %4238 = vst [vmem:[%s23 + $0x10] sm:$0xff] %v4222
  %4239 = vst [vmem:[%s23 + $0x18] sm:$0xff] %v4225
  %4240 = vst [vmem:[%s23 + $0x20] sm:$0xff] %v4230
  %4241 = vst [vmem:[%s23 + $0x28] sm:$0xff] %v4233
  %v4242 = vld [vmem:[%s21] sm:$0xf]
  %v4243 = vld [vmem:[%s21 + $0x4] sm:$0xf]
  %v4244 = vld [vmem:[%s21 + $0x8] sm:$0xf]
  %v4245 = vld [vmem:[%s21 + $0xc] sm:$0xf]
  %v4246 = vld [vmem:[%s21 + $0x10] sm:$0xf]
  %v4247 = vld [vmem:[%s21 + $0x14] sm:$0xf]
  %v4248 = vld [vmem:[%s21 + $0x18] sm:$0xf]
  %v4249 = vld [vmem:[%s21 + $0x1c] sm:$0xf]
  %v4250 = vld [vmem:[%s22] sm:$0x1]
  %v4252 = vlaneseq
  %v4253 = vshrl.u32 %v4252, 7
  %v4254 = vsub.s32 0, %v4253
  %v4255 = vrot.slane %v4250, %v4254
  %v4265 = vunpack.c.l.b16 %v4242
  %v4266 = vunpack.c.l.b16 %v4243
  %v4267 = vunpack.c.l.b16 %v4244
  %v4268 = vunpack.c.l.b16 %v4245
  %v4269 = vunpack.c.l.b16 %v4246
  %v4270 = vunpack.c.l.b16 %v4247
  %v4271 = vunpack.c.l.b16 %v4248
  %v4272 = vunpack.c.l.b16 %v4249
  %v4273 = vpack.c.b16 %v4266, %v4265
  %v4274 = vpack.c.b16 %v4268, %v4267
  %v4275 = vpack.c.b16 %v4270, %v4269
  %v4276 = vpack.c.b16 %v4272, %v4271
  %4281 = vmatprep.subr.bf16.mxu0 0
  %4282 = vmatpush1.bf16.msra.mxu0 0
  %4283 = vmatprep.subr.bf16.mxu0 0
  %4284 = vmatpush1.bf16.msra.mxu0 0
  %4285 = vmatprep.subr.bf16.mxu0 0
  %4286 = vmatpush1.bf16.msra.mxu0 0
  %4287 = vmatprep.subr.bf16.mxu0 0
  %4288 = vmatpush1.bf16.msra.mxu0 0
  %4289 = vmatprep.subr.bf16.mxu0 0
  %4290 = vmatpush1.bf16.msra.mxu0 %v4276
  %4291 = vmatprep.subr.bf16.mxu0 0
  %4292 = vmatpush1.bf16.msra.mxu0 %v4275
  %4293 = vmatprep.subr.bf16.mxu0 0
  %4294 = vmatpush1.bf16.msra.mxu0 %v4274
  %4295 = vmatprep.subr.bf16.mxu0 0
  %4296 = vmatpush1.bf16.msra.mxu0 %v4273
  %4297 = vmatprep.subr.bf16.mxu0 0
  %4298 = vmatpush2.bf16.msra.mxu0 0
  %4299 = vmatprep.subr.bf16.mxu0 0
  %4300 = vmatpush2.bf16.msra.mxu0 0
  %4301 = vmatprep.subr.bf16.mxu0 0
  %4302 = vmatpush2.bf16.msra.mxu0 0
  %4303 = vmatprep.subr.bf16.mxu0 0
  %4304 = vmatpush2.bf16.msra.mxu0 0
  %4305 = vmatprep.subr.bf16.mxu0 0
  %4306 = vmatpush2.bf16.msra.mxu0 0
  %4307 = vmatprep.subr.bf16.mxu0 0
  %4308 = vmatpush2.bf16.msra.mxu0 0
  %4309 = vmatprep.subr.bf16.mxu0 0
  %4310 = vmatpush2.bf16.msra.mxu0 0
  %4311 = vmatprep.subr.bf16.mxu0 0
  %4312 = vmatpush2.bf16.msra.mxu0 0
  %4313 = vmatprep.mubr.bf16.mxu0 0
  %4314 = vmatmul.mubr.bf16.gmra.mxu0 %v4147
  %v4315 = vpop.f32.mrf.mxu0
  %v4316 = vadd.f32 %v4255, %v4315
  %v4317 = vpop.f32.mrf.mxu0
  %v4318 = vpop.f32.mrf.mxu0
  %v4319 = vadd.f32 %v4255, %v4318
  %v4320 = vpop.f32.mrf.mxu0
  %4321 = vmatprep.mubr.bf16.mxu0 0
  %4322 = vmatmul.mubr.bf16.gmra.mxu0 %v4150
  %v4323 = vpop.f32.mrf.mxu0
  %v4324 = vadd.f32 %v4255, %v4323
  %v4325 = vpop.f32.mrf.mxu0
  %v4326 = vpop.f32.mrf.mxu0
  %v4327 = vadd.f32 %v4255, %v4326
  %v4328 = vpop.f32.mrf.mxu0
  %4329 = vmatprep.mubr.bf16.mxu0 0
  %4330 = vmatmul.mubr.bf16.gmra.mxu0 %v4153
  %v4331 = vpop.f32.mrf.mxu0
  %v4332 = vadd.f32 %v4255, %v4331
  %v4333 = vpop.f32.mrf.mxu0
  %v4334 = vpop.f32.mrf.mxu0
  %v4335 = vadd.f32 %v4255, %v4334
  %v4336 = vpop.f32.mrf.mxu0
  %4337 = vdwg.mxu0
  %4338 = vst [vmem:[%s24] sm:$0xff] %v4316
  %4339 = vst [vmem:[%s24 + $0x8] sm:$0xff] %v4319
  %4340 = vst [vmem:[%s24 + $0x10] sm:$0xff] %v4324
  %4341 = vst [vmem:[%s24 + $0x18] sm:$0xff] %v4327
  %4342 = vst [vmem:[%s24 + $0x20] sm:$0xff] %v4332
  %4343 = vst [vmem:[%s24 + $0x28] sm:$0xff] %v4335
  // Predicated region
  $region94: #{_device_forward.1} parent=0 // pred_check
    _
  $region95: #{_device_forward.1} parent=0 // pred_check_branch
    %4345 = sbr.rel (0) target = $region97
  $region96: #{_device_forward.1} parent=0 // pred_region
    _
  $region97: #{_device_forward.1} parent=0 // pred_fallthru
    _
  // Predicated region
  $region98: #{_device_forward.1} parent=0 // pred_check
    _
  $region99: #{_device_forward.1} parent=0 // pred_check_branch
    %4347 = sbr.rel (0) target = $region101
  $region100: #{_device_forward.1} parent=0 // pred_region
    _
  $region101: #{_device_forward.1} parent=0 // pred_fallthru
    _
  // Predicated region
  $region102: #{_device_forward.1} parent=0 // pred_check
    _
  $region103: #{_device_forward.1} parent=0 // pred_check_branch
    %4349 = sbr.rel (0) target = $region105
  $region104: #{_device_forward.1} parent=0 // pred_region
    _
  $region105: #{_device_forward.1} parent=0 // pred_fallthru
    _
  // Predicated region
  $region106: #{_device_forward.1} parent=0 // pred_check
    _
  $region107: #{_device_forward.1} parent=0 // pred_check_branch
    %4351 = sbr.rel (0) target = $region109
  $region108: #{_device_forward.1} parent=0 // pred_region
    _
  $region109: #{_device_forward.1} parent=0 // pred_fallthru
    _

</llo_original>
